<compile_context>
chip_gen: v6e
topology: v6e:2x2x1
jax: 0.10.0
libtpu: 0.0.40
codegen_flags: <defaults>
</compile_context>

<pallas_src>
import numpy as np
import jax
import jax.numpy as jnp
from jax.experimental import pallas as pl
from jax.experimental.pallas import tpu as pltpu

NIMG = 8  # images per grid step (8/16/32 all fit VMEM easily)


# ------------------------------ fused kernel ------------------------------- #

def _lenet_fused_kernel(
    x_ref,                       # (NIMG*8, 128)  4 input rows packed per sublane-row
    w1_ref, b1_ref,              # (256, 672), (1, 672)
    s1_ref,                      # (336, 168)   pool1 even-column picker
    w2_ref, b2_ref,              # (504, 320), (1, 320)
    s2_ref,                      # (160, 80)    pool2 even-column picker
    wf1_ref, bf1_ref,            # (400, 120), (1, 120)
    wf2_ref, bf2_ref,            # (120, 84),  (1, 84)
    wf3_ref, bf3_ref,            # (84, 128),  (1, 128)   (padded to 128 lanes)
    o_ref,                       # (NIMG*8, 128)  row 8*n of each image block = logits
):
    f32 = jnp.float32
    x = x_ref[...]                                           # (R, 128)

    def shift_rows(a, k):
        # a shifted up by k rows.  Wrapped rows only ever pollute padding rows
        # that no valid output consumes (checked per stage below).
        return jnp.roll(a, -k, axis=0)

    def shift_lanes(a, k):
        return jnp.roll(a, -k, axis=1)

    # ---- conv1 (1->6, 5x5, valid) + bias + ReLU ---------------------------
    # Input row r of sublane-row g (r = 4g+q) lives at lane q*32+c.  im2row
    # needs rows 4g..4g+7 -> this sublane-row and the next one.
    lhs1 = jnp.concatenate([x, shift_rows(x, 1)], axis=1)    # (R, 256)
    y1 = jnp.dot(lhs1, w1_ref[...], preferred_element_type=f32) + b1_ref[...]
    y1 = jnp.maximum(y1, 0.0)                                # (R, 672)
    # lane layout: parity*336 + u*168 + ow*6 + oc, output row = 4g + 2u + parity.

    # ---- maxpool1 2x2 ------------------------------------------------------
    m1 = jnp.maximum(y1[:, 0:336], y1[:, 336:672])           # row-pair max (lanes)
    m1 = jnp.maximum(m1, shift_lanes(m1, 6))                 # column neighbour max
    p1 = jnp.dot(m1, s1_ref[...], preferred_element_type=f32)   # (R, 168) even cols
    # lane layout: u*84 + w*6 + ch, pool1 row = 2g + u.

    # ---- conv2 (6->16, 5x5, valid) + bias + ReLU --------------------------
    lhs2 = jnp.concatenate(
        [p1, shift_rows(p1, 1), shift_rows(p1, 2)], axis=1)  # (R, 504)
    y2 = jnp.dot(lhs2, w2_ref[...], preferred_element_type=f32) + b2_ref[...]
    y2 = jnp.maximum(y2, 0.0)                                # (R, 320)
    # lane layout: parity*160 + ow2*16 + oc2, output row = 2g + parity.

    # ---- maxpool2 2x2 ------------------------------------------------------
    m2 = jnp.maximum(y2[:, 0:160], y2[:, 160:320])           # row-pair max
    m2 = jnp.maximum(m2, shift_lanes(m2, 16))                # column neighbour max
    p2 = jnp.dot(m2, s2_ref[...], preferred_element_type=f32)   # (R, 80)
    # lane layout: w2*16 + ch2, pool2 row = g (valid g = 0..4).

    # ---- flatten + FC stack (one matmul per layer) -------------------------
    # Row 8*n gathers its image's 5 pool2 rows into 400 lanes; all other rows
    # are dead padding carried through the FC matmuls (negligible extra work).
    feat = jnp.concatenate(
        [p2] + [shift_rows(p2, v) for v in range(1, 5)], axis=1)   # (R, 400)
    z = jnp.maximum(
        jnp.dot(feat, wf1_ref[...], preferred_element_type=f32) + bf1_ref[...], 0.0)
    z = jnp.maximum(
        jnp.dot(z, wf2_ref[...], preferred_element_type=f32) + bf2_ref[...], 0.0)
    out = jnp.dot(z, wf3_ref[...], preferred_element_type=f32) + bf3_ref[...]
    o_ref[...] = out.astype(o_ref.dtype)                     # (R, 128)


# -------------------------- host-side weight prep --------------------------- #

def prepare_params(params):
    """One-time repack of PyTorch-layout weights into the fused-kernel layout."""
    (w1, b1, w2, b2, fw1, fb1, fw2, fb2, fw3, fb3) = [
        np.asarray(p, np.float32) for p in params]

    # Conv1 banded matrix W1 (256, 672):
    #   row  k   = s*32 + c         (s = input row within the 8-row window)
    #   col  l   = parity*336 + u*168 + ow*6 + oc   (output row = 4g + 2u + parity)
    W1 = np.zeros((256, 672), np.float32)
    for parity in range(2):
        for u in range(2):
            base = 2 * u + parity
            for ow in range(28):
                for oc in range(6):
                    col = parity * 336 + u * 168 + ow * 6 + oc
                    for ki in range(5):
                        for kj in range(5):
                            W1[(base + ki) * 32 + (ow + kj), col] = w1[oc, 0, ki, kj]
    B1 = np.tile(b1, 112)[None, :]                           # (1, 672)

    # Pool1 even-column picker S1 (336, 168): (u, ow=2w, oc) -> (u, w, oc).
    S1 = np.zeros((336, 168), np.float32)
    for u in range(2):
        for w in range(14):
            for oc in range(6):
                S1[u * 168 + (2 * w) * 6 + oc, u * 84 + w * 6 + oc] = 1.0

    # Conv2 banded matrix W2 (504, 320):
    #   row  k = t*84 + w*6 + ch    (t = pool1 row offset within the 6-row window)
    #   col  l = r*160 + ow2*16 + oc2   (output row = 2g + r)
    W2 = np.zeros((504, 320), np.float32)
    for r in range(2):
        for ow2 in range(10):
            for oc2 in range(16):
                col = r * 160 + ow2 * 16 + oc2
                for ch in range(6):
                    for ki in range(5):
                        for kj in range(5):
                            W2[(r + ki) * 84 + (ow2 + kj) * 6 + ch, col] = \
                                w2[oc2, ch, ki, kj]
    B2 = np.tile(b2, 20)[None, :]                            # (1, 320)

    # Pool2 even-column picker S2 (160, 80).
    S2 = np.zeros((160, 80), np.float32)
    for w in range(5):
        for oc in range(16):
            S2[(2 * w) * 16 + oc, w * 16 + oc] = 1.0

    # FC1: kernel feature order is (h2, w2, ch2); torch.flatten order is
    # (ch2, h2, w2).  Permute once here.
    WF1 = np.transpose(fw1.reshape(120, 16, 5, 5), (2, 3, 1, 0)).reshape(400, 120)
    WF2 = fw2.T                                              # (120, 84)
    # FC3 padded to 128 output lanes for a dense (unmasked) store.
    WF3 = np.zeros((84, 128), np.float32); WF3[:, :10] = fw3.T
    BF3 = np.zeros((1, 128), np.float32);  BF3[0, :10] = fb3

    packed = (W1, B1, S1, W2, B2, S2,
              WF1, fb1[None, :], WF2, fb2[None, :], WF3, BF3)
    return tuple(jnp.asarray(a, jnp.float32) for a in packed)


# ------------------------------ forward pass -------------------------------- #

def lenet_forward(x_nchw, prepped, nimg=NIMG):
    """Fused LeNet forward: one pallas_call, grid over blocks of `nimg` images."""
    B = x_nchw.shape[0]
    # Pack 4 image rows per sublane-row: (B,1,32,32) -> (B*8, 128),
    # row b*8+g, lane q*32+c  <->  pixel (b, 4g+q, c).
    x2 = x_nchw.reshape(B, 8, 128)
    bp = ((B + nimg - 1) // nimg) * nimg
    if bp != B:
        x2 = jnp.pad(x2, ((0, bp - B), (0, 0), (0, 0)))
    x2 = x2.reshape(bp * 8, 128)
    nsteps = bp // nimg

    def const_spec(a):
        return pl.BlockSpec(a.shape, lambda b: (0, 0))

    out = pl.pallas_call(
        _lenet_fused_kernel,
        out_shape=jax.ShapeDtypeStruct((bp * 8, 128), jnp.float32),
        grid=(nsteps,),
        in_specs=[pl.BlockSpec((nimg * 8, 128), lambda b: (b, 0))]
                 + [const_spec(a) for a in prepped],
        out_specs=pl.BlockSpec((nimg * 8, 128), lambda b: (b, 0)),
        compiler_params=pltpu.CompilerParams(
            # Batch blocks are independent -> megacore / 2-TC split on v7x.
            dimension_semantics=("parallel",),
        ),
        # VMEM budget: ~1.9 MB of weights (x2 buffers) + <1 MB activations per
        # step, independent of batch size -> no vmem_limit override needed on
        # v5e / v6e / v7x.
    )(x2, *prepped)

    # Row 8*n of each image block carries image n's logits (first 10 lanes).
    return out.reshape(bp, 8, 128)[:B, 0, :10]


# --------------------------- reference & params ----------------------------- #

def init_params(key):
    """Deterministic PyTorch-style uniform init (synthetic weights)."""
    def uni(k, shape, fan_in):
        bound = 1.0 / (fan_in ** 0.5)
        return jax.random.uniform(k, shape, jnp.float32, -bound, bound)

    ks = jax.random.split(key, 10)
    w1 = uni(ks[0], (6, 1, 5, 5), 1 * 5 * 5)
    b1 = uni(ks[1], (6,), 1 * 5 * 5)
    w2 = uni(ks[2], (16, 6, 5, 5), 6 * 5 * 5)
    b2 = uni(ks[3], (16,), 6 * 5 * 5)
    fw1 = uni(ks[4], (120, 400), 400)
    fb1 = uni(ks[5], (120,), 400)
    fw2 = uni(ks[6], (84, 120), 120)
    fb2 = uni(ks[7], (84,), 120)
    fw3 = uni(ks[8], (10, 84), 84)
    fb3 = uni(ks[9], (10,), 84)
    return (w1, b1, w2, b2, fw1, fb1, fw2, fb2, fw3, fb3)


def lenet_reference(x_nchw, params):
    """Pure-JAX/XLA reference of the PyTorch module (numerical cross-check)."""
    (w1, b1, w2, b2, fw1, fb1, fw2, fb2, fw3, fb3) = params
    hp = jax.lax.Precision.HIGHEST
    dn = ("NCHW", "OIHW", "NCHW")
    y = jax.lax.conv_general_dilated(x_nchw, w1, (1, 1), "VALID",
                                     dimension_numbers=dn, precision=hp)
    y = jax.nn.relu(y + b1[None, :, None, None])
    y = jax.lax.reduce_window(y, -jnp.inf, jax.lax.max,
                              (1, 1, 2, 2), (1, 1, 2, 2), "VALID")
    y = jax.lax.conv_general_dilated(y, w2, (1, 1), "VALID",
                                     dimension_numbers=dn, precision=hp)
    y = jax.nn.relu(y + b2[None, :, None, None])
    y = jax.lax.reduce_window(y, -jnp.inf, jax.lax.max,
                              (1, 1, 2, 2), (1, 1, 2, 2), "VALID")
    y = y.reshape(y.shape[0], -1)                 # torch.flatten(x, 1) order
    y = jax.nn.relu(jnp.dot(y, fw1.T, precision=hp) + fb1)
    y = jax.nn.relu(jnp.dot(y, fw2.T, precision=hp) + fb2)
    return jnp.dot(y, fw3.T, precision=hp) + fb3


# ---------------------------------- main ------------------------------------ #

if __name__ == "__main__":
    key = jax.random.PRNGKey(0)
    pkey, xkey = jax.random.split(key)

    params = init_params(pkey)
    prepped = prepare_params(params)     # one-time weight repack (not per call)

    # LeNet expects 32x32 single-channel input (so flatten is 16*5*5 = 400).
    x = jax.random.normal(xkey, (2, 1, 32, 32), dtype=jnp.float32)

    logits = jax.block_until_ready(jax.jit(lenet_forward)(x, prepped))
    assert logits.shape == (2, 10), logits.shape
    assert logits.dtype == jnp.float32

    # Numerical cross-check against the XLA reference (all-f32 path -> tight
    # tolerance so layout/permutation regressions cannot hide).
    ref = jax.block_until_ready(jax.jit(lenet_reference)(x, params))
    assert jnp.allclose(logits, ref, rtol=1e-3, atol=1e-3), (
        float(jnp.max(jnp.abs(logits - ref))))

    print("KERNEL_OK")
</pallas_src>

<mosaic_0001>
module attributes {stable_mosaic.version = 11 : i64} {
  func.func @_lenet_fused_kernel(%arg0: i32, %arg1: memref<64x128xf32, #tpu.memory_space<vmem>>, %arg2: memref<256x672xf32, #tpu.memory_space<vmem>>, %arg3: memref<1x672xf32, #tpu.memory_space<vmem>>, %arg4: memref<336x168xf32, #tpu.memory_space<vmem>>, %arg5: memref<504x320xf32, #tpu.memory_space<vmem>>, %arg6: memref<1x320xf32, #tpu.memory_space<vmem>>, %arg7: memref<160x80xf32, #tpu.memory_space<vmem>>, %arg8: memref<400x120xf32, #tpu.memory_space<vmem>>, %arg9: memref<1x120xf32, #tpu.memory_space<vmem>>, %arg10: memref<120x84xf32, #tpu.memory_space<vmem>>, %arg11: memref<1x84xf32, #tpu.memory_space<vmem>>, %arg12: memref<84x128xf32, #tpu.memory_space<vmem>>, %arg13: memref<1x128xf32, #tpu.memory_space<vmem>>, %arg14: memref<64x128xf32, #tpu.memory_space<vmem>>) attributes {dimension_semantics = [#tpu.dimension_semantics<parallel>], iteration_bounds = array<i64: 1>, scalar_prefetch = 0 : i64, scratch_operands = 0 : i64, tpu.core_type = #tpu.core_type<tc>, window_params = [{transform_indices = @transform_0, window_bounds = array<i64: 64, 128>}, {pipeline_mode = #tpu.pipeline_mode<synchronous>, transform_indices = @transform_1, window_bounds = array<i64: 256, 672>}, {pipeline_mode = #tpu.pipeline_mode<synchronous>, transform_indices = @transform_2, window_bounds = array<i64: 1, 672>}, {pipeline_mode = #tpu.pipeline_mode<synchronous>, transform_indices = @transform_3, window_bounds = array<i64: 336, 168>}, {pipeline_mode = #tpu.pipeline_mode<synchronous>, transform_indices = @transform_4, window_bounds = array<i64: 504, 320>}, {pipeline_mode = #tpu.pipeline_mode<synchronous>, transform_indices = @transform_5, window_bounds = array<i64: 1, 320>}, {pipeline_mode = #tpu.pipeline_mode<synchronous>, transform_indices = @transform_6, window_bounds = array<i64: 160, 80>}, {pipeline_mode = #tpu.pipeline_mode<synchronous>, transform_indices = @transform_7, window_bounds = array<i64: 400, 120>}, {pipeline_mode = #tpu.pipeline_mode<synchronous>, transform_indices = @transform_8, window_bounds = array<i64: 1, 120>}, {pipeline_mode = #tpu.pipeline_mode<synchronous>, transform_indices = @transform_9, window_bounds = array<i64: 120, 84>}, {pipeline_mode = #tpu.pipeline_mode<synchronous>, transform_indices = @transform_10, window_bounds = array<i64: 1, 84>}, {pipeline_mode = #tpu.pipeline_mode<synchronous>, transform_indices = @transform_11, window_bounds = array<i64: 84, 128>}, {pipeline_mode = #tpu.pipeline_mode<synchronous>, transform_indices = @transform_12, window_bounds = array<i64: 1, 128>}, {transform_indices = @transform_13, window_bounds = array<i64: 64, 128>}]} {
    %c0 = arith.constant 0 : index
    %c0_0 = arith.constant 0 : index
    %0 = vector.load %arg1[%c0, %c0_0] : memref<64x128xf32, #tpu.memory_space<vmem>>, vector<64x128xf32>
    %1 = vector.extract_strided_slice %0 {offsets = [1, 0], sizes = [63, 128], strides = [1, 1]} : vector<64x128xf32> to vector<63x128xf32>
    %2 = vector.extract_strided_slice %0 {offsets = [0, 0], sizes = [1, 128], strides = [1, 1]} : vector<64x128xf32> to vector<1x128xf32>
    %3 = tpu.concatenate %1, %2 in 0 : vector<63x128xf32>, vector<1x128xf32> -> vector<64x128xf32>
    %4 = tpu.concatenate %0, %3 in 1 : vector<64x128xf32>, vector<64x128xf32> -> vector<64x256xf32>
    %c0_1 = arith.constant 0 : index
    %c0_2 = arith.constant 0 : index
    %5 = vector.load %arg2[%c0_1, %c0_2] : memref<256x672xf32, #tpu.memory_space<vmem>>, vector<256x672xf32>
    %cst = arith.constant dense<0.000000e+00> : vector<64x672xf32>
    %6 = tpu.matmul %4, %5, %cst {dimension_numbers = #tpu.dot_dimension_numbers<[1], [0], [0], [1], [0, 0, 1, 1], [], []>} : vector<64x256xf32>, vector<256x672xf32>, vector<64x672xf32> -> vector<64x672xf32>
    %c0_3 = arith.constant 0 : index
    %c0_4 = arith.constant 0 : index
    %7 = vector.load %arg3[%c0_3, %c0_4] : memref<1x672xf32, #tpu.memory_space<vmem>>, vector<1x672xf32>
    %8 = vector.broadcast %7 : vector<1x672xf32> to vector<64x672xf32>
    %9 = arith.addf %6, %8 : vector<64x672xf32>
    %cst_5 = arith.constant 0.000000e+00 : f32
    %10 = vector.broadcast %cst_5 : f32 to vector<64x672xf32>
    %11 = arith.maximumf %9, %10 : vector<64x672xf32>
    %12 = vector.extract_strided_slice %11 {offsets = [0, 0], sizes = [64, 336], strides = [1, 1]} : vector<64x672xf32> to vector<64x336xf32>
    %13 = vector.extract_strided_slice %11 {offsets = [0, 336], sizes = [64, 336], strides = [1, 1]} : vector<64x672xf32> to vector<64x336xf32>
    %14 = arith.maximumf %12, %13 : vector<64x336xf32>
    %15 = vector.extract_strided_slice %14 {offsets = [0, 6], sizes = [64, 330], strides = [1, 1]} : vector<64x336xf32> to vector<64x330xf32>
    %16 = vector.extract_strided_slice %14 {offsets = [0, 0], sizes = [64, 6], strides = [1, 1]} : vector<64x336xf32> to vector<64x6xf32>
    %17 = tpu.concatenate %15, %16 in 1 : vector<64x330xf32>, vector<64x6xf32> -> vector<64x336xf32>
    %18 = arith.maximumf %14, %17 : vector<64x336xf32>
    %c0_6 = arith.constant 0 : index
    %c0_7 = arith.constant 0 : index
    %19 = vector.load %arg4[%c0_6, %c0_7] : memref<336x168xf32, #tpu.memory_space<vmem>>, vector<336x168xf32>
    %cst_8 = arith.constant dense<0.000000e+00> : vector<64x168xf32>
    %20 = tpu.matmul %18, %19, %cst_8 {dimension_numbers = #tpu.dot_dimension_numbers<[1], [0], [0], [1], [0, 0, 1, 1], [], []>} : vector<64x336xf32>, vector<336x168xf32>, vector<64x168xf32> -> vector<64x168xf32>
    %21 = vector.extract_strided_slice %20 {offsets = [1, 0], sizes = [63, 168], strides = [1, 1]} : vector<64x168xf32> to vector<63x168xf32>
    %22 = vector.extract_strided_slice %20 {offsets = [0, 0], sizes = [1, 168], strides = [1, 1]} : vector<64x168xf32> to vector<1x168xf32>
    %23 = tpu.concatenate %21, %22 in 0 : vector<63x168xf32>, vector<1x168xf32> -> vector<64x168xf32>
    %24 = vector.extract_strided_slice %20 {offsets = [2, 0], sizes = [62, 168], strides = [1, 1]} : vector<64x168xf32> to vector<62x168xf32>
    %25 = vector.extract_strided_slice %20 {offsets = [0, 0], sizes = [2, 168], strides = [1, 1]} : vector<64x168xf32> to vector<2x168xf32>
    %26 = tpu.concatenate %24, %25 in 0 : vector<62x168xf32>, vector<2x168xf32> -> vector<64x168xf32>
    %27 = tpu.concatenate %20, %23, %26 in 1 : vector<64x168xf32>, vector<64x168xf32>, vector<64x168xf32> -> vector<64x504xf32>
    %c0_9 = arith.constant 0 : index
    %c0_10 = arith.constant 0 : index
    %28 = vector.load %arg5[%c0_9, %c0_10] : memref<504x320xf32, #tpu.memory_space<vmem>>, vector<504x320xf32>
    %cst_11 = arith.constant dense<0.000000e+00> : vector<64x320xf32>
    %29 = tpu.matmul %27, %28, %cst_11 {dimension_numbers = #tpu.dot_dimension_numbers<[1], [0], [0], [1], [0, 0, 1, 1], [], []>} : vector<64x504xf32>, vector<504x320xf32>, vector<64x320xf32> -> vector<64x320xf32>
    %c0_12 = arith.constant 0 : index
    %c0_13 = arith.constant 0 : index
    %30 = vector.load %arg6[%c0_12, %c0_13] : memref<1x320xf32, #tpu.memory_space<vmem>>, vector<1x320xf32>
    %31 = vector.broadcast %30 : vector<1x320xf32> to vector<64x320xf32>
    %32 = arith.addf %29, %31 : vector<64x320xf32>
    %cst_14 = arith.constant 0.000000e+00 : f32
    %33 = vector.broadcast %cst_14 : f32 to vector<64x320xf32>
    %34 = arith.maximumf %32, %33 : vector<64x320xf32>
    %35 = vector.extract_strided_slice %34 {offsets = [0, 0], sizes = [64, 160], strides = [1, 1]} : vector<64x320xf32> to vector<64x160xf32>
    %36 = vector.extract_strided_slice %34 {offsets = [0, 160], sizes = [64, 160], strides = [1, 1]} : vector<64x320xf32> to vector<64x160xf32>
    %37 = arith.maximumf %35, %36 : vector<64x160xf32>
    %38 = vector.extract_strided_slice %37 {offsets = [0, 16], sizes = [64, 144], strides = [1, 1]} : vector<64x160xf32> to vector<64x144xf32>
    %39 = vector.extract_strided_slice %37 {offsets = [0, 0], sizes = [64, 16], strides = [1, 1]} : vector<64x160xf32> to vector<64x16xf32>
    %40 = tpu.concatenate %38, %39 in 1 : vector<64x144xf32>, vector<64x16xf32> -> vector<64x160xf32>
    %41 = arith.maximumf %37, %40 : vector<64x160xf32>
    %c0_15 = arith.constant 0 : index
    %c0_16 = arith.constant 0 : index
    %42 = vector.load %arg7[%c0_15, %c0_16] : memref<160x80xf32, #tpu.memory_space<vmem>>, vector<160x80xf32>
    %cst_17 = arith.constant dense<0.000000e+00> : vector<64x80xf32>
    %43 = tpu.matmul %41, %42, %cst_17 {dimension_numbers = #tpu.dot_dimension_numbers<[1], [0], [0], [1], [0, 0, 1, 1], [], []>} : vector<64x160xf32>, vector<160x80xf32>, vector<64x80xf32> -> vector<64x80xf32>
    %44 = vector.extract_strided_slice %43 {offsets = [1, 0], sizes = [63, 80], strides = [1, 1]} : vector<64x80xf32> to vector<63x80xf32>
    %45 = vector.extract_strided_slice %43 {offsets = [0, 0], sizes = [1, 80], strides = [1, 1]} : vector<64x80xf32> to vector<1x80xf32>
    %46 = tpu.concatenate %44, %45 in 0 : vector<63x80xf32>, vector<1x80xf32> -> vector<64x80xf32>
    %47 = vector.extract_strided_slice %43 {offsets = [2, 0], sizes = [62, 80], strides = [1, 1]} : vector<64x80xf32> to vector<62x80xf32>
    %48 = vector.extract_strided_slice %43 {offsets = [0, 0], sizes = [2, 80], strides = [1, 1]} : vector<64x80xf32> to vector<2x80xf32>
    %49 = tpu.concatenate %47, %48 in 0 : vector<62x80xf32>, vector<2x80xf32> -> vector<64x80xf32>
    %50 = vector.extract_strided_slice %43 {offsets = [3, 0], sizes = [61, 80], strides = [1, 1]} : vector<64x80xf32> to vector<61x80xf32>
    %51 = vector.extract_strided_slice %43 {offsets = [0, 0], sizes = [3, 80], strides = [1, 1]} : vector<64x80xf32> to vector<3x80xf32>
    %52 = tpu.concatenate %50, %51 in 0 : vector<61x80xf32>, vector<3x80xf32> -> vector<64x80xf32>
    %53 = vector.extract_strided_slice %43 {offsets = [4, 0], sizes = [60, 80], strides = [1, 1]} : vector<64x80xf32> to vector<60x80xf32>
    %54 = vector.extract_strided_slice %43 {offsets = [0, 0], sizes = [4, 80], strides = [1, 1]} : vector<64x80xf32> to vector<4x80xf32>
    %55 = tpu.concatenate %53, %54 in 0 : vector<60x80xf32>, vector<4x80xf32> -> vector<64x80xf32>
    %56 = tpu.concatenate %43, %46, %49, %52, %55 in 1 : vector<64x80xf32>, vector<64x80xf32>, vector<64x80xf32>, vector<64x80xf32>, vector<64x80xf32> -> vector<64x400xf32>
    %c0_18 = arith.constant 0 : index
    %c0_19 = arith.constant 0 : index
    %57 = vector.load %arg8[%c0_18, %c0_19] : memref<400x120xf32, #tpu.memory_space<vmem>>, vector<400x120xf32>
    %cst_20 = arith.constant dense<0.000000e+00> : vector<64x120xf32>
    %58 = tpu.matmul %56, %57, %cst_20 {dimension_numbers = #tpu.dot_dimension_numbers<[1], [0], [0], [1], [0, 0, 1, 1], [], []>} : vector<64x400xf32>, vector<400x120xf32>, vector<64x120xf32> -> vector<64x120xf32>
    %c0_21 = arith.constant 0 : index
    %c0_22 = arith.constant 0 : index
    %59 = vector.load %arg9[%c0_21, %c0_22] : memref<1x120xf32, #tpu.memory_space<vmem>>, vector<1x120xf32>
    %60 = vector.broadcast %59 : vector<1x120xf32> to vector<64x120xf32>
    %61 = arith.addf %58, %60 : vector<64x120xf32>
    %cst_23 = arith.constant 0.000000e+00 : f32
    %62 = vector.broadcast %cst_23 : f32 to vector<64x120xf32>
    %63 = arith.maximumf %61, %62 : vector<64x120xf32>
    %c0_24 = arith.constant 0 : index
    %c0_25 = arith.constant 0 : index
    %64 = vector.load %arg10[%c0_24, %c0_25] : memref<120x84xf32, #tpu.memory_space<vmem>>, vector<120x84xf32>
    %cst_26 = arith.constant dense<0.000000e+00> : vector<64x84xf32>
    %65 = tpu.matmul %63, %64, %cst_26 {dimension_numbers = #tpu.dot_dimension_numbers<[1], [0], [0], [1], [0, 0, 1, 1], [], []>} : vector<64x120xf32>, vector<120x84xf32>, vector<64x84xf32> -> vector<64x84xf32>
    %c0_27 = arith.constant 0 : index
    %c0_28 = arith.constant 0 : index
    %66 = vector.load %arg11[%c0_27, %c0_28] : memref<1x84xf32, #tpu.memory_space<vmem>>, vector<1x84xf32>
    %67 = vector.broadcast %66 : vector<1x84xf32> to vector<64x84xf32>
    %68 = arith.addf %65, %67 : vector<64x84xf32>
    %cst_29 = arith.constant 0.000000e+00 : f32
    %69 = vector.broadcast %cst_29 : f32 to vector<64x84xf32>
    %70 = arith.maximumf %68, %69 : vector<64x84xf32>
    %c0_30 = arith.constant 0 : index
    %c0_31 = arith.constant 0 : index
    %71 = vector.load %arg12[%c0_30, %c0_31] : memref<84x128xf32, #tpu.memory_space<vmem>>, vector<84x128xf32>
    %cst_32 = arith.constant dense<0.000000e+00> : vector<64x128xf32>
    %72 = tpu.matmul %70, %71, %cst_32 {dimension_numbers = #tpu.dot_dimension_numbers<[1], [0], [0], [1], [0, 0, 1, 1], [], []>} : vector<64x84xf32>, vector<84x128xf32>, vector<64x128xf32> -> vector<64x128xf32>
    %c0_33 = arith.constant 0 : index
    %c0_34 = arith.constant 0 : index
    %73 = vector.load %arg13[%c0_33, %c0_34] : memref<1x128xf32, #tpu.memory_space<vmem>>, vector<1x128xf32>
    %74 = vector.broadcast %73 : vector<1x128xf32> to vector<64x128xf32>
    %75 = arith.addf %72, %74 : vector<64x128xf32>
    %c0_35 = arith.constant 0 : index
    %c0_36 = arith.constant 0 : index
    %76 = vector.load %arg14[%c0_35, %c0_36] : memref<64x128xf32, #tpu.memory_space<vmem>>, vector<64x128xf32>
    tpu.vector_store %arg14[%c0_35, %c0_36], %75 {strides = array<i32>} : memref<64x128xf32, #tpu.memory_space<vmem>>, vector<64x128xf32>,
    return
  }
  func.func @transform_0(%arg0: i32) -> (i32, i32) {
    %c0_i32 = arith.constant 0 : i32
    %c0_i32_0 = arith.constant 0 : i32
    return %arg0, %c0_i32 : i32, i32
  }
  func.func @transform_1(%arg0: i32) -> (i32, i32) {
    %c0_i32 = arith.constant 0 : i32
    %c0_i32_0 = arith.constant 0 : i32
    %c0_i32_1 = arith.constant 0 : i32
    return %c0_i32, %c0_i32_0 : i32, i32
  }
  func.func @transform_2(%arg0: i32) -> (i32, i32) {
    %c0_i32 = arith.constant 0 : i32
    %c0_i32_0 = arith.constant 0 : i32
    %c0_i32_1 = arith.constant 0 : i32
    return %c0_i32, %c0_i32_0 : i32, i32
  }
  func.func @transform_3(%arg0: i32) -> (i32, i32) {
    %c0_i32 = arith.constant 0 : i32
    %c0_i32_0 = arith.constant 0 : i32
    %c0_i32_1 = arith.constant 0 : i32
    return %c0_i32, %c0_i32_0 : i32, i32
  }
  func.func @transform_4(%arg0: i32) -> (i32, i32) {
    %c0_i32 = arith.constant 0 : i32
    %c0_i32_0 = arith.constant 0 : i32
    %c0_i32_1 = arith.constant 0 : i32
    return %c0_i32, %c0_i32_0 : i32, i32
  }
  func.func @transform_5(%arg0: i32) -> (i32, i32) {
    %c0_i32 = arith.constant 0 : i32
    %c0_i32_0 = arith.constant 0 : i32
    %c0_i32_1 = arith.constant 0 : i32
    return %c0_i32, %c0_i32_0 : i32, i32
  }
  func.func @transform_6(%arg0: i32) -> (i32, i32) {
    %c0_i32 = arith.constant 0 : i32
    %c0_i32_0 = arith.constant 0 : i32
    %c0_i32_1 = arith.constant 0 : i32
    return %c0_i32, %c0_i32_0 : i32, i32
  }
  func.func @transform_7(%arg0: i32) -> (i32, i32) {
    %c0_i32 = arith.constant 0 : i32
    %c0_i32_0 = arith.constant 0 : i32
    %c0_i32_1 = arith.constant 0 : i32
    return %c0_i32, %c0_i32_0 : i32, i32
  }
  func.func @transform_8(%arg0: i32) -> (i32, i32) {
    %c0_i32 = arith.constant 0 : i32
    %c0_i32_0 = arith.constant 0 : i32
    %c0_i32_1 = arith.constant 0 : i32
    return %c0_i32, %c0_i32_0 : i32, i32
  }
  func.func @transform_9(%arg0: i32) -> (i32, i32) {
    %c0_i32 = arith.constant 0 : i32
    %c0_i32_0 = arith.constant 0 : i32
    %c0_i32_1 = arith.constant 0 : i32
    return %c0_i32, %c0_i32_0 : i32, i32
  }
  func.func @transform_10(%arg0: i32) -> (i32, i32) {
    %c0_i32 = arith.constant 0 : i32
    %c0_i32_0 = arith.constant 0 : i32
    %c0_i32_1 = arith.constant 0 : i32
    return %c0_i32, %c0_i32_0 : i32, i32
  }
  func.func @transform_11(%arg0: i32) -> (i32, i32) {
    %c0_i32 = arith.constant 0 : i32
    %c0_i32_0 = arith.constant 0 : i32
    %c0_i32_1 = arith.constant 0 : i32
    return %c0_i32, %c0_i32_0 : i32, i32
  }
  func.func @transform_12(%arg0: i32) -> (i32, i32) {
    %c0_i32 = arith.constant 0 : i32
    %c0_i32_0 = arith.constant 0 : i32
    %c0_i32_1 = arith.constant 0 : i32
    return %c0_i32, %c0_i32_0 : i32, i32
  }
  func.func @transform_13(%arg0: i32) -> (i32, i32) {
    %c0_i32 = arith.constant 0 : i32
    %c0_i32_0 = arith.constant 0 : i32
    return %arg0, %c0_i32 : i32, i32
  }
}

</mosaic_0001>

<llo_original>
// kernel: lenet_forward.1
$region0: #{lenet_forward.1}
  #allocation0 [shape = 'u32[]', space=smem, size = 0x4, offset = 0x4, fixed_abs, tag = 'smem constant byte address 0x4 - core index']
  #allocation1 [shape = 'u32[144,128]{1,0:T(1,128)}', space=vmem, size = 0x12000, scoped, tag = 'internal scratch']
  %s0 = inlined_call_operand.vmem [shape: f32[64,128], index: 0, kind: input, shape index: {}]
  %s1 = inlined_call_operand.vmem [shape: f32[256,672], index: 1, kind: input, shape index: {}]
  %s2 = inlined_call_operand.vmem [shape: f32[1,672], index: 2, kind: input, shape index: {}]
  %s3 = inlined_call_operand.vmem [shape: f32[336,168], index: 3, kind: input, shape index: {}]
  %s4 = inlined_call_operand.vmem [shape: f32[504,320], index: 4, kind: input, shape index: {}]
  %s5 = inlined_call_operand.vmem [shape: f32[1,320], index: 5, kind: input, shape index: {}]
  %s6 = inlined_call_operand.vmem [shape: f32[160,80], index: 6, kind: input, shape index: {}]
  %s7 = inlined_call_operand.vmem [shape: f32[400,120], index: 7, kind: input, shape index: {}]
  %s8 = inlined_call_operand.vmem [shape: f32[1,120], index: 8, kind: input, shape index: {}]
  %s9 = inlined_call_operand.vmem [shape: f32[120,84], index: 9, kind: input, shape index: {}]
  %s10 = inlined_call_operand.vmem [shape: f32[1,84], index: 10, kind: input, shape index: {}]
  %s11 = inlined_call_operand.vmem [shape: f32[84,128], index: 11, kind: input, shape index: {}]
  %s12 = inlined_call_operand.vmem [shape: f32[1,128], index: 12, kind: input, shape index: {}]
  %s13 = inlined_call_operand.vmem [shape: f32[64,128], index: 13, kind: output, shape index: {}]
  %s14 = sld [smem:[#allocation0]]
  $region62: #{lenet_forward.1} parent=0
    _
  %s16 = ssub.s32 1, %s14
  %s17 = scalar_select 0, %s16, %s14
  // Predicated region
  $region2: #{lenet_forward.1} parent=0 // pred_check
    _
  $region3: #{lenet_forward.1} parent=0 // pred_check_branch
    %19 = sbr.rel (0) target = $region5
  $region4: #{lenet_forward.1} parent=0 // pred_region
    _
  $region5: #{lenet_forward.1} parent=0 // pred_fallthru
    _
  // Predicated region
  $region6: #{lenet_forward.1} parent=0 // pred_check
    _
  $region7: #{lenet_forward.1} parent=0 // pred_check_branch
    %21 = sbr.rel (0) target = $region9
  $region8: #{lenet_forward.1} parent=0 // pred_region
    _
  $region9: #{lenet_forward.1} parent=0 // pred_fallthru
    _
  // Predicated region
  $region10: #{lenet_forward.1} parent=0 // pred_check
    _
  $region11: #{lenet_forward.1} parent=0 // pred_check_branch
    %23 = sbr.rel (0) target = $region13
  $region12: #{lenet_forward.1} parent=0 // pred_region
    _
  $region13: #{lenet_forward.1} parent=0 // pred_fallthru
    _
  // Predicated region
  $region14: #{lenet_forward.1} parent=0 // pred_check
    _
  $region15: #{lenet_forward.1} parent=0 // pred_check_branch
    %25 = sbr.rel (0) target = $region17
  $region16: #{lenet_forward.1} parent=0 // pred_region
    _
  $region17: #{lenet_forward.1} parent=0 // pred_fallthru
    _
  // Predicated region
  $region18: #{lenet_forward.1} parent=0 // pred_check
    _
  $region19: #{lenet_forward.1} parent=0 // pred_check_branch
    %27 = sbr.rel (0) target = $region21
  $region20: #{lenet_forward.1} parent=0 // pred_region
    _
  $region21: #{lenet_forward.1} parent=0 // pred_fallthru
    _
  // Predicated region
  $region22: #{lenet_forward.1} parent=0 // pred_check
    _
  $region23: #{lenet_forward.1} parent=0 // pred_check_branch
    %29 = sbr.rel (0) target = $region25
  $region24: #{lenet_forward.1} parent=0 // pred_region
    _
  $region25: #{lenet_forward.1} parent=0 // pred_fallthru
    _
  // Predicated region
  $region26: #{lenet_forward.1} parent=0 // pred_check
    _
  $region27: #{lenet_forward.1} parent=0 // pred_check_branch
    %31 = sbr.rel (0) target = $region29
  $region28: #{lenet_forward.1} parent=0 // pred_region
    _
  $region29: #{lenet_forward.1} parent=0 // pred_fallthru
    _
  // Predicated region
  $region30: #{lenet_forward.1} parent=0 // pred_check
    _
  $region31: #{lenet_forward.1} parent=0 // pred_check_branch
    %33 = sbr.rel (0) target = $region33
  $region32: #{lenet_forward.1} parent=0 // pred_region
    _
  $region33: #{lenet_forward.1} parent=0 // pred_fallthru
    _
  // Predicated region
  $region34: #{lenet_forward.1} parent=0 // pred_check
    _
  $region35: #{lenet_forward.1} parent=0 // pred_check_branch
    %35 = sbr.rel (0) target = $region37
  $region36: #{lenet_forward.1} parent=0 // pred_region
    _
  $region37: #{lenet_forward.1} parent=0 // pred_fallthru
    _
  // Predicated region
  $region38: #{lenet_forward.1} parent=0 // pred_check
    _
  $region39: #{lenet_forward.1} parent=0 // pred_check_branch
    %37 = sbr.rel (0) target = $region41
  $region40: #{lenet_forward.1} parent=0 // pred_region
    _
  $region41: #{lenet_forward.1} parent=0 // pred_fallthru
    _
  // Predicated region
  $region42: #{lenet_forward.1} parent=0 // pred_check
    _
  $region43: #{lenet_forward.1} parent=0 // pred_check_branch
    %39 = sbr.rel (0) target = $region45
  $region44: #{lenet_forward.1} parent=0 // pred_region
    _
  $region45: #{lenet_forward.1} parent=0 // pred_fallthru
    _
  // Predicated region
  $region46: #{lenet_forward.1} parent=0 // pred_check
    _
  $region47: #{lenet_forward.1} parent=0 // pred_check_branch
    %41 = sbr.rel (0) target = $region49
  $region48: #{lenet_forward.1} parent=0 // pred_region
    _
  $region49: #{lenet_forward.1} parent=0 // pred_fallthru
    _
  // Predicated region
  $region50: #{lenet_forward.1} parent=0 // pred_check
    _
  $region51: #{lenet_forward.1} parent=0 // pred_check_branch
    %43 = sbr.rel (0) target = $region53
  $region52: #{lenet_forward.1} parent=0 // pred_region
    _
  $region53: #{lenet_forward.1} parent=0 // pred_fallthru
    _
  %v44 = vld [vmem:[%s0] sm:$0xff]
  %v45 = vld [vmem:[%s0 + $0x8] sm:$0xff]
  %v46 = vld [vmem:[%s0 + $0x10] sm:$0xff]
  %v47 = vld [vmem:[%s0 + $0x18] sm:$0xff]
  %v48 = vld [vmem:[%s0 + $0x20] sm:$0xff]
  %v49 = vld [vmem:[%s0 + $0x28] sm:$0xff]
  %v50 = vld [vmem:[%s0 + $0x30] sm:$0xff]
  %v51 = vld [vmem:[%s0 + $0x38] sm:$0xff]
  %vm60 = vcmask 1046528
  %v61 = vrot.slane %v44, 1
  %v62 = vrot.slane %v45, 1
  %v63 = vsel %vm60, %v61, %v62
  %v64 = vrot.slane %v46, 1
  %v65 = vsel %vm60, %v62, %v64
  %v66 = vrot.slane %v47, 1
  %v67 = vsel %vm60, %v64, %v66
  %v68 = vrot.slane %v48, 1
  %v69 = vsel %vm60, %v66, %v68
  %v70 = vrot.slane %v49, 1
  %v71 = vsel %vm60, %v68, %v70
  %v72 = vrot.slane %v50, 1
  %v73 = vsel %vm60, %v70, %v72
  %v74 = vrot.slane %v51, 1
  %v75 = vsel %vm60, %v72, %v74
  %v85 = vsel %vm60, %v74, %v61
  %v86 = vld [vmem:[%s1] sm:$0xff]
  %v87 = vld [vmem:[%s1 + $0x8] sm:$0xff]
  %v88 = vld [vmem:[%s1 + $0x10] sm:$0xff]
  %v89 = vld [vmem:[%s1 + $0x18] sm:$0xff]
  %v90 = vld [vmem:[%s1 + $0x20] sm:$0xff]
  %v91 = vld [vmem:[%s1 + $0x28] sm:$0xff]
  %v92 = vld [vmem:[%s1 + $0x30] sm:$0xff]
  %v93 = vld [vmem:[%s1 + $0x38] sm:$0xff]
  %v94 = vld [vmem:[%s1 + $0x40] sm:$0xff]
  %v95 = vld [vmem:[%s1 + $0x48] sm:$0xff]
  %v96 = vld [vmem:[%s1 + $0x50] sm:$0xff]
  %v97 = vld [vmem:[%s1 + $0x58] sm:$0xff]
  %v98 = vld [vmem:[%s1 + $0x60] sm:$0xff]
  %v99 = vld [vmem:[%s1 + $0x68] sm:$0xff]
  %v100 = vld [vmem:[%s1 + $0x70] sm:$0xff]
  %v101 = vld [vmem:[%s1 + $0x78] sm:$0xff]
  %v102 = vld [vmem:[%s1 + $0x80] sm:$0xff]
  %v103 = vld [vmem:[%s1 + $0x88] sm:$0xff]
  %v104 = vld [vmem:[%s1 + $0x90] sm:$0xff]
  %v105 = vld [vmem:[%s1 + $0x98] sm:$0xff]
  %v106 = vld [vmem:[%s1 + $0xa0] sm:$0xff]
  %v107 = vld [vmem:[%s1 + $0xa8] sm:$0xff]
  %v108 = vld [vmem:[%s1 + $0xb0] sm:$0xff]
  %v109 = vld [vmem:[%s1 + $0xb8] sm:$0xff]
  %v110 = vld [vmem:[%s1 + $0xc0] sm:$0xff]
  %v111 = vld [vmem:[%s1 + $0xc8] sm:$0xff]
  %v112 = vld [vmem:[%s1 + $0xd0] sm:$0xff]
  %v113 = vld [vmem:[%s1 + $0xd8] sm:$0xff]
  %v114 = vld [vmem:[%s1 + $0xe0] sm:$0xff]
  %v115 = vld [vmem:[%s1 + $0xe8] sm:$0xff]
  %v116 = vld [vmem:[%s1 + $0xf0] sm:$0xff]
  %v117 = vld [vmem:[%s1 + $0xf8] sm:$0xff]
  %v118 = vld [vmem:[%s1 + $0x100] sm:$0xff]
  %v119 = vld [vmem:[%s1 + $0x108] sm:$0xff]
  %v120 = vld [vmem:[%s1 + $0x110] sm:$0xff]
  %v121 = vld [vmem:[%s1 + $0x118] sm:$0xff]
  %v122 = vld [vmem:[%s1 + $0x120] sm:$0xff]
  %v123 = vld [vmem:[%s1 + $0x128] sm:$0xff]
  %v124 = vld [vmem:[%s1 + $0x130] sm:$0xff]
  %v125 = vld [vmem:[%s1 + $0x138] sm:$0xff]
  %v126 = vld [vmem:[%s1 + $0x140] sm:$0xff]
  %v127 = vld [vmem:[%s1 + $0x148] sm:$0xff]
  %v128 = vld [vmem:[%s1 + $0x150] sm:$0xff]
  %v129 = vld [vmem:[%s1 + $0x158] sm:$0xff]
  %v130 = vld [vmem:[%s1 + $0x160] sm:$0xff]
  %v131 = vld [vmem:[%s1 + $0x168] sm:$0xff]
  %v132 = vld [vmem:[%s1 + $0x170] sm:$0xff]
  %v133 = vld [vmem:[%s1 + $0x178] sm:$0xff]
  %v134 = vld [vmem:[%s1 + $0x180] sm:$0xff]
  %v135 = vld [vmem:[%s1 + $0x188] sm:$0xff]
  %v136 = vld [vmem:[%s1 + $0x190] sm:$0xff]
  %v137 = vld [vmem:[%s1 + $0x198] sm:$0xff]
  %v138 = vld [vmem:[%s1 + $0x1a0] sm:$0xff]
  %v139 = vld [vmem:[%s1 + $0x1a8] sm:$0xff]
  %v140 = vld [vmem:[%s1 + $0x1b0] sm:$0xff]
  %v141 = vld [vmem:[%s1 + $0x1b8] sm:$0xff]
  %v142 = vld [vmem:[%s1 + $0x1c0] sm:$0xff]
  %v143 = vld [vmem:[%s1 + $0x1c8] sm:$0xff]
  %v144 = vld [vmem:[%s1 + $0x1d0] sm:$0xff]
  %v145 = vld [vmem:[%s1 + $0x1d8] sm:$0xff]
  %v146 = vld [vmem:[%s1 + $0x1e0] sm:$0xff]
  %v147 = vld [vmem:[%s1 + $0x1e8] sm:$0xff]
  %v148 = vld [vmem:[%s1 + $0x1f0] sm:$0xff]
  %v149 = vld [vmem:[%s1 + $0x1f8] sm:$0xff]
  %v150 = vld [vmem:[%s1 + $0x200] sm:$0xff]
  %v151 = vld [vmem:[%s1 + $0x208] sm:$0xff]
  %v152 = vld [vmem:[%s1 + $0x210] sm:$0xff]
  %v153 = vld [vmem:[%s1 + $0x218] sm:$0xff]
  %v154 = vld [vmem:[%s1 + $0x220] sm:$0xff]
  %v155 = vld [vmem:[%s1 + $0x228] sm:$0xff]
  %v156 = vld [vmem:[%s1 + $0x230] sm:$0xff]
  %v157 = vld [vmem:[%s1 + $0x238] sm:$0xff]
  %v158 = vld [vmem:[%s1 + $0x240] sm:$0xff]
  %v159 = vld [vmem:[%s1 + $0x248] sm:$0xff]
  %v160 = vld [vmem:[%s1 + $0x250] sm:$0xff]
  %v161 = vld [vmem:[%s1 + $0x258] sm:$0xff]
  %v162 = vld [vmem:[%s1 + $0x260] sm:$0xff]
  %v163 = vld [vmem:[%s1 + $0x268] sm:$0xff]
  %v164 = vld [vmem:[%s1 + $0x270] sm:$0xff]
  %v165 = vld [vmem:[%s1 + $0x278] sm:$0xff]
  %v166 = vld [vmem:[%s1 + $0x280] sm:$0xff]
  %v167 = vld [vmem:[%s1 + $0x288] sm:$0xff]
  %v168 = vld [vmem:[%s1 + $0x290] sm:$0xff]
  %v169 = vld [vmem:[%s1 + $0x298] sm:$0xff]
  %v170 = vld [vmem:[%s1 + $0x2a0] sm:$0xff]
  %v171 = vld [vmem:[%s1 + $0x2a8] sm:$0xff]
  %v172 = vld [vmem:[%s1 + $0x2b0] sm:$0xff]
  %v173 = vld [vmem:[%s1 + $0x2b8] sm:$0xff]
  %v174 = vld [vmem:[%s1 + $0x2c0] sm:$0xff]
  %v175 = vld [vmem:[%s1 + $0x2c8] sm:$0xff]
  %v176 = vld [vmem:[%s1 + $0x2d0] sm:$0xff]
  %v177 = vld [vmem:[%s1 + $0x2d8] sm:$0xff]
  %v178 = vld [vmem:[%s1 + $0x2e0] sm:$0xff]
  %v179 = vld [vmem:[%s1 + $0x2e8] sm:$0xff]
  %v180 = vld [vmem:[%s1 + $0x2f0] sm:$0xff]
  %v181 = vld [vmem:[%s1 + $0x2f8] sm:$0xff]
  %v182 = vld [vmem:[%s1 + $0x300] sm:$0xff]
  %v183 = vld [vmem:[%s1 + $0x308] sm:$0xff]
  %v184 = vld [vmem:[%s1 + $0x310] sm:$0xff]
  %v185 = vld [vmem:[%s1 + $0x318] sm:$0xff]
  %v186 = vld [vmem:[%s1 + $0x320] sm:$0xff]
  %v187 = vld [vmem:[%s1 + $0x328] sm:$0xff]
  %v188 = vld [vmem:[%s1 + $0x330] sm:$0xff]
  %v189 = vld [vmem:[%s1 + $0x338] sm:$0xff]
  %v190 = vld [vmem:[%s1 + $0x340] sm:$0xff]
  %v191 = vld [vmem:[%s1 + $0x348] sm:$0xff]
  %v192 = vld [vmem:[%s1 + $0x350] sm:$0xff]
  %v193 = vld [vmem:[%s1 + $0x358] sm:$0xff]
  %v194 = vld [vmem:[%s1 + $0x360] sm:$0xff]
  %v195 = vld [vmem:[%s1 + $0x368] sm:$0xff]
  %v196 = vld [vmem:[%s1 + $0x370] sm:$0xff]
  %v197 = vld [vmem:[%s1 + $0x378] sm:$0xff]
  %v198 = vld [vmem:[%s1 + $0x380] sm:$0xff]
  %v199 = vld [vmem:[%s1 + $0x388] sm:$0xff]
  %v200 = vld [vmem:[%s1 + $0x390] sm:$0xff]
  %v201 = vld [vmem:[%s1 + $0x398] sm:$0xff]
  %v202 = vld [vmem:[%s1 + $0x3a0] sm:$0xff]
  %v203 = vld [vmem:[%s1 + $0x3a8] sm:$0xff]
  %v204 = vld [vmem:[%s1 + $0x3b0] sm:$0xff]
  %v205 = vld [vmem:[%s1 + $0x3b8] sm:$0xff]
  %v206 = vld [vmem:[%s1 + $0x3c0] sm:$0xff]
  %v207 = vld [vmem:[%s1 + $0x3c8] sm:$0xff]
  %v208 = vld [vmem:[%s1 + $0x3d0] sm:$0xff]
  %v209 = vld [vmem:[%s1 + $0x3d8] sm:$0xff]
  %v210 = vld [vmem:[%s1 + $0x3e0] sm:$0xff]
  %v211 = vld [vmem:[%s1 + $0x3e8] sm:$0xff]
  %v212 = vld [vmem:[%s1 + $0x3f0] sm:$0xff]
  %v213 = vld [vmem:[%s1 + $0x3f8] sm:$0xff]
  %v214 = vld [vmem:[%s1 + $0x400] sm:$0xff]
  %v215 = vld [vmem:[%s1 + $0x408] sm:$0xff]
  %v216 = vld [vmem:[%s1 + $0x410] sm:$0xff]
  %v217 = vld [vmem:[%s1 + $0x418] sm:$0xff]
  %v218 = vld [vmem:[%s1 + $0x420] sm:$0xff]
  %v219 = vld [vmem:[%s1 + $0x428] sm:$0xff]
  %v220 = vld [vmem:[%s1 + $0x430] sm:$0xff]
  %v221 = vld [vmem:[%s1 + $0x438] sm:$0xff]
  %v222 = vld [vmem:[%s1 + $0x440] sm:$0xff]
  %v223 = vld [vmem:[%s1 + $0x448] sm:$0xff]
  %v224 = vld [vmem:[%s1 + $0x450] sm:$0xff]
  %v225 = vld [vmem:[%s1 + $0x458] sm:$0xff]
  %v226 = vld [vmem:[%s1 + $0x460] sm:$0xff]
  %v227 = vld [vmem:[%s1 + $0x468] sm:$0xff]
  %v228 = vld [vmem:[%s1 + $0x470] sm:$0xff]
  %v229 = vld [vmem:[%s1 + $0x478] sm:$0xff]
  %v230 = vld [vmem:[%s1 + $0x480] sm:$0xff]
  %v231 = vld [vmem:[%s1 + $0x488] sm:$0xff]
  %v232 = vld [vmem:[%s1 + $0x490] sm:$0xff]
  %v233 = vld [vmem:[%s1 + $0x498] sm:$0xff]
  %v234 = vld [vmem:[%s1 + $0x4a0] sm:$0xff]
  %v235 = vld [vmem:[%s1 + $0x4a8] sm:$0xff]
  %v236 = vld [vmem:[%s1 + $0x4b0] sm:$0xff]
  %v237 = vld [vmem:[%s1 + $0x4b8] sm:$0xff]
  %v238 = vld [vmem:[%s1 + $0x4c0] sm:$0xff]
  %v239 = vld [vmem:[%s1 + $0x4c8] sm:$0xff]
  %v240 = vld [vmem:[%s1 + $0x4d0] sm:$0xff]
  %v241 = vld [vmem:[%s1 + $0x4d8] sm:$0xff]
  %v242 = vld [vmem:[%s1 + $0x4e0] sm:$0xff]
  %v243 = vld [vmem:[%s1 + $0x4e8] sm:$0xff]
  %v244 = vld [vmem:[%s1 + $0x4f0] sm:$0xff]
  %v245 = vld [vmem:[%s1 + $0x4f8] sm:$0xff]
  %v246 = vld [vmem:[%s1 + $0x500] sm:$0xff]
  %v247 = vld [vmem:[%s1 + $0x508] sm:$0xff]
  %v248 = vld [vmem:[%s1 + $0x510] sm:$0xff]
  %v249 = vld [vmem:[%s1 + $0x518] sm:$0xff]
  %v250 = vld [vmem:[%s1 + $0x520] sm:$0xff]
  %v251 = vld [vmem:[%s1 + $0x528] sm:$0xff]
  %v252 = vld [vmem:[%s1 + $0x530] sm:$0xff]
  %v253 = vld [vmem:[%s1 + $0x538] sm:$0xff]
  %v254 = vld [vmem:[%s1 + $0x540] sm:$0xff]
  %v255 = vld [vmem:[%s1 + $0x548] sm:$0xff]
  %v256 = vld [vmem:[%s1 + $0x550] sm:$0xff]
  %v257 = vld [vmem:[%s1 + $0x558] sm:$0xff]
  %v258 = vld [vmem:[%s1 + $0x560] sm:$0xff]
  %v259 = vld [vmem:[%s1 + $0x568] sm:$0xff]
  %v260 = vld [vmem:[%s1 + $0x570] sm:$0xff]
  %v261 = vld [vmem:[%s1 + $0x578] sm:$0xff]
  %v262 = vld [vmem:[%s1 + $0x580] sm:$0xff]
  %v263 = vld [vmem:[%s1 + $0x588] sm:$0xff]
  %v264 = vld [vmem:[%s1 + $0x590] sm:$0xff]
  %v265 = vld [vmem:[%s1 + $0x598] sm:$0xff]
  %v266 = vld [vmem:[%s1 + $0x5a0] sm:$0xff]
  %v267 = vld [vmem:[%s1 + $0x5a8] sm:$0xff]
  %v268 = vld [vmem:[%s1 + $0x5b0] sm:$0xff]
  %v269 = vld [vmem:[%s1 + $0x5b8] sm:$0xff]
  %v270 = vld [vmem:[%s1 + $0x5c0] sm:$0xff]
  %v271 = vld [vmem:[%s1 + $0x5c8] sm:$0xff]
  %v272 = vld [vmem:[%s1 + $0x5d0] sm:$0xff]
  %v273 = vld [vmem:[%s1 + $0x5d8] sm:$0xff]
  %v274 = vld [vmem:[%s1 + $0x5e0] sm:$0xff]
  %v275 = vld [vmem:[%s1 + $0x5e8] sm:$0xff]
  %v276 = vld [vmem:[%s1 + $0x5f0] sm:$0xff]
  %v277 = vld [vmem:[%s1 + $0x5f8] sm:$0xff]
  %v278 = vld [vmem:[%s2] sm:$0x3f]
  %v280 = vlaneseq
  %v281 = vshrl.u32 %v280, 7
  %v282 = vsub.s32 0, %v281
  %v283 = vrot.slane %v278, %v282
  %v284 = vlaneseq
  %v285 = vshrl.u32 %v284, 7
  %v286 = vsub.s32 1, %v285
  %v287 = vrot.slane %v278, %v286
  %v288 = vlaneseq
  %v289 = vshrl.u32 %v288, 7
  %v290 = vsub.s32 2, %v289
  %v291 = vrot.slane %v278, %v290
  %v292 = vlaneseq
  %v293 = vshrl.u32 %v292, 7
  %v294 = vsub.s32 3, %v293
  %v295 = vrot.slane %v278, %v294
  %v296 = vlaneseq
  %v297 = vshrl.u32 %v296, 7
  %v298 = vsub.s32 4, %v297
  %v299 = vrot.slane %v278, %v298
  %v300 = vlaneseq
  %v301 = vshrl.u32 %v300, 7
  %v302 = vsub.s32 5, %v301
  %v303 = vrot.slane %v278, %v302
  %310 = vmatprep.subr.mxu0 %v177
  %311 = vmatpush1.msra.mxu0 %v176
  %312 = vmatprep.subr.mxu0 %v171
  %313 = vmatpush1.msra.mxu0 %v170
  %314 = vmatprep.subr.mxu0 %v165
  %315 = vmatpush1.msra.mxu0 %v164
  %316 = vmatprep.subr.mxu0 %v159
  %317 = vmatpush1.msra.mxu0 %v158
  %318 = vmatprep.subr.mxu0 %v153
  %319 = vmatpush1.msra.mxu0 %v152
  %320 = vmatprep.subr.mxu0 %v147
  %321 = vmatpush1.msra.mxu0 %v146
  %322 = vmatprep.subr.mxu0 %v141
  %323 = vmatpush1.msra.mxu0 %v140
  %324 = vmatprep.subr.mxu0 %v135
  %325 = vmatpush1.msra.mxu0 %v134
  %326 = vmatprep.subr.mxu0 %v129
  %327 = vmatpush1.msra.mxu0 %v128
  %328 = vmatprep.subr.mxu0 %v123
  %329 = vmatpush1.msra.mxu0 %v122
  %330 = vmatprep.subr.mxu0 %v117
  %331 = vmatpush1.msra.mxu0 %v116
  %332 = vmatprep.subr.mxu0 %v111
  %333 = vmatpush1.msra.mxu0 %v110
  %334 = vmatprep.subr.mxu0 %v105
  %335 = vmatpush1.msra.mxu0 %v104
  %336 = vmatprep.subr.mxu0 %v99
  %337 = vmatpush1.msra.mxu0 %v98
  %338 = vmatprep.subr.mxu0 %v93
  %339 = vmatpush1.msra.mxu0 %v92
  %340 = vmatprep.subr.mxu0 %v87
  %341 = vmatpush1.msra.mxu0 %v86
  %342 = vmatprep.subr.mxu0 %v273
  %343 = vmatpush2.msra.mxu0 %v272
  %344 = vmatprep.subr.mxu0 %v267
  %345 = vmatpush2.msra.mxu0 %v266
  %346 = vmatprep.subr.mxu0 %v261
  %347 = vmatpush2.msra.mxu0 %v260
  %348 = vmatprep.subr.mxu0 %v255
  %349 = vmatpush2.msra.mxu0 %v254
  %350 = vmatprep.subr.mxu0 %v249
  %351 = vmatpush2.msra.mxu0 %v248
  %352 = vmatprep.subr.mxu0 %v243
  %353 = vmatpush2.msra.mxu0 %v242
  %354 = vmatprep.subr.mxu0 %v237
  %355 = vmatpush2.msra.mxu0 %v236
  %356 = vmatprep.subr.mxu0 %v231
  %357 = vmatpush2.msra.mxu0 %v230
  %358 = vmatprep.subr.mxu0 %v225
  %359 = vmatpush2.msra.mxu0 %v224
  %360 = vmatprep.subr.mxu0 %v219
  %361 = vmatpush2.msra.mxu0 %v218
  %362 = vmatprep.subr.mxu0 %v213
  %363 = vmatpush2.msra.mxu0 %v212
  %364 = vmatprep.subr.mxu0 %v207
  %365 = vmatpush2.msra.mxu0 %v206
  %366 = vmatprep.subr.mxu0 %v201
  %367 = vmatpush2.msra.mxu0 %v200
  %368 = vmatprep.subr.mxu0 %v195
  %369 = vmatpush2.msra.mxu0 %v194
  %370 = vmatprep.subr.mxu0 %v189
  %371 = vmatpush2.msra.mxu0 %v188
  %372 = vmatprep.subr.mxu0 %v183
  %373 = vmatpush2.msra.mxu0 %v182
  %374 = vmatprep.mubr.f32.mxu0 %v63
  %375 = vmatmul.mubr.f32.gmra.mxu0 %v44
  %v376 = vpop.f32.mrf.mxu0
  %v377 = vadd.f32 %v283, %v376
  %v378 = vpop.f32.mrf.mxu0
  %v379 = vadd.f32 %v287, %v378
  %380 = vmatprep.mubr.f32.mxu0 %v65
  %381 = vmatmul.mubr.f32.gmra.mxu0 %v45
  %v382 = vpop.f32.mrf.mxu0
  %v383 = vadd.f32 %v283, %v382
  %v384 = vpop.f32.mrf.mxu0
  %v385 = vadd.f32 %v287, %v384
  %386 = vmatprep.mubr.f32.mxu0 %v67
  %387 = vmatmul.mubr.f32.gmra.mxu0 %v46
  %v388 = vpop.f32.mrf.mxu0
  %v389 = vadd.f32 %v283, %v388
  %v390 = vpop.f32.mrf.mxu0
  %v391 = vadd.f32 %v287, %v390
  %392 = vmatprep.mubr.f32.mxu0 %v69
  %393 = vmatmul.mubr.f32.gmra.mxu0 %v47
  %v394 = vpop.f32.mrf.mxu0
  %v395 = vadd.f32 %v283, %v394
  %v396 = vpop.f32.mrf.mxu0
  %v397 = vadd.f32 %v287, %v396
  %398 = vmatprep.mubr.f32.mxu0 %v71
  %399 = vmatmul.mubr.f32.gmra.mxu0 %v48
  %v400 = vpop.f32.mrf.mxu0
  %v401 = vadd.f32 %v283, %v400
  %v402 = vpop.f32.mrf.mxu0
  %v403 = vadd.f32 %v287, %v402
  %404 = vmatprep.mubr.f32.mxu0 %v73
  %405 = vmatmul.mubr.f32.gmra.mxu0 %v49
  %v406 = vpop.f32.mrf.mxu0
  %v407 = vadd.f32 %v283, %v406
  %v408 = vpop.f32.mrf.mxu0
  %v409 = vadd.f32 %v287, %v408
  %410 = vmatprep.mubr.f32.mxu0 %v75
  %411 = vmatmul.mubr.f32.gmra.mxu0 %v50
  %v412 = vpop.f32.mrf.mxu0
  %v413 = vadd.f32 %v283, %v412
  %v414 = vpop.f32.mrf.mxu0
  %v415 = vadd.f32 %v287, %v414
  %416 = vmatprep.mubr.f32.mxu0 %v85
  %417 = vmatmul.mubr.f32.gmra.mxu0 %v51
  %v418 = vpop.f32.mrf.mxu0
  %v419 = vadd.f32 %v283, %v418
  %v420 = vpop.f32.mrf.mxu0
  %v421 = vadd.f32 %v287, %v420
  %422 = vdwg.mxu0
  %423 = vmatprep.subr.mxu0 %v179
  %424 = vmatpush1.msra.mxu0 %v178
  %425 = vmatprep.subr.mxu0 %v173
  %426 = vmatpush1.msra.mxu0 %v172
  %427 = vmatprep.subr.mxu0 %v167
  %428 = vmatpush1.msra.mxu0 %v166
  %429 = vmatprep.subr.mxu0 %v161
  %430 = vmatpush1.msra.mxu0 %v160
  %431 = vmatprep.subr.mxu0 %v155
  %432 = vmatpush1.msra.mxu0 %v154
  %433 = vmatprep.subr.mxu0 %v149
  %434 = vmatpush1.msra.mxu0 %v148
  %435 = vmatprep.subr.mxu0 %v143
  %436 = vmatpush1.msra.mxu0 %v142
  %437 = vmatprep.subr.mxu0 %v137
  %438 = vmatpush1.msra.mxu0 %v136
  %439 = vmatprep.subr.mxu0 %v131
  %440 = vmatpush1.msra.mxu0 %v130
  %441 = vmatprep.subr.mxu0 %v125
  %442 = vmatpush1.msra.mxu0 %v124
  %443 = vmatprep.subr.mxu0 %v119
  %444 = vmatpush1.msra.mxu0 %v118
  %445 = vmatprep.subr.mxu0 %v113
  %446 = vmatpush1.msra.mxu0 %v112
  %447 = vmatprep.subr.mxu0 %v107
  %448 = vmatpush1.msra.mxu0 %v106
  %449 = vmatprep.subr.mxu0 %v101
  %450 = vmatpush1.msra.mxu0 %v100
  %451 = vmatprep.subr.mxu0 %v95
  %452 = vmatpush1.msra.mxu0 %v94
  %453 = vmatprep.subr.mxu0 %v89
  %454 = vmatpush1.msra.mxu0 %v88
  %455 = vmatprep.subr.mxu0 %v275
  %456 = vmatpush2.msra.mxu0 %v274
  %457 = vmatprep.subr.mxu0 %v269
  %458 = vmatpush2.msra.mxu0 %v268
  %459 = vmatprep.subr.mxu0 %v263
  %460 = vmatpush2.msra.mxu0 %v262
  %461 = vmatprep.subr.mxu0 %v257
  %462 = vmatpush2.msra.mxu0 %v256
  %463 = vmatprep.subr.mxu0 %v251
  %464 = vmatpush2.msra.mxu0 %v250
  %465 = vmatprep.subr.mxu0 %v245
  %466 = vmatpush2.msra.mxu0 %v244
  %467 = vmatprep.subr.mxu0 %v239
  %468 = vmatpush2.msra.mxu0 %v238
  %469 = vmatprep.subr.mxu0 %v233
  %470 = vmatpush2.msra.mxu0 %v232
  %471 = vmatprep.subr.mxu0 %v227
  %472 = vmatpush2.msra.mxu0 %v226
  %473 = vmatprep.subr.mxu0 %v221
  %474 = vmatpush2.msra.mxu0 %v220
  %475 = vmatprep.subr.mxu0 %v215
  %476 = vmatpush2.msra.mxu0 %v214
  %477 = vmatprep.subr.mxu0 %v209
  %478 = vmatpush2.msra.mxu0 %v208
  %479 = vmatprep.subr.mxu0 %v203
  %480 = vmatpush2.msra.mxu0 %v202
  %481 = vmatprep.subr.mxu0 %v197
  %482 = vmatpush2.msra.mxu0 %v196
  %483 = vmatprep.subr.mxu0 %v191
  %484 = vmatpush2.msra.mxu0 %v190
  %485 = vmatprep.subr.mxu0 %v185
  %486 = vmatpush2.msra.mxu0 %v184
  %487 = vmatprep.mubr.f32.mxu0 %v63
  %488 = vmatmul.mubr.f32.gmra.mxu0 %v44
  %v489 = vpop.f32.mrf.mxu0
  %v490 = vadd.f32 %v291, %v489
  %v491 = vpop.f32.mrf.mxu0
  %v492 = vadd.f32 %v295, %v491
  %493 = vmatprep.mubr.f32.mxu0 %v65
  %494 = vmatmul.mubr.f32.gmra.mxu0 %v45
  %v495 = vpop.f32.mrf.mxu0
  %v496 = vadd.f32 %v291, %v495
  %v497 = vpop.f32.mrf.mxu0
  %v498 = vadd.f32 %v295, %v497
  %499 = vmatprep.mubr.f32.mxu0 %v67
  %500 = vmatmul.mubr.f32.gmra.mxu0 %v46
  %v501 = vpop.f32.mrf.mxu0
  %v502 = vadd.f32 %v291, %v501
  %v503 = vpop.f32.mrf.mxu0
  %v504 = vadd.f32 %v295, %v503
  %505 = vmatprep.mubr.f32.mxu0 %v69
  %506 = vmatmul.mubr.f32.gmra.mxu0 %v47
  %v507 = vpop.f32.mrf.mxu0
  %v508 = vadd.f32 %v291, %v507
  %v509 = vpop.f32.mrf.mxu0
  %v510 = vadd.f32 %v295, %v509
  %511 = vmatprep.mubr.f32.mxu0 %v71
  %512 = vmatmul.mubr.f32.gmra.mxu0 %v48
  %v513 = vpop.f32.mrf.mxu0
  %v514 = vadd.f32 %v291, %v513
  %v515 = vpop.f32.mrf.mxu0
  %v516 = vadd.f32 %v295, %v515
  %517 = vmatprep.mubr.f32.mxu0 %v73
  %518 = vmatmul.mubr.f32.gmra.mxu0 %v49
  %v519 = vpop.f32.mrf.mxu0
  %v520 = vadd.f32 %v291, %v519
  %v521 = vpop.f32.mrf.mxu0
  %v522 = vadd.f32 %v295, %v521
  %523 = vmatprep.mubr.f32.mxu0 %v75
  %524 = vmatmul.mubr.f32.gmra.mxu0 %v50
  %v525 = vpop.f32.mrf.mxu0
  %v526 = vadd.f32 %v291, %v525
  %v527 = vpop.f32.mrf.mxu0
  %v528 = vadd.f32 %v295, %v527
  %529 = vmatprep.mubr.f32.mxu0 %v85
  %530 = vmatmul.mubr.f32.gmra.mxu0 %v51
  %v531 = vpop.f32.mrf.mxu0
  %v532 = vadd.f32 %v291, %v531
  %v533 = vpop.f32.mrf.mxu0
  %v534 = vadd.f32 %v295, %v533
  %535 = vdwg.mxu0
  %536 = vmatprep.subr.mxu0 %v181
  %537 = vmatpush1.msra.mxu0 %v180
  %538 = vmatprep.subr.mxu0 %v175
  %539 = vmatpush1.msra.mxu0 %v174
  %540 = vmatprep.subr.mxu0 %v169
  %541 = vmatpush1.msra.mxu0 %v168
  %542 = vmatprep.subr.mxu0 %v163
  %543 = vmatpush1.msra.mxu0 %v162
  %544 = vmatprep.subr.mxu0 %v157
  %545 = vmatpush1.msra.mxu0 %v156
  %546 = vmatprep.subr.mxu0 %v151
  %547 = vmatpush1.msra.mxu0 %v150
  %548 = vmatprep.subr.mxu0 %v145
  %549 = vmatpush1.msra.mxu0 %v144
  %550 = vmatprep.subr.mxu0 %v139
  %551 = vmatpush1.msra.mxu0 %v138
  %552 = vmatprep.subr.mxu0 %v133
  %553 = vmatpush1.msra.mxu0 %v132
  %554 = vmatprep.subr.mxu0 %v127
  %555 = vmatpush1.msra.mxu0 %v126
  %556 = vmatprep.subr.mxu0 %v121
  %557 = vmatpush1.msra.mxu0 %v120
  %558 = vmatprep.subr.mxu0 %v115
  %559 = vmatpush1.msra.mxu0 %v114
  %560 = vmatprep.subr.mxu0 %v109
  %561 = vmatpush1.msra.mxu0 %v108
  %562 = vmatprep.subr.mxu0 %v103
  %563 = vmatpush1.msra.mxu0 %v102
  %564 = vmatprep.subr.mxu0 %v97
  %565 = vmatpush1.msra.mxu0 %v96
  %566 = vmatprep.subr.mxu0 %v91
  %567 = vmatpush1.msra.mxu0 %v90
  %568 = vmatprep.subr.mxu0 %v277
  %569 = vmatpush2.msra.mxu0 %v276
  %570 = vmatprep.subr.mxu0 %v271
  %571 = vmatpush2.msra.mxu0 %v270
  %572 = vmatprep.subr.mxu0 %v265
  %573 = vmatpush2.msra.mxu0 %v264
  %574 = vmatprep.subr.mxu0 %v259
  %575 = vmatpush2.msra.mxu0 %v258
  %576 = vmatprep.subr.mxu0 %v253
  %577 = vmatpush2.msra.mxu0 %v252
  %578 = vmatprep.subr.mxu0 %v247
  %579 = vmatpush2.msra.mxu0 %v246
  %580 = vmatprep.subr.mxu0 %v241
  %581 = vmatpush2.msra.mxu0 %v240
  %582 = vmatprep.subr.mxu0 %v235
  %583 = vmatpush2.msra.mxu0 %v234
  %584 = vmatprep.subr.mxu0 %v229
  %585 = vmatpush2.msra.mxu0 %v228
  %586 = vmatprep.subr.mxu0 %v223
  %587 = vmatpush2.msra.mxu0 %v222
  %588 = vmatprep.subr.mxu0 %v217
  %589 = vmatpush2.msra.mxu0 %v216
  %590 = vmatprep.subr.mxu0 %v211
  %591 = vmatpush2.msra.mxu0 %v210
  %592 = vmatprep.subr.mxu0 %v205
  %593 = vmatpush2.msra.mxu0 %v204
  %594 = vmatprep.subr.mxu0 %v199
  %595 = vmatpush2.msra.mxu0 %v198
  %596 = vmatprep.subr.mxu0 %v193
  %597 = vmatpush2.msra.mxu0 %v192
  %598 = vmatprep.subr.mxu0 %v187
  %599 = vmatpush2.msra.mxu0 %v186
  %600 = vmatprep.mubr.f32.mxu0 %v63
  %601 = vmatmul.mubr.f32.gmra.mxu0 %v44
  %v602 = vpop.f32.mrf.mxu0
  %v603 = vadd.f32 %v299, %v602
  %v604 = vpop.f32.mrf.mxu0
  %v605 = vadd.f32 %v303, %v604
  %606 = vmatprep.mubr.f32.mxu0 %v65
  %607 = vmatmul.mubr.f32.gmra.mxu0 %v45
  %v608 = vpop.f32.mrf.mxu0
  %v609 = vadd.f32 %v299, %v608
  %v610 = vpop.f32.mrf.mxu0
  %v611 = vadd.f32 %v303, %v610
  %612 = vmatprep.mubr.f32.mxu0 %v67
  %613 = vmatmul.mubr.f32.gmra.mxu0 %v46
  %v614 = vpop.f32.mrf.mxu0
  %v615 = vadd.f32 %v299, %v614
  %v616 = vpop.f32.mrf.mxu0
  %v617 = vadd.f32 %v303, %v616
  %618 = vmatprep.mubr.f32.mxu0 %v69
  %619 = vmatmul.mubr.f32.gmra.mxu0 %v47
  %v620 = vpop.f32.mrf.mxu0
  %v621 = vadd.f32 %v299, %v620
  %v622 = vpop.f32.mrf.mxu0
  %v623 = vadd.f32 %v303, %v622
  %624 = vmatprep.mubr.f32.mxu0 %v71
  %625 = vmatmul.mubr.f32.gmra.mxu0 %v48
  %v626 = vpop.f32.mrf.mxu0
  %v627 = vadd.f32 %v299, %v626
  %v628 = vpop.f32.mrf.mxu0
  %v629 = vadd.f32 %v303, %v628
  %630 = vmatprep.mubr.f32.mxu0 %v73
  %631 = vmatmul.mubr.f32.gmra.mxu0 %v49
  %v632 = vpop.f32.mrf.mxu0
  %v633 = vadd.f32 %v299, %v632
  %v634 = vpop.f32.mrf.mxu0
  %v635 = vadd.f32 %v303, %v634
  %636 = vmatprep.mubr.f32.mxu0 %v75
  %637 = vmatmul.mubr.f32.gmra.mxu0 %v50
  %v638 = vpop.f32.mrf.mxu0
  %v639 = vadd.f32 %v299, %v638
  %v640 = vpop.f32.mrf.mxu0
  %v641 = vadd.f32 %v303, %v640
  %642 = vmatprep.mubr.f32.mxu0 %v85
  %643 = vmatmul.mubr.f32.gmra.mxu0 %v51
  %v644 = vpop.f32.mrf.mxu0
  %v645 = vadd.f32 %v299, %v644
  %v646 = vpop.f32.mrf.mxu0
  %v647 = vadd.f32 %v303, %v646
  %648 = vdwg.mxu0
  %v649 = vmax.f32 %v377, 0.0
  %v650 = vmax.f32 %v379, 0.0
  %v651 = vmax.f32 %v490, 0.0
  %v652 = vmax.f32 %v492, 0.0
  %v653 = vmax.f32 %v603, 0.0
  %v654 = vmax.f32 %v605, 0.0
  %v655 = vmax.f32 %v383, 0.0
  %v656 = vmax.f32 %v385, 0.0
  %v657 = vmax.f32 %v496, 0.0
  %v658 = vmax.f32 %v498, 0.0
  %v659 = vmax.f32 %v609, 0.0
  %v660 = vmax.f32 %v611, 0.0
  %v661 = vmax.f32 %v389, 0.0
  %v662 = vmax.f32 %v391, 0.0
  %v663 = vmax.f32 %v502, 0.0
  %v664 = vmax.f32 %v504, 0.0
  %v665 = vmax.f32 %v615, 0.0
  %v666 = vmax.f32 %v617, 0.0
  %v667 = vmax.f32 %v395, 0.0
  %v668 = vmax.f32 %v397, 0.0
  %v669 = vmax.f32 %v508, 0.0
  %v670 = vmax.f32 %v510, 0.0
  %v671 = vmax.f32 %v621, 0.0
  %v672 = vmax.f32 %v623, 0.0
  %v673 = vmax.f32 %v401, 0.0
  %v674 = vmax.f32 %v403, 0.0
  %v675 = vmax.f32 %v514, 0.0
  %v676 = vmax.f32 %v516, 0.0
  %v677 = vmax.f32 %v627, 0.0
  %v678 = vmax.f32 %v629, 0.0
  %v679 = vmax.f32 %v407, 0.0
  %v680 = vmax.f32 %v409, 0.0
  %v681 = vmax.f32 %v520, 0.0
  %v682 = vmax.f32 %v522, 0.0
  %v683 = vmax.f32 %v633, 0.0
  %v684 = vmax.f32 %v635, 0.0
  %v685 = vmax.f32 %v413, 0.0
  %v686 = vmax.f32 %v415, 0.0
  %v687 = vmax.f32 %v526, 0.0
  %v688 = vmax.f32 %v528, 0.0
  %v689 = vmax.f32 %v639, 0.0
  %v690 = vmax.f32 %v641, 0.0
  %v691 = vmax.f32 %v419, 0.0
  %v692 = vmax.f32 %v421, 0.0
  %v693 = vmax.f32 %v532, 0.0
  %v694 = vmax.f32 %v534, 0.0
  %v695 = vmax.f32 %v645, 0.0
  %v696 = vmax.f32 %v647, 0.0
  %729 = vrot.lane.b32.xlu0 %v651, 48
  %v730 = vpop.permute.xlu0 %729
  %731 = vrot.lane.b32.xlu0 %v652, 48
  %v732 = vpop.permute.xlu0 %731
  %733 = vrot.lane.b32.xlu0 %v653, 48
  %v734 = vpop.permute.xlu0 %733
  %735 = vrot.lane.b32.xlu0 %v654, 48
  %v736 = vpop.permute.xlu0 %735
  %737 = vrot.lane.b32.xlu0 %v657, 48
  %v738 = vpop.permute.xlu0 %737
  %739 = vrot.lane.b32.xlu0 %v658, 48
  %v740 = vpop.permute.xlu0 %739
  %741 = vrot.lane.b32.xlu0 %v659, 48
  %v742 = vpop.permute.xlu0 %741
  %743 = vrot.lane.b32.xlu0 %v660, 48
  %v744 = vpop.permute.xlu0 %743
  %745 = vrot.lane.b32.xlu0 %v663, 48
  %v746 = vpop.permute.xlu0 %745
  %747 = vrot.lane.b32.xlu0 %v664, 48
  %v748 = vpop.permute.xlu0 %747
  %749 = vrot.lane.b32.xlu0 %v665, 48
  %v750 = vpop.permute.xlu0 %749
  %751 = vrot.lane.b32.xlu0 %v666, 48
  %v752 = vpop.permute.xlu0 %751
  %753 = vrot.lane.b32.xlu0 %v669, 48
  %v754 = vpop.permute.xlu0 %753
  %755 = vrot.lane.b32.xlu0 %v670, 48
  %v756 = vpop.permute.xlu0 %755
  %757 = vrot.lane.b32.xlu0 %v671, 48
  %v758 = vpop.permute.xlu0 %757
  %759 = vrot.lane.b32.xlu0 %v672, 48
  %v760 = vpop.permute.xlu0 %759
  %761 = vrot.lane.b32.xlu0 %v675, 48
  %v762 = vpop.permute.xlu0 %761
  %763 = vrot.lane.b32.xlu0 %v676, 48
  %v764 = vpop.permute.xlu0 %763
  %765 = vrot.lane.b32.xlu0 %v677, 48
  %v766 = vpop.permute.xlu0 %765
  %767 = vrot.lane.b32.xlu0 %v678, 48
  %v768 = vpop.permute.xlu0 %767
  %769 = vrot.lane.b32.xlu0 %v681, 48
  %v770 = vpop.permute.xlu0 %769
  %771 = vrot.lane.b32.xlu0 %v682, 48
  %v772 = vpop.permute.xlu0 %771
  %773 = vrot.lane.b32.xlu0 %v683, 48
  %v774 = vpop.permute.xlu0 %773
  %775 = vrot.lane.b32.xlu0 %v684, 48
  %v776 = vpop.permute.xlu0 %775
  %777 = vrot.lane.b32.xlu0 %v687, 48
  %v778 = vpop.permute.xlu0 %777
  %779 = vrot.lane.b32.xlu0 %v688, 48
  %v780 = vpop.permute.xlu0 %779
  %781 = vrot.lane.b32.xlu0 %v689, 48
  %v782 = vpop.permute.xlu0 %781
  %783 = vrot.lane.b32.xlu0 %v690, 48
  %v784 = vpop.permute.xlu0 %783
  %785 = vrot.lane.b32.xlu0 %v693, 48
  %v786 = vpop.permute.xlu0 %785
  %787 = vrot.lane.b32.xlu0 %v694, 48
  %v788 = vpop.permute.xlu0 %787
  %789 = vrot.lane.b32.xlu0 %v695, 48
  %v790 = vpop.permute.xlu0 %789
  %791 = vrot.lane.b32.xlu0 %v696, 48
  %v792 = vpop.permute.xlu0 %791
  %vm793 = vcmask 392192
  %v794 = vsel %vm793, %v730, %v732
  %v795 = vsel %vm793, %v732, %v734
  %v796 = vsel %vm793, %v734, %v736
  %v797 = vsel %vm793, %v738, %v740
  %v798 = vsel %vm793, %v740, %v742
  %v799 = vsel %vm793, %v742, %v744
  %v800 = vsel %vm793, %v746, %v748
  %v801 = vsel %vm793, %v748, %v750
  %v802 = vsel %vm793, %v750, %v752
  %v803 = vsel %vm793, %v754, %v756
  %v804 = vsel %vm793, %v756, %v758
  %v805 = vsel %vm793, %v758, %v760
  %v806 = vsel %vm793, %v762, %v764
  %v807 = vsel %vm793, %v764, %v766
  %v808 = vsel %vm793, %v766, %v768
  %v809 = vsel %vm793, %v770, %v772
  %v810 = vsel %vm793, %v772, %v774
  %v811 = vsel %vm793, %v774, %v776
  %v812 = vsel %vm793, %v778, %v780
  %v813 = vsel %vm793, %v780, %v782
  %v814 = vsel %vm793, %v782, %v784
  %v815 = vsel %vm793, %v786, %v788
  %v816 = vsel %vm793, %v788, %v790
  %v817 = vsel %vm793, %v790, %v792
  %v842 = vmax.f32 %v649, %v794
  %v843 = vmax.f32 %v650, %v795
  %v844 = vmax.f32 %v651, %v796
  %v845 = vmax.f32 %v655, %v797
  %v846 = vmax.f32 %v656, %v798
  %v847 = vmax.f32 %v657, %v799
  %v848 = vmax.f32 %v661, %v800
  %v849 = vmax.f32 %v662, %v801
  %v850 = vmax.f32 %v663, %v802
  %v851 = vmax.f32 %v667, %v803
  %v852 = vmax.f32 %v668, %v804
  %v853 = vmax.f32 %v669, %v805
  %v854 = vmax.f32 %v673, %v806
  %v855 = vmax.f32 %v674, %v807
  %v856 = vmax.f32 %v675, %v808
  %v857 = vmax.f32 %v679, %v809
  %v858 = vmax.f32 %v680, %v810
  %v859 = vmax.f32 %v681, %v811
  %v860 = vmax.f32 %v685, %v812
  %v861 = vmax.f32 %v686, %v813
  %v862 = vmax.f32 %v687, %v814
  %v863 = vmax.f32 %v691, %v815
  %v864 = vmax.f32 %v692, %v816
  %v865 = vmax.f32 %v693, %v817
  %890 = vrot.lane.b32.xlu0 %v842, 122
  %v891 = vpop.permute.xlu0 %890
  %892 = vrot.lane.b32.xlu0 %v843, 122
  %v893 = vpop.permute.xlu0 %892
  %894 = vrot.lane.b32.xlu0 %v844, 122
  %v895 = vpop.permute.xlu0 %894
  %896 = vrot.lane.b32.xlu0 %v845, 122
  %v897 = vpop.permute.xlu0 %896
  %898 = vrot.lane.b32.xlu0 %v846, 122
  %v899 = vpop.permute.xlu0 %898
  %900 = vrot.lane.b32.xlu0 %v847, 122
  %v901 = vpop.permute.xlu0 %900
  %902 = vrot.lane.b32.xlu0 %v848, 122
  %v903 = vpop.permute.xlu0 %902
  %904 = vrot.lane.b32.xlu0 %v849, 122
  %v905 = vpop.permute.xlu0 %904
  %906 = vrot.lane.b32.xlu0 %v850, 122
  %v907 = vpop.permute.xlu0 %906
  %908 = vrot.lane.b32.xlu0 %v851, 122
  %v909 = vpop.permute.xlu0 %908
  %910 = vrot.lane.b32.xlu0 %v852, 122
  %v911 = vpop.permute.xlu0 %910
  %912 = vrot.lane.b32.xlu0 %v853, 122
  %v913 = vpop.permute.xlu0 %912
  %914 = vrot.lane.b32.xlu0 %v854, 122
  %v915 = vpop.permute.xlu0 %914
  %916 = vrot.lane.b32.xlu0 %v855, 122
  %v917 = vpop.permute.xlu0 %916
  %918 = vrot.lane.b32.xlu0 %v856, 122
  %v919 = vpop.permute.xlu0 %918
  %920 = vrot.lane.b32.xlu0 %v857, 122
  %v921 = vpop.permute.xlu0 %920
  %922 = vrot.lane.b32.xlu0 %v858, 122
  %v923 = vpop.permute.xlu0 %922
  %924 = vrot.lane.b32.xlu0 %v859, 122
  %v925 = vpop.permute.xlu0 %924
  %926 = vrot.lane.b32.xlu0 %v860, 122
  %v927 = vpop.permute.xlu0 %926
  %928 = vrot.lane.b32.xlu0 %v861, 122
  %v929 = vpop.permute.xlu0 %928
  %930 = vrot.lane.b32.xlu0 %v862, 122
  %v931 = vpop.permute.xlu0 %930
  %932 = vrot.lane.b32.xlu0 %v863, 122
  %v933 = vpop.permute.xlu0 %932
  %934 = vrot.lane.b32.xlu0 %v864, 122
  %v935 = vpop.permute.xlu0 %934
  %936 = vrot.lane.b32.xlu0 %v865, 122
  %v937 = vpop.permute.xlu0 %936
  %vm938 = vcmask 998400
  %v939 = vsel %vm938, %v891, %v893
  %v940 = vsel %vm938, %v893, %v895
  %v941 = vsel %vm938, %v897, %v899
  %v942 = vsel %vm938, %v899, %v901
  %v943 = vsel %vm938, %v903, %v905
  %v944 = vsel %vm938, %v905, %v907
  %v945 = vsel %vm938, %v909, %v911
  %v946 = vsel %vm938, %v911, %v913
  %v947 = vsel %vm938, %v915, %v917
  %v948 = vsel %vm938, %v917, %v919
  %v949 = vsel %vm938, %v921, %v923
  %v950 = vsel %vm938, %v923, %v925
  %v951 = vsel %vm938, %v927, %v929
  %v952 = vsel %vm938, %v929, %v931
  %v953 = vsel %vm938, %v933, %v935
  %v954 = vsel %vm938, %v935, %v937
  %979 = vrot.lane.b32.xlu0 %v842, 74
  %v980 = vpop.permute.xlu0 %979
  %981 = vrot.lane.b32.xlu0 %v845, 74
  %v982 = vpop.permute.xlu0 %981
  %983 = vrot.lane.b32.xlu0 %v848, 74
  %v984 = vpop.permute.xlu0 %983
  %985 = vrot.lane.b32.xlu0 %v851, 74
  %v986 = vpop.permute.xlu0 %985
  %987 = vrot.lane.b32.xlu0 %v854, 74
  %v988 = vpop.permute.xlu0 %987
  %989 = vrot.lane.b32.xlu0 %v857, 74
  %v990 = vpop.permute.xlu0 %989
  %991 = vrot.lane.b32.xlu0 %v860, 74
  %v992 = vpop.permute.xlu0 %991
  %993 = vrot.lane.b32.xlu0 %v863, 74
  %v994 = vpop.permute.xlu0 %993
  %vm1003 = vcmask 605184
  %v1004 = vsel %vm1003, %v895, %v980
  %v1005 = vsel %vm1003, %v901, %v982
  %v1006 = vsel %vm1003, %v907, %v984
  %v1007 = vsel %vm1003, %v913, %v986
  %v1008 = vsel %vm1003, %v919, %v988
  %v1009 = vsel %vm1003, %v925, %v990
  %v1010 = vsel %vm1003, %v931, %v992
  %v1011 = vsel %vm1003, %v937, %v994
  %v1012 = vmax.f32 %v842, %v939
  %v1013 = vmax.f32 %v843, %v940
  %v1014 = vmax.f32 %v844, %v1004
  %v1015 = vmax.f32 %v845, %v941
  %v1016 = vmax.f32 %v846, %v942
  %v1017 = vmax.f32 %v847, %v1005
  %v1018 = vmax.f32 %v848, %v943
  %v1019 = vmax.f32 %v849, %v944
  %v1020 = vmax.f32 %v850, %v1006
  %v1021 = vmax.f32 %v851, %v945
  %v1022 = vmax.f32 %v852, %v946
  %v1023 = vmax.f32 %v853, %v1007
  %v1024 = vmax.f32 %v854, %v947
  %v1025 = vmax.f32 %v855, %v948
  %v1026 = vmax.f32 %v856, %v1008
  %v1027 = vmax.f32 %v857, %v949
  %v1028 = vmax.f32 %v858, %v950
  %v1029 = vmax.f32 %v859, %v1009
  %v1030 = vmax.f32 %v860, %v951
  %v1031 = vmax.f32 %v861, %v952
  %v1032 = vmax.f32 %v862, %v1010
  %v1033 = vmax.f32 %v863, %v953
  %v1034 = vmax.f32 %v864, %v954
  %v1035 = vmax.f32 %v865, %v1011
  %v1036 = vld [vmem:[%s3] sm:$0xff]
  %v1037 = vld [vmem:[%s3 + $0x8] sm:$0xff]
  %v1038 = vld [vmem:[%s3 + $0x10] sm:$0xff]
  %v1039 = vld [vmem:[%s3 + $0x18] sm:$0xff]
  %v1040 = vld [vmem:[%s3 + $0x20] sm:$0xff]
  %v1041 = vld [vmem:[%s3 + $0x28] sm:$0xff]
  %v1042 = vld [vmem:[%s3 + $0x30] sm:$0xff]
  %v1043 = vld [vmem:[%s3 + $0x38] sm:$0xff]
  %v1044 = vld [vmem:[%s3 + $0x40] sm:$0xff]
  %v1045 = vld [vmem:[%s3 + $0x48] sm:$0xff]
  %v1046 = vld [vmem:[%s3 + $0x50] sm:$0xff]
  %v1047 = vld [vmem:[%s3 + $0x58] sm:$0xff]
  %v1048 = vld [vmem:[%s3 + $0x60] sm:$0xff]
  %v1049 = vld [vmem:[%s3 + $0x68] sm:$0xff]
  %v1050 = vld [vmem:[%s3 + $0x70] sm:$0xff]
  %v1051 = vld [vmem:[%s3 + $0x78] sm:$0xff]
  %v1052 = vld [vmem:[%s3 + $0x80] sm:$0xff]
  %v1053 = vld [vmem:[%s3 + $0x88] sm:$0xff]
  %v1054 = vld [vmem:[%s3 + $0x90] sm:$0xff]
  %v1055 = vld [vmem:[%s3 + $0x98] sm:$0xff]
  %v1056 = vld [vmem:[%s3 + $0xa0] sm:$0xff]
  %v1057 = vld [vmem:[%s3 + $0xa8] sm:$0xff]
  %v1058 = vld [vmem:[%s3 + $0xb0] sm:$0xff]
  %v1059 = vld [vmem:[%s3 + $0xb8] sm:$0xff]
  %v1060 = vld [vmem:[%s3 + $0xc0] sm:$0xff]
  %v1061 = vld [vmem:[%s3 + $0xc8] sm:$0xff]
  %v1062 = vld [vmem:[%s3 + $0xd0] sm:$0xff]
  %v1063 = vld [vmem:[%s3 + $0xd8] sm:$0xff]
  %v1064 = vld [vmem:[%s3 + $0xe0] sm:$0xff]
  %v1065 = vld [vmem:[%s3 + $0xe8] sm:$0xff]
  %v1066 = vld [vmem:[%s3 + $0xf0] sm:$0xff]
  %v1067 = vld [vmem:[%s3 + $0xf8] sm:$0xff]
  %v1068 = vld [vmem:[%s3 + $0x100] sm:$0xff]
  %v1069 = vld [vmem:[%s3 + $0x108] sm:$0xff]
  %v1070 = vld [vmem:[%s3 + $0x110] sm:$0xff]
  %v1071 = vld [vmem:[%s3 + $0x118] sm:$0xff]
  %v1072 = vld [vmem:[%s3 + $0x120] sm:$0xff]
  %v1073 = vld [vmem:[%s3 + $0x128] sm:$0xff]
  %v1074 = vld [vmem:[%s3 + $0x130] sm:$0xff]
  %v1075 = vld [vmem:[%s3 + $0x138] sm:$0xff]
  %v1076 = vld [vmem:[%s3 + $0x140] sm:$0xff]
  %v1077 = vld [vmem:[%s3 + $0x148] sm:$0xff]
  %v1078 = vld [vmem:[%s3 + $0x150] sm:$0xff]
  %v1079 = vld [vmem:[%s3 + $0x158] sm:$0xff]
  %v1080 = vld [vmem:[%s3 + $0x160] sm:$0xff]
  %v1081 = vld [vmem:[%s3 + $0x168] sm:$0xff]
  %v1082 = vld [vmem:[%s3 + $0x170] sm:$0xff]
  %v1083 = vld [vmem:[%s3 + $0x178] sm:$0xff]
  %v1084 = vld [vmem:[%s3 + $0x180] sm:$0xff]
  %v1085 = vld [vmem:[%s3 + $0x188] sm:$0xff]
  %v1086 = vld [vmem:[%s3 + $0x190] sm:$0xff]
  %v1087 = vld [vmem:[%s3 + $0x198] sm:$0xff]
  %v1088 = vld [vmem:[%s3 + $0x1a0] sm:$0xff]
  %v1089 = vld [vmem:[%s3 + $0x1a8] sm:$0xff]
  %v1090 = vld [vmem:[%s3 + $0x1b0] sm:$0xff]
  %v1091 = vld [vmem:[%s3 + $0x1b8] sm:$0xff]
  %v1092 = vld [vmem:[%s3 + $0x1c0] sm:$0xff]
  %v1093 = vld [vmem:[%s3 + $0x1c8] sm:$0xff]
  %v1094 = vld [vmem:[%s3 + $0x1d0] sm:$0xff]
  %v1095 = vld [vmem:[%s3 + $0x1d8] sm:$0xff]
  %v1096 = vld [vmem:[%s3 + $0x1e0] sm:$0xff]
  %v1097 = vld [vmem:[%s3 + $0x1e8] sm:$0xff]
  %v1098 = vld [vmem:[%s3 + $0x1f0] sm:$0xff]
  %v1099 = vld [vmem:[%s3 + $0x1f8] sm:$0xff]
  %v1100 = vld [vmem:[%s3 + $0x200] sm:$0xff]
  %v1101 = vld [vmem:[%s3 + $0x208] sm:$0xff]
  %v1102 = vld [vmem:[%s3 + $0x210] sm:$0xff]
  %v1103 = vld [vmem:[%s3 + $0x218] sm:$0xff]
  %v1104 = vld [vmem:[%s3 + $0x220] sm:$0xff]
  %v1105 = vld [vmem:[%s3 + $0x228] sm:$0xff]
  %v1106 = vld [vmem:[%s3 + $0x230] sm:$0xff]
  %v1107 = vld [vmem:[%s3 + $0x238] sm:$0xff]
  %v1108 = vld [vmem:[%s3 + $0x240] sm:$0xff]
  %v1109 = vld [vmem:[%s3 + $0x248] sm:$0xff]
  %v1110 = vld [vmem:[%s3 + $0x250] sm:$0xff]
  %v1111 = vld [vmem:[%s3 + $0x258] sm:$0xff]
  %v1112 = vld [vmem:[%s3 + $0x260] sm:$0xff]
  %v1113 = vld [vmem:[%s3 + $0x268] sm:$0xff]
  %v1114 = vld [vmem:[%s3 + $0x270] sm:$0xff]
  %v1115 = vld [vmem:[%s3 + $0x278] sm:$0xff]
  %v1116 = vld [vmem:[%s3 + $0x280] sm:$0xff]
  %v1117 = vld [vmem:[%s3 + $0x288] sm:$0xff]
  %v1118 = vld [vmem:[%s3 + $0x290] sm:$0xff]
  %v1119 = vld [vmem:[%s3 + $0x298] sm:$0xff]
  %vm1120 = vcmask 654336
  %v1122 = vsel %vm1120, %v1014, 0
  %v1125 = vsel %vm1120, %v1017, 0
  %v1128 = vsel %vm1120, %v1020, 0
  %v1131 = vsel %vm1120, %v1023, 0
  %v1134 = vsel %vm1120, %v1026, 0
  %v1137 = vsel %vm1120, %v1029, 0
  %v1140 = vsel %vm1120, %v1032, 0
  %v1143 = vsel %vm1120, %v1035, 0
  %1145 = vmatprep.subr.mxu0 %v1067
  %1146 = vmatpush1.msra.mxu0 %v1066
  %1147 = vmatprep.subr.mxu0 %v1065
  %1148 = vmatpush1.msra.mxu0 %v1064
  %1149 = vmatprep.subr.mxu0 %v1063
  %1150 = vmatpush1.msra.mxu0 %v1062
  %1151 = vmatprep.subr.mxu0 %v1061
  %1152 = vmatpush1.msra.mxu0 %v1060
  %1153 = vmatprep.subr.mxu0 %v1059
  %1154 = vmatpush1.msra.mxu0 %v1058
  %1155 = vmatprep.subr.mxu0 %v1057
  %1156 = vmatpush1.msra.mxu0 %v1056
  %1157 = vmatprep.subr.mxu0 %v1055
  %1158 = vmatpush1.msra.mxu0 %v1054
  %1159 = vmatprep.subr.mxu0 %v1053
  %1160 = vmatpush1.msra.mxu0 %v1052
  %1161 = vmatprep.subr.mxu0 %v1051
  %1162 = vmatpush1.msra.mxu0 %v1050
  %1163 = vmatprep.subr.mxu0 %v1049
  %1164 = vmatpush1.msra.mxu0 %v1048
  %1165 = vmatprep.subr.mxu0 %v1047
  %1166 = vmatpush1.msra.mxu0 %v1046
  %1167 = vmatprep.subr.mxu0 %v1045
  %1168 = vmatpush1.msra.mxu0 %v1044
  %1169 = vmatprep.subr.mxu0 %v1043
  %1170 = vmatpush1.msra.mxu0 %v1042
  %1171 = vmatprep.subr.mxu0 %v1041
  %1172 = vmatpush1.msra.mxu0 %v1040
  %1173 = vmatprep.subr.mxu0 %v1039
  %1174 = vmatpush1.msra.mxu0 %v1038
  %1175 = vmatprep.subr.mxu0 %v1037
  %1176 = vmatpush1.msra.mxu0 %v1036
  %1177 = vmatprep.subr.mxu0 %v1099
  %1178 = vmatpush2.msra.mxu0 %v1098
  %1179 = vmatprep.subr.mxu0 %v1097
  %1180 = vmatpush2.msra.mxu0 %v1096
  %1181 = vmatprep.subr.mxu0 %v1095
  %1182 = vmatpush2.msra.mxu0 %v1094
  %1183 = vmatprep.subr.mxu0 %v1093
  %1184 = vmatpush2.msra.mxu0 %v1092
  %1185 = vmatprep.subr.mxu0 %v1091
  %1186 = vmatpush2.msra.mxu0 %v1090
  %1187 = vmatprep.subr.mxu0 %v1089
  %1188 = vmatpush2.msra.mxu0 %v1088
  %1189 = vmatprep.subr.mxu0 %v1087
  %1190 = vmatpush2.msra.mxu0 %v1086
  %1191 = vmatprep.subr.mxu0 %v1085
  %1192 = vmatpush2.msra.mxu0 %v1084
  %1193 = vmatprep.subr.mxu0 %v1083
  %1194 = vmatpush2.msra.mxu0 %v1082
  %1195 = vmatprep.subr.mxu0 %v1081
  %1196 = vmatpush2.msra.mxu0 %v1080
  %1197 = vmatprep.subr.mxu0 %v1079
  %1198 = vmatpush2.msra.mxu0 %v1078
  %1199 = vmatprep.subr.mxu0 %v1077
  %1200 = vmatpush2.msra.mxu0 %v1076
  %1201 = vmatprep.subr.mxu0 %v1075
  %1202 = vmatpush2.msra.mxu0 %v1074
  %1203 = vmatprep.subr.mxu0 %v1073
  %1204 = vmatpush2.msra.mxu0 %v1072
  %1205 = vmatprep.subr.mxu0 %v1071
  %1206 = vmatpush2.msra.mxu0 %v1070
  %1207 = vmatprep.subr.mxu0 %v1069
  %1208 = vmatpush2.msra.mxu0 %v1068
  %1209 = vmatprep.mubr.f32.mxu0 %v1013
  %1210 = vmatmul.mubr.f32.gmra.mxu0 %v1012
  %v1211 = vpop.f32.mrf.mxu0
  %v1212 = vadd.f32 0.0, %v1211
  %v1213 = vpop.f32.mrf.mxu0
  %v1214 = vadd.f32 0.0, %v1213
  %1215 = vmatprep.mubr.f32.mxu0 %v1016
  %1216 = vmatmul.mubr.f32.gmra.mxu0 %v1015
  %v1217 = vpop.f32.mrf.mxu0
  %v1218 = vadd.f32 0.0, %v1217
  %v1219 = vpop.f32.mrf.mxu0
  %v1220 = vadd.f32 0.0, %v1219
  %1221 = vmatprep.mubr.f32.mxu0 %v1019
  %1222 = vmatmul.mubr.f32.gmra.mxu0 %v1018
  %v1223 = vpop.f32.mrf.mxu0
  %v1224 = vadd.f32 0.0, %v1223
  %v1225 = vpop.f32.mrf.mxu0
  %v1226 = vadd.f32 0.0, %v1225
  %1227 = vmatprep.mubr.f32.mxu0 %v1022
  %1228 = vmatmul.mubr.f32.gmra.mxu0 %v1021
  %v1229 = vpop.f32.mrf.mxu0
  %v1230 = vadd.f32 0.0, %v1229
  %v1231 = vpop.f32.mrf.mxu0
  %v1232 = vadd.f32 0.0, %v1231
  %1233 = vmatprep.mubr.f32.mxu0 %v1025
  %1234 = vmatmul.mubr.f32.gmra.mxu0 %v1024
  %v1235 = vpop.f32.mrf.mxu0
  %v1236 = vadd.f32 0.0, %v1235
  %v1237 = vpop.f32.mrf.mxu0
  %v1238 = vadd.f32 0.0, %v1237
  %1239 = vmatprep.mubr.f32.mxu0 %v1028
  %1240 = vmatmul.mubr.f32.gmra.mxu0 %v1027
  %v1241 = vpop.f32.mrf.mxu0
  %v1242 = vadd.f32 0.0, %v1241
  %v1243 = vpop.f32.mrf.mxu0
  %v1244 = vadd.f32 0.0, %v1243
  %1245 = vmatprep.mubr.f32.mxu0 %v1031
  %1246 = vmatmul.mubr.f32.gmra.mxu0 %v1030
  %v1247 = vpop.f32.mrf.mxu0
  %v1248 = vadd.f32 0.0, %v1247
  %v1249 = vpop.f32.mrf.mxu0
  %v1250 = vadd.f32 0.0, %v1249
  %1251 = vmatprep.mubr.f32.mxu0 %v1034
  %1252 = vmatmul.mubr.f32.gmra.mxu0 %v1033
  %v1253 = vpop.f32.mrf.mxu0
  %v1254 = vadd.f32 0.0, %v1253
  %v1255 = vpop.f32.mrf.mxu0
  %v1256 = vadd.f32 0.0, %v1255
  %1257 = vdwg.mxu0
  %1258 = vmatprep.subr.mxu0 0.0
  %1259 = vmatpush1.msra.mxu0 0.0
  %1260 = vmatprep.subr.mxu0 0.0
  %1261 = vmatpush1.msra.mxu0 0.0
  %1262 = vmatprep.subr.mxu0 0.0
  %1263 = vmatpush1.msra.mxu0 0.0
  %1264 = vmatprep.subr.mxu0 0.0
  %1265 = vmatpush1.msra.mxu0 0.0
  %1266 = vmatprep.subr.mxu0 0.0
  %1267 = vmatpush1.msra.mxu0 0.0
  %1268 = vmatprep.subr.mxu0 0.0
  %1269 = vmatpush1.msra.mxu0 0.0
  %1270 = vmatprep.subr.mxu0 %v1119
  %1271 = vmatpush1.msra.mxu0 %v1118
  %1272 = vmatprep.subr.mxu0 %v1117
  %1273 = vmatpush1.msra.mxu0 %v1116
  %1274 = vmatprep.subr.mxu0 %v1115
  %1275 = vmatpush1.msra.mxu0 %v1114
  %1276 = vmatprep.subr.mxu0 %v1113
  %1277 = vmatpush1.msra.mxu0 %v1112
  %1278 = vmatprep.subr.mxu0 %v1111
  %1279 = vmatpush1.msra.mxu0 %v1110
  %1280 = vmatprep.subr.mxu0 %v1109
  %1281 = vmatpush1.msra.mxu0 %v1108
  %1282 = vmatprep.subr.mxu0 %v1107
  %1283 = vmatpush1.msra.mxu0 %v1106
  %1284 = vmatprep.subr.mxu0 %v1105
  %1285 = vmatpush1.msra.mxu0 %v1104
  %1286 = vmatprep.subr.mxu0 %v1103
  %1287 = vmatpush1.msra.mxu0 %v1102
  %1288 = vmatprep.subr.mxu0 %v1101
  %1289 = vmatpush1.msra.mxu0 %v1100
  %1290 = vmatprep.subr.mxu0 0.0
  %1291 = vmatpush2.msra.mxu0 0.0
  %1292 = vmatprep.subr.mxu0 0.0
  %1293 = vmatpush2.msra.mxu0 0.0
  %1294 = vmatprep.subr.mxu0 0.0
  %1295 = vmatpush2.msra.mxu0 0.0
  %1296 = vmatprep.subr.mxu0 0.0
  %1297 = vmatpush2.msra.mxu0 0.0
  %1298 = vmatprep.subr.mxu0 0.0
  %1299 = vmatpush2.msra.mxu0 0.0
  %1300 = vmatprep.subr.mxu0 0.0
  %1301 = vmatpush2.msra.mxu0 0.0
  %1302 = vmatprep.subr.mxu0 0.0
  %1303 = vmatpush2.msra.mxu0 0.0
  %1304 = vmatprep.subr.mxu0 0.0
  %1305 = vmatpush2.msra.mxu0 0.0
  %1306 = vmatprep.subr.mxu0 0.0
  %1307 = vmatpush2.msra.mxu0 0.0
  %1308 = vmatprep.subr.mxu0 0.0
  %1309 = vmatpush2.msra.mxu0 0.0
  %1310 = vmatprep.subr.mxu0 0.0
  %1311 = vmatpush2.msra.mxu0 0.0
  %1312 = vmatprep.subr.mxu0 0.0
  %1313 = vmatpush2.msra.mxu0 0.0
  %1314 = vmatprep.subr.mxu0 0.0
  %1315 = vmatpush2.msra.mxu0 0.0
  %1316 = vmatprep.subr.mxu0 0.0
  %1317 = vmatpush2.msra.mxu0 0.0
  %1318 = vmatprep.subr.mxu0 0.0
  %1319 = vmatpush2.msra.mxu0 0.0
  %1320 = vmatprep.subr.mxu0 0.0
  %1321 = vmatpush2.msra.mxu0 0.0
  %1322 = vmatprep.mubr.f32.mxu0 0.0
  %1323 = vmatmul.mubr.f32.gmra.mxu0 %v1122
  %v1324 = vpop.f32.mrf.mxu0
  %v1325 = vadd.f32 %v1212, %v1324
  %v1326 = vpop.f32.mrf.mxu0
  %v1327 = vadd.f32 %v1214, %v1326
  %1328 = vmatprep.mubr.f32.mxu0 0.0
  %1329 = vmatmul.mubr.f32.gmra.mxu0 %v1125
  %v1330 = vpop.f32.mrf.mxu0
  %v1331 = vadd.f32 %v1218, %v1330
  %v1332 = vpop.f32.mrf.mxu0
  %v1333 = vadd.f32 %v1220, %v1332
  %1334 = vmatprep.mubr.f32.mxu0 0.0
  %1335 = vmatmul.mubr.f32.gmra.mxu0 %v1128
  %v1336 = vpop.f32.mrf.mxu0
  %v1337 = vadd.f32 %v1224, %v1336
  %v1338 = vpop.f32.mrf.mxu0
  %v1339 = vadd.f32 %v1226, %v1338
  %1340 = vmatprep.mubr.f32.mxu0 0.0
  %1341 = vmatmul.mubr.f32.gmra.mxu0 %v1131
  %v1342 = vpop.f32.mrf.mxu0
  %v1343 = vadd.f32 %v1230, %v1342
  %v1344 = vpop.f32.mrf.mxu0
  %v1345 = vadd.f32 %v1232, %v1344
  %1346 = vmatprep.mubr.f32.mxu0 0.0
  %1347 = vmatmul.mubr.f32.gmra.mxu0 %v1134
  %v1348 = vpop.f32.mrf.mxu0
  %v1349 = vadd.f32 %v1236, %v1348
  %v1350 = vpop.f32.mrf.mxu0
  %v1351 = vadd.f32 %v1238, %v1350
  %1352 = vmatprep.mubr.f32.mxu0 0.0
  %1353 = vmatmul.mubr.f32.gmra.mxu0 %v1137
  %v1354 = vpop.f32.mrf.mxu0
  %v1355 = vadd.f32 %v1242, %v1354
  %v1356 = vpop.f32.mrf.mxu0
  %v1357 = vadd.f32 %v1244, %v1356
  %1358 = vmatprep.mubr.f32.mxu0 0.0
  %1359 = vmatmul.mubr.f32.gmra.mxu0 %v1140
  %v1360 = vpop.f32.mrf.mxu0
  %v1361 = vadd.f32 %v1248, %v1360
  %v1362 = vpop.f32.mrf.mxu0
  %v1363 = vadd.f32 %v1250, %v1362
  %1364 = vmatprep.mubr.f32.mxu0 0.0
  %1365 = vmatmul.mubr.f32.gmra.mxu0 %v1143
  %v1366 = vpop.f32.mrf.mxu0
  %v1367 = vadd.f32 %v1254, %v1366
  %v1368 = vpop.f32.mrf.mxu0
  %v1369 = vadd.f32 %v1256, %v1368
  %1370 = vdwg.mxu0
  %v1387 = vrot.slane %v1325, 1
  %v1388 = vrot.slane %v1331, 1
  %v1389 = vsel %vm60, %v1387, %v1388
  %v1390 = vrot.slane %v1327, 1
  %v1391 = vrot.slane %v1333, 1
  %v1392 = vsel %vm60, %v1390, %v1391
  %v1393 = vrot.slane %v1337, 1
  %v1394 = vsel %vm60, %v1388, %v1393
  %v1395 = vrot.slane %v1339, 1
  %v1396 = vsel %vm60, %v1391, %v1395
  %v1397 = vrot.slane %v1343, 1
  %v1398 = vsel %vm60, %v1393, %v1397
  %v1399 = vrot.slane %v1345, 1
  %v1400 = vsel %vm60, %v1395, %v1399
  %v1401 = vrot.slane %v1349, 1
  %v1402 = vsel %vm60, %v1397, %v1401
  %v1403 = vrot.slane %v1351, 1
  %v1404 = vsel %vm60, %v1399, %v1403
  %v1405 = vrot.slane %v1355, 1
  %v1406 = vsel %vm60, %v1401, %v1405
  %v1407 = vrot.slane %v1357, 1
  %v1408 = vsel %vm60, %v1403, %v1407
  %v1409 = vrot.slane %v1361, 1
  %v1410 = vsel %vm60, %v1405, %v1409
  %v1411 = vrot.slane %v1363, 1
  %v1412 = vsel %vm60, %v1407, %v1411
  %v1413 = vrot.slane %v1367, 1
  %v1414 = vsel %vm60, %v1409, %v1413
  %v1415 = vrot.slane %v1369, 1
  %v1416 = vsel %vm60, %v1411, %v1415
  %v1421 = vsel %vm60, %v1413, %v1387
  %v1422 = vsel %vm60, %v1415, %v1390
  %vm1423 = vcmask 1045504
  %v1424 = vrot.slane %v1325, 2
  %v1425 = vrot.slane %v1331, 2
  %v1426 = vsel %vm1423, %v1424, %v1425
  %v1427 = vrot.slane %v1327, 2
  %v1428 = vrot.slane %v1333, 2
  %v1429 = vsel %vm1423, %v1427, %v1428
  %v1430 = vrot.slane %v1337, 2
  %v1431 = vsel %vm1423, %v1425, %v1430
  %v1432 = vrot.slane %v1339, 2
  %v1433 = vsel %vm1423, %v1428, %v1432
  %v1434 = vrot.slane %v1343, 2
  %v1435 = vsel %vm1423, %v1430, %v1434
  %v1436 = vrot.slane %v1345, 2
  %v1437 = vsel %vm1423, %v1432, %v1436
  %v1438 = vrot.slane %v1349, 2
  %v1439 = vsel %vm1423, %v1434, %v1438
  %v1440 = vrot.slane %v1351, 2
  %v1441 = vsel %vm1423, %v1436, %v1440
  %v1442 = vrot.slane %v1355, 2
  %v1443 = vsel %vm1423, %v1438, %v1442
  %v1444 = vrot.slane %v1357, 2
  %v1445 = vsel %vm1423, %v1440, %v1444
  %v1446 = vrot.slane %v1361, 2
  %v1447 = vsel %vm1423, %v1442, %v1446
  %v1448 = vrot.slane %v1363, 2
  %v1449 = vsel %vm1423, %v1444, %v1448
  %v1450 = vrot.slane %v1367, 2
  %v1451 = vsel %vm1423, %v1446, %v1450
  %v1452 = vrot.slane %v1369, 2
  %v1453 = vsel %vm1423, %v1448, %v1452
  %v1458 = vsel %vm1423, %v1450, %v1424
  %v1459 = vsel %vm1423, %v1452, %v1427
  %1462 = vrot.lane.b32.xlu0 %v1389, 40
  %v1463 = vpop.permute.xlu0 %1462
  %1464 = vrot.lane.b32.xlu0 %v1392, 40
  %v1465 = vpop.permute.xlu0 %1464
  %1466 = vrot.lane.b32.xlu0 %v1394, 40
  %v1467 = vpop.permute.xlu0 %1466
  %1468 = vrot.lane.b32.xlu0 %v1396, 40
  %v1469 = vpop.permute.xlu0 %1468
  %1470 = vrot.lane.b32.xlu0 %v1398, 40
  %v1471 = vpop.permute.xlu0 %1470
  %1472 = vrot.lane.b32.xlu0 %v1400, 40
  %v1473 = vpop.permute.xlu0 %1472
  %1474 = vrot.lane.b32.xlu0 %v1402, 40
  %v1475 = vpop.permute.xlu0 %1474
  %1476 = vrot.lane.b32.xlu0 %v1404, 40
  %v1477 = vpop.permute.xlu0 %1476
  %1478 = vrot.lane.b32.xlu0 %v1406, 40
  %v1479 = vpop.permute.xlu0 %1478
  %1480 = vrot.lane.b32.xlu0 %v1408, 40
  %v1481 = vpop.permute.xlu0 %1480
  %1482 = vrot.lane.b32.xlu0 %v1410, 40
  %v1483 = vpop.permute.xlu0 %1482
  %1484 = vrot.lane.b32.xlu0 %v1412, 40
  %v1485 = vpop.permute.xlu0 %1484
  %1486 = vrot.lane.b32.xlu0 %v1414, 40
  %v1487 = vpop.permute.xlu0 %1486
  %1488 = vrot.lane.b32.xlu0 %v1416, 40
  %v1489 = vpop.permute.xlu0 %1488
  %1490 = vrot.lane.b32.xlu0 %v1421, 40
  %v1491 = vpop.permute.xlu0 %1490
  %1492 = vrot.lane.b32.xlu0 %v1422, 40
  %v1493 = vpop.permute.xlu0 %1492
  %vm1494 = vcmask 326656
  %v1495 = vsel %vm1494, %v1463, %v1465
  %v1496 = vsel %vm1494, %v1467, %v1469
  %v1497 = vsel %vm1494, %v1471, %v1473
  %v1498 = vsel %vm1494, %v1475, %v1477
  %v1499 = vsel %vm1494, %v1479, %v1481
  %v1500 = vsel %vm1494, %v1483, %v1485
  %v1501 = vsel %vm1494, %v1487, %v1489
  %v1502 = vsel %vm1494, %v1491, %v1493
  %1521 = vrot.lane.b32.xlu0 %v1426, 80
  %v1522 = vpop.permute.xlu0 %1521
  %1523 = vrot.lane.b32.xlu0 %v1429, 80
  %v1524 = vpop.permute.xlu0 %1523
  %1525 = vrot.lane.b32.xlu0 %v1431, 80
  %v1526 = vpop.permute.xlu0 %1525
  %1527 = vrot.lane.b32.xlu0 %v1433, 80
  %v1528 = vpop.permute.xlu0 %1527
  %1529 = vrot.lane.b32.xlu0 %v1435, 80
  %v1530 = vpop.permute.xlu0 %1529
  %1531 = vrot.lane.b32.xlu0 %v1437, 80
  %v1532 = vpop.permute.xlu0 %1531
  %1533 = vrot.lane.b32.xlu0 %v1439, 80
  %v1534 = vpop.permute.xlu0 %1533
  %1535 = vrot.lane.b32.xlu0 %v1441, 80
  %v1536 = vpop.permute.xlu0 %1535
  %1537 = vrot.lane.b32.xlu0 %v1443, 80
  %v1538 = vpop.permute.xlu0 %1537
  %1539 = vrot.lane.b32.xlu0 %v1445, 80
  %v1540 = vpop.permute.xlu0 %1539
  %1541 = vrot.lane.b32.xlu0 %v1447, 80
  %v1542 = vpop.permute.xlu0 %1541
  %1543 = vrot.lane.b32.xlu0 %v1449, 80
  %v1544 = vpop.permute.xlu0 %1543
  %1545 = vrot.lane.b32.xlu0 %v1451, 80
  %v1546 = vpop.permute.xlu0 %1545
  %1547 = vrot.lane.b32.xlu0 %v1453, 80
  %v1548 = vpop.permute.xlu0 %1547
  %1549 = vrot.lane.b32.xlu0 %v1458, 80
  %v1550 = vpop.permute.xlu0 %1549
  %1551 = vrot.lane.b32.xlu0 %v1459, 80
  %v1552 = vpop.permute.xlu0 %1551
  %v1553 = vsel %vm1120, %v1522, %v1524
  %v1554 = vsel %vm1120, %v1526, %v1528
  %v1555 = vsel %vm1120, %v1530, %v1532
  %v1556 = vsel %vm1120, %v1534, %v1536
  %v1557 = vsel %vm1120, %v1538, %v1540
  %v1558 = vsel %vm1120, %v1542, %v1544
  %v1559 = vsel %vm1120, %v1546, %v1548
  %v1560 = vsel %vm1120, %v1550, %v1552
  %v1569 = vsel %vm1494, %v1327, %v1463
  %v1570 = vsel %vm1494, %v1333, %v1467
  %v1571 = vsel %vm1494, %v1339, %v1471
  %v1572 = vsel %vm1494, %v1345, %v1475
  %v1573 = vsel %vm1494, %v1351, %v1479
  %v1574 = vsel %vm1494, %v1357, %v1483
  %v1575 = vsel %vm1494, %v1363, %v1487
  %v1576 = vsel %vm1494, %v1369, %v1491
  %v1577 = vsel %vm1120, %v1495, %v1522
  %v1578 = vsel %vm1120, %v1496, %v1526
  %v1579 = vsel %vm1120, %v1497, %v1530
  %v1580 = vsel %vm1120, %v1498, %v1534
  %v1581 = vsel %vm1120, %v1499, %v1538
  %v1582 = vsel %vm1120, %v1500, %v1542
  %v1583 = vsel %vm1120, %v1501, %v1546
  %v1584 = vsel %vm1120, %v1502, %v1550
  %v1585 = vld [vmem:[%s4] sm:$0xff]
  %v1586 = vld [vmem:[%s4 + $0x8] sm:$0xff]
  %v1587 = vld [vmem:[%s4 + $0x10] sm:$0xff]
  %v1588 = vld [vmem:[%s4 + $0x18] sm:$0xff]
  %v1589 = vld [vmem:[%s4 + $0x20] sm:$0xff]
  %v1590 = vld [vmem:[%s4 + $0x28] sm:$0xff]
  %v1591 = vld [vmem:[%s4 + $0x30] sm:$0xff]
  %v1592 = vld [vmem:[%s4 + $0x38] sm:$0xff]
  %v1593 = vld [vmem:[%s4 + $0x40] sm:$0xff]
  %v1594 = vld [vmem:[%s4 + $0x48] sm:$0xff]
  %v1595 = vld [vmem:[%s4 + $0x50] sm:$0xff]
  %v1596 = vld [vmem:[%s4 + $0x58] sm:$0xff]
  %v1597 = vld [vmem:[%s4 + $0x60] sm:$0xff]
  %v1598 = vld [vmem:[%s4 + $0x68] sm:$0xff]
  %v1599 = vld [vmem:[%s4 + $0x70] sm:$0xff]
  %v1600 = vld [vmem:[%s4 + $0x78] sm:$0xff]
  %v1601 = vld [vmem:[%s4 + $0x80] sm:$0xff]
  %v1602 = vld [vmem:[%s4 + $0x88] sm:$0xff]
  %v1603 = vld [vmem:[%s4 + $0x90] sm:$0xff]
  %v1604 = vld [vmem:[%s4 + $0x98] sm:$0xff]
  %v1605 = vld [vmem:[%s4 + $0xa0] sm:$0xff]
  %v1606 = vld [vmem:[%s4 + $0xa8] sm:$0xff]
  %v1607 = vld [vmem:[%s4 + $0xb0] sm:$0xff]
  %v1608 = vld [vmem:[%s4 + $0xb8] sm:$0xff]
  %v1609 = vld [vmem:[%s4 + $0xc0] sm:$0xff]
  %v1610 = vld [vmem:[%s4 + $0xc8] sm:$0xff]
  %v1611 = vld [vmem:[%s4 + $0xd0] sm:$0xff]
  %v1612 = vld [vmem:[%s4 + $0xd8] sm:$0xff]
  %v1613 = vld [vmem:[%s4 + $0xe0] sm:$0xff]
  %v1614 = vld [vmem:[%s4 + $0xe8] sm:$0xff]
  %v1615 = vld [vmem:[%s4 + $0xf0] sm:$0xff]
  %v1616 = vld [vmem:[%s4 + $0xf8] sm:$0xff]
  %v1617 = vld [vmem:[%s4 + $0x100] sm:$0xff]
  %v1618 = vld [vmem:[%s4 + $0x108] sm:$0xff]
  %v1619 = vld [vmem:[%s4 + $0x110] sm:$0xff]
  %v1620 = vld [vmem:[%s4 + $0x118] sm:$0xff]
  %v1621 = vld [vmem:[%s4 + $0x120] sm:$0xff]
  %v1622 = vld [vmem:[%s4 + $0x128] sm:$0xff]
  %v1623 = vld [vmem:[%s4 + $0x130] sm:$0xff]
  %v1624 = vld [vmem:[%s4 + $0x138] sm:$0xff]
  %v1625 = vld [vmem:[%s4 + $0x140] sm:$0xff]
  %v1626 = vld [vmem:[%s4 + $0x148] sm:$0xff]
  %v1627 = vld [vmem:[%s4 + $0x150] sm:$0xff]
  %v1628 = vld [vmem:[%s4 + $0x158] sm:$0xff]
  %v1629 = vld [vmem:[%s4 + $0x160] sm:$0xff]
  %v1630 = vld [vmem:[%s4 + $0x168] sm:$0xff]
  %v1631 = vld [vmem:[%s4 + $0x170] sm:$0xff]
  %v1632 = vld [vmem:[%s4 + $0x178] sm:$0xff]
  %v1633 = vld [vmem:[%s4 + $0x180] sm:$0xff]
  %v1634 = vld [vmem:[%s4 + $0x188] sm:$0xff]
  %v1635 = vld [vmem:[%s4 + $0x190] sm:$0xff]
  %v1636 = vld [vmem:[%s4 + $0x198] sm:$0xff]
  %v1637 = vld [vmem:[%s4 + $0x1a0] sm:$0xff]
  %v1638 = vld [vmem:[%s4 + $0x1a8] sm:$0xff]
  %v1639 = vld [vmem:[%s4 + $0x1b0] sm:$0xff]
  %v1640 = vld [vmem:[%s4 + $0x1b8] sm:$0xff]
  %v1641 = vld [vmem:[%s4 + $0x1c0] sm:$0xff]
  %v1642 = vld [vmem:[%s4 + $0x1c8] sm:$0xff]
  %v1643 = vld [vmem:[%s4 + $0x1d0] sm:$0xff]
  %v1644 = vld [vmem:[%s4 + $0x1d8] sm:$0xff]
  %v1645 = vld [vmem:[%s4 + $0x1e0] sm:$0xff]
  %v1646 = vld [vmem:[%s4 + $0x1e8] sm:$0xff]
  %v1647 = vld [vmem:[%s4 + $0x1f0] sm:$0xff]
  %v1648 = vld [vmem:[%s4 + $0x1f8] sm:$0xff]
  %v1649 = vld [vmem:[%s4 + $0x200] sm:$0xff]
  %v1650 = vld [vmem:[%s4 + $0x208] sm:$0xff]
  %v1651 = vld [vmem:[%s4 + $0x210] sm:$0xff]
  %v1652 = vld [vmem:[%s4 + $0x218] sm:$0xff]
  %v1653 = vld [vmem:[%s4 + $0x220] sm:$0xff]
  %v1654 = vld [vmem:[%s4 + $0x228] sm:$0xff]
  %v1655 = vld [vmem:[%s4 + $0x230] sm:$0xff]
  %v1656 = vld [vmem:[%s4 + $0x238] sm:$0xff]
  %v1657 = vld [vmem:[%s4 + $0x240] sm:$0xff]
  %v1658 = vld [vmem:[%s4 + $0x248] sm:$0xff]
  %v1659 = vld [vmem:[%s4 + $0x250] sm:$0xff]
  %v1660 = vld [vmem:[%s4 + $0x258] sm:$0xff]
  %v1661 = vld [vmem:[%s4 + $0x260] sm:$0xff]
  %v1662 = vld [vmem:[%s4 + $0x268] sm:$0xff]
  %v1663 = vld [vmem:[%s4 + $0x270] sm:$0xff]
  %v1664 = vld [vmem:[%s4 + $0x278] sm:$0xff]
  %v1665 = vld [vmem:[%s4 + $0x280] sm:$0xff]
  %v1666 = vld [vmem:[%s4 + $0x288] sm:$0xff]
  %v1667 = vld [vmem:[%s4 + $0x290] sm:$0xff]
  %v1668 = vld [vmem:[%s4 + $0x298] sm:$0xff]
  %v1669 = vld [vmem:[%s4 + $0x2a0] sm:$0xff]
  %v1670 = vld [vmem:[%s4 + $0x2a8] sm:$0xff]
  %v1671 = vld [vmem:[%s4 + $0x2b0] sm:$0xff]
  %v1672 = vld [vmem:[%s4 + $0x2b8] sm:$0xff]
  %v1673 = vld [vmem:[%s4 + $0x2c0] sm:$0xff]
  %v1674 = vld [vmem:[%s4 + $0x2c8] sm:$0xff]
  %v1675 = vld [vmem:[%s4 + $0x2d0] sm:$0xff]
  %v1676 = vld [vmem:[%s4 + $0x2d8] sm:$0xff]
  %v1677 = vld [vmem:[%s4 + $0x2e0] sm:$0xff]
  %v1678 = vld [vmem:[%s4 + $0x2e8] sm:$0xff]
  %v1679 = vld [vmem:[%s4 + $0x2f0] sm:$0xff]
  %v1680 = vld [vmem:[%s4 + $0x2f8] sm:$0xff]
  %v1681 = vld [vmem:[%s4 + $0x300] sm:$0xff]
  %v1682 = vld [vmem:[%s4 + $0x308] sm:$0xff]
  %v1683 = vld [vmem:[%s4 + $0x310] sm:$0xff]
  %v1684 = vld [vmem:[%s4 + $0x318] sm:$0xff]
  %v1685 = vld [vmem:[%s4 + $0x320] sm:$0xff]
  %v1686 = vld [vmem:[%s4 + $0x328] sm:$0xff]
  %v1687 = vld [vmem:[%s4 + $0x330] sm:$0xff]
  %v1688 = vld [vmem:[%s4 + $0x338] sm:$0xff]
  %v1689 = vld [vmem:[%s4 + $0x340] sm:$0xff]
  %v1690 = vld [vmem:[%s4 + $0x348] sm:$0xff]
  %v1691 = vld [vmem:[%s4 + $0x350] sm:$0xff]
  %v1692 = vld [vmem:[%s4 + $0x358] sm:$0xff]
  %v1693 = vld [vmem:[%s4 + $0x360] sm:$0xff]
  %v1694 = vld [vmem:[%s4 + $0x368] sm:$0xff]
  %v1695 = vld [vmem:[%s4 + $0x370] sm:$0xff]
  %v1696 = vld [vmem:[%s4 + $0x378] sm:$0xff]
  %v1697 = vld [vmem:[%s4 + $0x380] sm:$0xff]
  %v1698 = vld [vmem:[%s4 + $0x388] sm:$0xff]
  %v1699 = vld [vmem:[%s4 + $0x390] sm:$0xff]
  %v1700 = vld [vmem:[%s4 + $0x398] sm:$0xff]
  %v1701 = vld [vmem:[%s4 + $0x3a0] sm:$0xff]
  %v1702 = vld [vmem:[%s4 + $0x3a8] sm:$0xff]
  %v1703 = vld [vmem:[%s4 + $0x3b0] sm:$0xff]
  %v1704 = vld [vmem:[%s4 + $0x3b8] sm:$0xff]
  %v1705 = vld [vmem:[%s4 + $0x3c0] sm:$0xff]
  %v1706 = vld [vmem:[%s4 + $0x3c8] sm:$0xff]
  %v1707 = vld [vmem:[%s4 + $0x3d0] sm:$0xff]
  %v1708 = vld [vmem:[%s4 + $0x3d8] sm:$0xff]
  %v1709 = vld [vmem:[%s4 + $0x3e0] sm:$0xff]
  %v1710 = vld [vmem:[%s4 + $0x3e8] sm:$0xff]
  %v1711 = vld [vmem:[%s4 + $0x3f0] sm:$0xff]
  %v1712 = vld [vmem:[%s4 + $0x3f8] sm:$0xff]
  %v1713 = vld [vmem:[%s4 + $0x400] sm:$0xff]
  %v1714 = vld [vmem:[%s4 + $0x408] sm:$0xff]
  %v1715 = vld [vmem:[%s4 + $0x410] sm:$0xff]
  %v1716 = vld [vmem:[%s4 + $0x418] sm:$0xff]
  %v1717 = vld [vmem:[%s4 + $0x420] sm:$0xff]
  %v1718 = vld [vmem:[%s4 + $0x428] sm:$0xff]
  %v1719 = vld [vmem:[%s4 + $0x430] sm:$0xff]
  %v1720 = vld [vmem:[%s4 + $0x438] sm:$0xff]
  %v1721 = vld [vmem:[%s4 + $0x440] sm:$0xff]
  %v1722 = vld [vmem:[%s4 + $0x448] sm:$0xff]
  %v1723 = vld [vmem:[%s4 + $0x450] sm:$0xff]
  %v1724 = vld [vmem:[%s4 + $0x458] sm:$0xff]
  %v1725 = vld [vmem:[%s4 + $0x460] sm:$0xff]
  %v1726 = vld [vmem:[%s4 + $0x468] sm:$0xff]
  %v1727 = vld [vmem:[%s4 + $0x470] sm:$0xff]
  %v1728 = vld [vmem:[%s4 + $0x478] sm:$0xff]
  %v1729 = vld [vmem:[%s4 + $0x480] sm:$0xff]
  %v1730 = vld [vmem:[%s4 + $0x488] sm:$0xff]
  %v1731 = vld [vmem:[%s4 + $0x490] sm:$0xff]
  %v1732 = vld [vmem:[%s4 + $0x498] sm:$0xff]
  %v1733 = vld [vmem:[%s4 + $0x4a0] sm:$0xff]
  %v1734 = vld [vmem:[%s4 + $0x4a8] sm:$0xff]
  %v1735 = vld [vmem:[%s4 + $0x4b0] sm:$0xff]
  %v1736 = vld [vmem:[%s4 + $0x4b8] sm:$0xff]
  %v1737 = vld [vmem:[%s4 + $0x4c0] sm:$0xff]
  %v1738 = vld [vmem:[%s4 + $0x4c8] sm:$0xff]
  %v1739 = vld [vmem:[%s4 + $0x4d0] sm:$0xff]
  %v1740 = vld [vmem:[%s4 + $0x4d8] sm:$0xff]
  %v1741 = vld [vmem:[%s4 + $0x4e0] sm:$0xff]
  %v1742 = vld [vmem:[%s4 + $0x4e8] sm:$0xff]
  %v1743 = vld [vmem:[%s4 + $0x4f0] sm:$0xff]
  %v1744 = vld [vmem:[%s4 + $0x4f8] sm:$0xff]
  %v1745 = vld [vmem:[%s4 + $0x500] sm:$0xff]
  %v1746 = vld [vmem:[%s4 + $0x508] sm:$0xff]
  %v1747 = vld [vmem:[%s4 + $0x510] sm:$0xff]
  %v1748 = vld [vmem:[%s4 + $0x518] sm:$0xff]
  %v1749 = vld [vmem:[%s4 + $0x520] sm:$0xff]
  %v1750 = vld [vmem:[%s4 + $0x528] sm:$0xff]
  %v1751 = vld [vmem:[%s4 + $0x530] sm:$0xff]
  %v1752 = vld [vmem:[%s4 + $0x538] sm:$0xff]
  %v1753 = vld [vmem:[%s4 + $0x540] sm:$0xff]
  %v1754 = vld [vmem:[%s4 + $0x548] sm:$0xff]
  %v1755 = vld [vmem:[%s4 + $0x550] sm:$0xff]
  %v1756 = vld [vmem:[%s4 + $0x558] sm:$0xff]
  %v1757 = vld [vmem:[%s4 + $0x560] sm:$0xff]
  %v1758 = vld [vmem:[%s4 + $0x568] sm:$0xff]
  %v1759 = vld [vmem:[%s4 + $0x570] sm:$0xff]
  %v1760 = vld [vmem:[%s4 + $0x578] sm:$0xff]
  %v1761 = vld [vmem:[%s4 + $0x580] sm:$0xff]
  %v1762 = vld [vmem:[%s4 + $0x588] sm:$0xff]
  %v1763 = vld [vmem:[%s4 + $0x590] sm:$0xff]
  %v1764 = vld [vmem:[%s4 + $0x598] sm:$0xff]
  %v1765 = vld [vmem:[%s4 + $0x5a0] sm:$0xff]
  %v1766 = vld [vmem:[%s4 + $0x5a8] sm:$0xff]
  %v1767 = vld [vmem:[%s4 + $0x5b0] sm:$0xff]
  %v1768 = vld [vmem:[%s4 + $0x5b8] sm:$0xff]
  %v1769 = vld [vmem:[%s4 + $0x5c0] sm:$0xff]
  %v1770 = vld [vmem:[%s4 + $0x5c8] sm:$0xff]
  %v1771 = vld [vmem:[%s4 + $0x5d0] sm:$0xff]
  %v1772 = vld [vmem:[%s4 + $0x5d8] sm:$0xff]
  %v1773 = vld [vmem:[%s4 + $0x5e0] sm:$0xff]
  %v1774 = vld [vmem:[%s5] sm:$0x7]
  %v1776 = vlaneseq
  %v1777 = vshrl.u32 %v1776, 7
  %v1778 = vsub.s32 0, %v1777
  %v1779 = vrot.slane %v1774, %v1778
  %v1780 = vlaneseq
  %v1781 = vshrl.u32 %v1780, 7
  %v1782 = vsub.s32 1, %v1781
  %v1783 = vrot.slane %v1774, %v1782
  %v1784 = vlaneseq
  %v1785 = vshrl.u32 %v1784, 7
  %v1786 = vsub.s32 2, %v1785
  %v1787 = vrot.slane %v1774, %v1786
  %vm1791 = vcmask 982016
  %v1792 = vsel %vm1791, %v1553, 0
  %v1794 = vsel %vm1791, %v1554, 0
  %v1796 = vsel %vm1791, %v1555, 0
  %v1798 = vsel %vm1791, %v1556, 0
  %v1800 = vsel %vm1791, %v1557, 0
  %v1802 = vsel %vm1791, %v1558, 0
  %v1804 = vsel %vm1791, %v1559, 0
  %v1806 = vsel %vm1791, %v1560, 0
  %1808 = vmatprep.subr.mxu0 %v1631
  %1809 = vmatpush1.msra.mxu0 %v1630
  %1810 = vmatprep.subr.mxu0 %v1628
  %1811 = vmatpush1.msra.mxu0 %v1627
  %1812 = vmatprep.subr.mxu0 %v1625
  %1813 = vmatpush1.msra.mxu0 %v1624
  %1814 = vmatprep.subr.mxu0 %v1622
  %1815 = vmatpush1.msra.mxu0 %v1621
  %1816 = vmatprep.subr.mxu0 %v1619
  %1817 = vmatpush1.msra.mxu0 %v1618
  %1818 = vmatprep.subr.mxu0 %v1616
  %1819 = vmatpush1.msra.mxu0 %v1615
  %1820 = vmatprep.subr.mxu0 %v1613
  %1821 = vmatpush1.msra.mxu0 %v1612
  %1822 = vmatprep.subr.mxu0 %v1610
  %1823 = vmatpush1.msra.mxu0 %v1609
  %1824 = vmatprep.subr.mxu0 %v1607
  %1825 = vmatpush1.msra.mxu0 %v1606
  %1826 = vmatprep.subr.mxu0 %v1604
  %1827 = vmatpush1.msra.mxu0 %v1603
  %1828 = vmatprep.subr.mxu0 %v1601
  %1829 = vmatpush1.msra.mxu0 %v1600
  %1830 = vmatprep.subr.mxu0 %v1598
  %1831 = vmatpush1.msra.mxu0 %v1597
  %1832 = vmatprep.subr.mxu0 %v1595
  %1833 = vmatpush1.msra.mxu0 %v1594
  %1834 = vmatprep.subr.mxu0 %v1592
  %1835 = vmatpush1.msra.mxu0 %v1591
  %1836 = vmatprep.subr.mxu0 %v1589
  %1837 = vmatpush1.msra.mxu0 %v1588
  %1838 = vmatprep.subr.mxu0 %v1586
  %1839 = vmatpush1.msra.mxu0 %v1585
  %1840 = vmatprep.subr.mxu0 %v1679
  %1841 = vmatpush2.msra.mxu0 %v1678
  %1842 = vmatprep.subr.mxu0 %v1676
  %1843 = vmatpush2.msra.mxu0 %v1675
  %1844 = vmatprep.subr.mxu0 %v1673
  %1845 = vmatpush2.msra.mxu0 %v1672
  %1846 = vmatprep.subr.mxu0 %v1670
  %1847 = vmatpush2.msra.mxu0 %v1669
  %1848 = vmatprep.subr.mxu0 %v1667
  %1849 = vmatpush2.msra.mxu0 %v1666
  %1850 = vmatprep.subr.mxu0 %v1664
  %1851 = vmatpush2.msra.mxu0 %v1663
  %1852 = vmatprep.subr.mxu0 %v1661
  %1853 = vmatpush2.msra.mxu0 %v1660
  %1854 = vmatprep.subr.mxu0 %v1658
  %1855 = vmatpush2.msra.mxu0 %v1657
  %1856 = vmatprep.subr.mxu0 %v1655
  %1857 = vmatpush2.msra.mxu0 %v1654
  %1858 = vmatprep.subr.mxu0 %v1652
  %1859 = vmatpush2.msra.mxu0 %v1651
  %1860 = vmatprep.subr.mxu0 %v1649
  %1861 = vmatpush2.msra.mxu0 %v1648
  %1862 = vmatprep.subr.mxu0 %v1646
  %1863 = vmatpush2.msra.mxu0 %v1645
  %1864 = vmatprep.subr.mxu0 %v1643
  %1865 = vmatpush2.msra.mxu0 %v1642
  %1866 = vmatprep.subr.mxu0 %v1640
  %1867 = vmatpush2.msra.mxu0 %v1639
  %1868 = vmatprep.subr.mxu0 %v1637
  %1869 = vmatpush2.msra.mxu0 %v1636
  %1870 = vmatprep.subr.mxu0 %v1634
  %1871 = vmatpush2.msra.mxu0 %v1633
  %1872 = vmatprep.mubr.f32.mxu0 %v1569
  %1873 = vmatmul.mubr.f32.gmra.mxu0 %v1325
  %v1874 = vpop.f32.mrf.mxu0
  %v1875 = vadd.f32 %v1779, %v1874
  %v1876 = vpop.f32.mrf.mxu0
  %v1877 = vadd.f32 %v1783, %v1876
  %1878 = vmatprep.mubr.f32.mxu0 %v1570
  %1879 = vmatmul.mubr.f32.gmra.mxu0 %v1331
  %v1880 = vpop.f32.mrf.mxu0
  %v1881 = vadd.f32 %v1779, %v1880
  %v1882 = vpop.f32.mrf.mxu0
  %v1883 = vadd.f32 %v1783, %v1882
  %1884 = vmatprep.mubr.f32.mxu0 %v1571
  %1885 = vmatmul.mubr.f32.gmra.mxu0 %v1337
  %v1886 = vpop.f32.mrf.mxu0
  %v1887 = vadd.f32 %v1779, %v1886
  %v1888 = vpop.f32.mrf.mxu0
  %v1889 = vadd.f32 %v1783, %v1888
  %1890 = vmatprep.mubr.f32.mxu0 %v1572
  %1891 = vmatmul.mubr.f32.gmra.mxu0 %v1343
  %v1892 = vpop.f32.mrf.mxu0
  %v1893 = vadd.f32 %v1779, %v1892
  %v1894 = vpop.f32.mrf.mxu0
  %v1895 = vadd.f32 %v1783, %v1894
  %1896 = vmatprep.mubr.f32.mxu0 %v1573
  %1897 = vmatmul.mubr.f32.gmra.mxu0 %v1349
  %v1898 = vpop.f32.mrf.mxu0
  %v1899 = vadd.f32 %v1779, %v1898
  %v1900 = vpop.f32.mrf.mxu0
  %v1901 = vadd.f32 %v1783, %v1900
  %1902 = vmatprep.mubr.f32.mxu0 %v1574
  %1903 = vmatmul.mubr.f32.gmra.mxu0 %v1355
  %v1904 = vpop.f32.mrf.mxu0
  %v1905 = vadd.f32 %v1779, %v1904
  %v1906 = vpop.f32.mrf.mxu0
  %v1907 = vadd.f32 %v1783, %v1906
  %1908 = vmatprep.mubr.f32.mxu0 %v1575
  %1909 = vmatmul.mubr.f32.gmra.mxu0 %v1361
  %v1910 = vpop.f32.mrf.mxu0
  %v1911 = vadd.f32 %v1779, %v1910
  %v1912 = vpop.f32.mrf.mxu0
  %v1913 = vadd.f32 %v1783, %v1912
  %1914 = vmatprep.mubr.f32.mxu0 %v1576
  %1915 = vmatmul.mubr.f32.gmra.mxu0 %v1367
  %v1916 = vpop.f32.mrf.mxu0
  %v1917 = vadd.f32 %v1779, %v1916
  %v1918 = vpop.f32.mrf.mxu0
  %v1919 = vadd.f32 %v1783, %v1918
  %1920 = vdwg.mxu0
  %1921 = vmatprep.subr.mxu0 %v1727
  %1922 = vmatpush1.msra.mxu0 %v1726
  %1923 = vmatprep.subr.mxu0 %v1724
  %1924 = vmatpush1.msra.mxu0 %v1723
  %1925 = vmatprep.subr.mxu0 %v1721
  %1926 = vmatpush1.msra.mxu0 %v1720
  %1927 = vmatprep.subr.mxu0 %v1718
  %1928 = vmatpush1.msra.mxu0 %v1717
  %1929 = vmatprep.subr.mxu0 %v1715
  %1930 = vmatpush1.msra.mxu0 %v1714
  %1931 = vmatprep.subr.mxu0 %v1712
  %1932 = vmatpush1.msra.mxu0 %v1711
  %1933 = vmatprep.subr.mxu0 %v1709
  %1934 = vmatpush1.msra.mxu0 %v1708
  %1935 = vmatprep.subr.mxu0 %v1706
  %1936 = vmatpush1.msra.mxu0 %v1705
  %1937 = vmatprep.subr.mxu0 %v1703
  %1938 = vmatpush1.msra.mxu0 %v1702
  %1939 = vmatprep.subr.mxu0 %v1700
  %1940 = vmatpush1.msra.mxu0 %v1699
  %1941 = vmatprep.subr.mxu0 %v1697
  %1942 = vmatpush1.msra.mxu0 %v1696
  %1943 = vmatprep.subr.mxu0 %v1694
  %1944 = vmatpush1.msra.mxu0 %v1693
  %1945 = vmatprep.subr.mxu0 %v1691
  %1946 = vmatpush1.msra.mxu0 %v1690
  %1947 = vmatprep.subr.mxu0 %v1688
  %1948 = vmatpush1.msra.mxu0 %v1687
  %1949 = vmatprep.subr.mxu0 %v1685
  %1950 = vmatpush1.msra.mxu0 %v1684
  %1951 = vmatprep.subr.mxu0 %v1682
  %1952 = vmatpush1.msra.mxu0 %v1681
  %1953 = vmatprep.subr.mxu0 0.0
  %1954 = vmatpush2.msra.mxu0 0.0
  %1955 = vmatprep.subr.mxu0 %v1772
  %1956 = vmatpush2.msra.mxu0 %v1771
  %1957 = vmatprep.subr.mxu0 %v1769
  %1958 = vmatpush2.msra.mxu0 %v1768
  %1959 = vmatprep.subr.mxu0 %v1766
  %1960 = vmatpush2.msra.mxu0 %v1765
  %1961 = vmatprep.subr.mxu0 %v1763
  %1962 = vmatpush2.msra.mxu0 %v1762
  %1963 = vmatprep.subr.mxu0 %v1760
  %1964 = vmatpush2.msra.mxu0 %v1759
  %1965 = vmatprep.subr.mxu0 %v1757
  %1966 = vmatpush2.msra.mxu0 %v1756
  %1967 = vmatprep.subr.mxu0 %v1754
  %1968 = vmatpush2.msra.mxu0 %v1753
  %1969 = vmatprep.subr.mxu0 %v1751
  %1970 = vmatpush2.msra.mxu0 %v1750
  %1971 = vmatprep.subr.mxu0 %v1748
  %1972 = vmatpush2.msra.mxu0 %v1747
  %1973 = vmatprep.subr.mxu0 %v1745
  %1974 = vmatpush2.msra.mxu0 %v1744
  %1975 = vmatprep.subr.mxu0 %v1742
  %1976 = vmatpush2.msra.mxu0 %v1741
  %1977 = vmatprep.subr.mxu0 %v1739
  %1978 = vmatpush2.msra.mxu0 %v1738
  %1979 = vmatprep.subr.mxu0 %v1736
  %1980 = vmatpush2.msra.mxu0 %v1735
  %1981 = vmatprep.subr.mxu0 %v1733
  %1982 = vmatpush2.msra.mxu0 %v1732
  %1983 = vmatprep.subr.mxu0 %v1730
  %1984 = vmatpush2.msra.mxu0 %v1729
  %1985 = vmatprep.mubr.f32.mxu0 %v1792
  %1986 = vmatmul.mubr.f32.gmra.mxu0 %v1577
  %v1987 = vpop.f32.mrf.mxu0
  %v1988 = vadd.f32 %v1875, %v1987
  %v1989 = vpop.f32.mrf.mxu0
  %v1990 = vadd.f32 %v1877, %v1989
  %1991 = vmatprep.mubr.f32.mxu0 %v1794
  %1992 = vmatmul.mubr.f32.gmra.mxu0 %v1578
  %v1993 = vpop.f32.mrf.mxu0
  %v1994 = vadd.f32 %v1881, %v1993
  %v1995 = vpop.f32.mrf.mxu0
  %v1996 = vadd.f32 %v1883, %v1995
  %1997 = vmatprep.mubr.f32.mxu0 %v1796
  %1998 = vmatmul.mubr.f32.gmra.mxu0 %v1579
  %v1999 = vpop.f32.mrf.mxu0
  %v2000 = vadd.f32 %v1887, %v1999
  %v2001 = vpop.f32.mrf.mxu0
  %v2002 = vadd.f32 %v1889, %v2001
  %2003 = vmatprep.mubr.f32.mxu0 %v1798
  %2004 = vmatmul.mubr.f32.gmra.mxu0 %v1580
  %v2005 = vpop.f32.mrf.mxu0
  %v2006 = vadd.f32 %v1893, %v2005
  %v2007 = vpop.f32.mrf.mxu0
  %v2008 = vadd.f32 %v1895, %v2007
  %2009 = vmatprep.mubr.f32.mxu0 %v1800
  %2010 = vmatmul.mubr.f32.gmra.mxu0 %v1581
  %v2011 = vpop.f32.mrf.mxu0
  %v2012 = vadd.f32 %v1899, %v2011
  %v2013 = vpop.f32.mrf.mxu0
  %v2014 = vadd.f32 %v1901, %v2013
  %2015 = vmatprep.mubr.f32.mxu0 %v1802
  %2016 = vmatmul.mubr.f32.gmra.mxu0 %v1582
  %v2017 = vpop.f32.mrf.mxu0
  %v2018 = vadd.f32 %v1905, %v2017
  %v2019 = vpop.f32.mrf.mxu0
  %v2020 = vadd.f32 %v1907, %v2019
  %2021 = vmatprep.mubr.f32.mxu0 %v1804
  %2022 = vmatmul.mubr.f32.gmra.mxu0 %v1583
  %v2023 = vpop.f32.mrf.mxu0
  %v2024 = vadd.f32 %v1911, %v2023
  %v2025 = vpop.f32.mrf.mxu0
  %v2026 = vadd.f32 %v1913, %v2025
  %2027 = vmatprep.mubr.f32.mxu0 %v1806
  %2028 = vmatmul.mubr.f32.gmra.mxu0 %v1584
  %v2029 = vpop.f32.mrf.mxu0
  %v2030 = vadd.f32 %v1917, %v2029
  %v2031 = vpop.f32.mrf.mxu0
  %v2032 = vadd.f32 %v1919, %v2031
  %2033 = vdwg.mxu0
  %2034 = vmatprep.subr.mxu0 0.0
  %2035 = vmatpush1.msra.mxu0 %v1632
  %2036 = vmatprep.subr.mxu0 0.0
  %2037 = vmatpush1.msra.mxu0 %v1629
  %2038 = vmatprep.subr.mxu0 0.0
  %2039 = vmatpush1.msra.mxu0 %v1626
  %2040 = vmatprep.subr.mxu0 0.0
  %2041 = vmatpush1.msra.mxu0 %v1623
  %2042 = vmatprep.subr.mxu0 0.0
  %2043 = vmatpush1.msra.mxu0 %v1620
  %2044 = vmatprep.subr.mxu0 0.0
  %2045 = vmatpush1.msra.mxu0 %v1617
  %2046 = vmatprep.subr.mxu0 0.0
  %2047 = vmatpush1.msra.mxu0 %v1614
  %2048 = vmatprep.subr.mxu0 0.0
  %2049 = vmatpush1.msra.mxu0 %v1611
  %2050 = vmatprep.subr.mxu0 0.0
  %2051 = vmatpush1.msra.mxu0 %v1608
  %2052 = vmatprep.subr.mxu0 0.0
  %2053 = vmatpush1.msra.mxu0 %v1605
  %2054 = vmatprep.subr.mxu0 0.0
  %2055 = vmatpush1.msra.mxu0 %v1602
  %2056 = vmatprep.subr.mxu0 0.0
  %2057 = vmatpush1.msra.mxu0 %v1599
  %2058 = vmatprep.subr.mxu0 0.0
  %2059 = vmatpush1.msra.mxu0 %v1596
  %2060 = vmatprep.subr.mxu0 0.0
  %2061 = vmatpush1.msra.mxu0 %v1593
  %2062 = vmatprep.subr.mxu0 0.0
  %2063 = vmatpush1.msra.mxu0 %v1590
  %2064 = vmatprep.subr.mxu0 0.0
  %2065 = vmatpush1.msra.mxu0 %v1587
  %2066 = vmatprep.subr.mxu0 0.0
  %2067 = vmatpush2.msra.mxu0 %v1680
  %2068 = vmatprep.subr.mxu0 0.0
  %2069 = vmatpush2.msra.mxu0 %v1677
  %2070 = vmatprep.subr.mxu0 0.0
  %2071 = vmatpush2.msra.mxu0 %v1674
  %2072 = vmatprep.subr.mxu0 0.0
  %2073 = vmatpush2.msra.mxu0 %v1671
  %2074 = vmatprep.subr.mxu0 0.0
  %2075 = vmatpush2.msra.mxu0 %v1668
  %2076 = vmatprep.subr.mxu0 0.0
  %2077 = vmatpush2.msra.mxu0 %v1665
  %2078 = vmatprep.subr.mxu0 0.0
  %2079 = vmatpush2.msra.mxu0 %v1662
  %2080 = vmatprep.subr.mxu0 0.0
  %2081 = vmatpush2.msra.mxu0 %v1659
  %2082 = vmatprep.subr.mxu0 0.0
  %2083 = vmatpush2.msra.mxu0 %v1656
  %2084 = vmatprep.subr.mxu0 0.0
  %2085 = vmatpush2.msra.mxu0 %v1653
  %2086 = vmatprep.subr.mxu0 0.0
  %2087 = vmatpush2.msra.mxu0 %v1650
  %2088 = vmatprep.subr.mxu0 0.0
  %2089 = vmatpush2.msra.mxu0 %v1647
  %2090 = vmatprep.subr.mxu0 0.0
  %2091 = vmatpush2.msra.mxu0 %v1644
  %2092 = vmatprep.subr.mxu0 0.0
  %2093 = vmatpush2.msra.mxu0 %v1641
  %2094 = vmatprep.subr.mxu0 0.0
  %2095 = vmatpush2.msra.mxu0 %v1638
  %2096 = vmatprep.subr.mxu0 0.0
  %2097 = vmatpush2.msra.mxu0 %v1635
  %2098 = vmatprep.mubr.f32.mxu0 %v1569
  %2099 = vmatmul.mubr.f32.gmra.mxu0 %v1325
  %v2100 = vpop.f32.mrf.mxu0
  %v2101 = vadd.f32 %v1787, %v2100
  %v2102 = vpop.f32.mrf.mxu0
  %2103 = vmatprep.mubr.f32.mxu0 %v1570
  %2104 = vmatmul.mubr.f32.gmra.mxu0 %v1331
  %v2105 = vpop.f32.mrf.mxu0
  %v2106 = vadd.f32 %v1787, %v2105
  %v2107 = vpop.f32.mrf.mxu0
  %2108 = vmatprep.mubr.f32.mxu0 %v1571
  %2109 = vmatmul.mubr.f32.gmra.mxu0 %v1337
  %v2110 = vpop.f32.mrf.mxu0
  %v2111 = vadd.f32 %v1787, %v2110
  %v2112 = vpop.f32.mrf.mxu0
  %2113 = vmatprep.mubr.f32.mxu0 %v1572
  %2114 = vmatmul.mubr.f32.gmra.mxu0 %v1343
  %v2115 = vpop.f32.mrf.mxu0
  %v2116 = vadd.f32 %v1787, %v2115
  %v2117 = vpop.f32.mrf.mxu0
  %2118 = vmatprep.mubr.f32.mxu0 %v1573
  %2119 = vmatmul.mubr.f32.gmra.mxu0 %v1349
  %v2120 = vpop.f32.mrf.mxu0
  %v2121 = vadd.f32 %v1787, %v2120
  %v2122 = vpop.f32.mrf.mxu0
  %2123 = vmatprep.mubr.f32.mxu0 %v1574
  %2124 = vmatmul.mubr.f32.gmra.mxu0 %v1355
  %v2125 = vpop.f32.mrf.mxu0
  %v2126 = vadd.f32 %v1787, %v2125
  %v2127 = vpop.f32.mrf.mxu0
  %2128 = vmatprep.mubr.f32.mxu0 %v1575
  %2129 = vmatmul.mubr.f32.gmra.mxu0 %v1361
  %v2130 = vpop.f32.mrf.mxu0
  %v2131 = vadd.f32 %v1787, %v2130
  %v2132 = vpop.f32.mrf.mxu0
  %2133 = vmatprep.mubr.f32.mxu0 %v1576
  %2134 = vmatmul.mubr.f32.gmra.mxu0 %v1367
  %v2135 = vpop.f32.mrf.mxu0
  %v2136 = vadd.f32 %v1787, %v2135
  %v2137 = vpop.f32.mrf.mxu0
  %2138 = vdwg.mxu0
  %2139 = vmatprep.subr.mxu0 0.0
  %2140 = vmatpush1.msra.mxu0 %v1728
  %2141 = vmatprep.subr.mxu0 0.0
  %2142 = vmatpush1.msra.mxu0 %v1725
  %2143 = vmatprep.subr.mxu0 0.0
  %2144 = vmatpush1.msra.mxu0 %v1722
  %2145 = vmatprep.subr.mxu0 0.0
  %2146 = vmatpush1.msra.mxu0 %v1719
  %2147 = vmatprep.subr.mxu0 0.0
  %2148 = vmatpush1.msra.mxu0 %v1716
  %2149 = vmatprep.subr.mxu0 0.0
  %2150 = vmatpush1.msra.mxu0 %v1713
  %2151 = vmatprep.subr.mxu0 0.0
  %2152 = vmatpush1.msra.mxu0 %v1710
  %2153 = vmatprep.subr.mxu0 0.0
  %2154 = vmatpush1.msra.mxu0 %v1707
  %2155 = vmatprep.subr.mxu0 0.0
  %2156 = vmatpush1.msra.mxu0 %v1704
  %2157 = vmatprep.subr.mxu0 0.0
  %2158 = vmatpush1.msra.mxu0 %v1701
  %2159 = vmatprep.subr.mxu0 0.0
  %2160 = vmatpush1.msra.mxu0 %v1698
  %2161 = vmatprep.subr.mxu0 0.0
  %2162 = vmatpush1.msra.mxu0 %v1695
  %2163 = vmatprep.subr.mxu0 0.0
  %2164 = vmatpush1.msra.mxu0 %v1692
  %2165 = vmatprep.subr.mxu0 0.0
  %2166 = vmatpush1.msra.mxu0 %v1689
  %2167 = vmatprep.subr.mxu0 0.0
  %2168 = vmatpush1.msra.mxu0 %v1686
  %2169 = vmatprep.subr.mxu0 0.0
  %2170 = vmatpush1.msra.mxu0 %v1683
  %2171 = vmatprep.subr.mxu0 0.0
  %2172 = vmatpush2.msra.mxu0 0.0
  %2173 = vmatprep.subr.mxu0 0.0
  %2174 = vmatpush2.msra.mxu0 %v1773
  %2175 = vmatprep.subr.mxu0 0.0
  %2176 = vmatpush2.msra.mxu0 %v1770
  %2177 = vmatprep.subr.mxu0 0.0
  %2178 = vmatpush2.msra.mxu0 %v1767
  %2179 = vmatprep.subr.mxu0 0.0
  %2180 = vmatpush2.msra.mxu0 %v1764
  %2181 = vmatprep.subr.mxu0 0.0
  %2182 = vmatpush2.msra.mxu0 %v1761
  %2183 = vmatprep.subr.mxu0 0.0
  %2184 = vmatpush2.msra.mxu0 %v1758
  %2185 = vmatprep.subr.mxu0 0.0
  %2186 = vmatpush2.msra.mxu0 %v1755
  %2187 = vmatprep.subr.mxu0 0.0
  %2188 = vmatpush2.msra.mxu0 %v1752
  %2189 = vmatprep.subr.mxu0 0.0
  %2190 = vmatpush2.msra.mxu0 %v1749
  %2191 = vmatprep.subr.mxu0 0.0
  %2192 = vmatpush2.msra.mxu0 %v1746
  %2193 = vmatprep.subr.mxu0 0.0
  %2194 = vmatpush2.msra.mxu0 %v1743
  %2195 = vmatprep.subr.mxu0 0.0
  %2196 = vmatpush2.msra.mxu0 %v1740
  %2197 = vmatprep.subr.mxu0 0.0
  %2198 = vmatpush2.msra.mxu0 %v1737
  %2199 = vmatprep.subr.mxu0 0.0
  %2200 = vmatpush2.msra.mxu0 %v1734
  %2201 = vmatprep.subr.mxu0 0.0
  %2202 = vmatpush2.msra.mxu0 %v1731
  %2203 = vmatprep.mubr.f32.mxu0 %v1792
  %2204 = vmatmul.mubr.f32.gmra.mxu0 %v1577
  %v2205 = vpop.f32.mrf.mxu0
  %v2206 = vadd.f32 %v2101, %v2205
  %v2207 = vpop.f32.mrf.mxu0
  %2208 = vmatprep.mubr.f32.mxu0 %v1794
  %2209 = vmatmul.mubr.f32.gmra.mxu0 %v1578
  %v2210 = vpop.f32.mrf.mxu0
  %v2211 = vadd.f32 %v2106, %v2210
  %v2212 = vpop.f32.mrf.mxu0
  %2213 = vmatprep.mubr.f32.mxu0 %v1796
  %2214 = vmatmul.mubr.f32.gmra.mxu0 %v1579
  %v2215 = vpop.f32.mrf.mxu0
  %v2216 = vadd.f32 %v2111, %v2215
  %v2217 = vpop.f32.mrf.mxu0
  %2218 = vmatprep.mubr.f32.mxu0 %v1798
  %2219 = vmatmul.mubr.f32.gmra.mxu0 %v1580
  %v2220 = vpop.f32.mrf.mxu0
  %v2221 = vadd.f32 %v2116, %v2220
  %v2222 = vpop.f32.mrf.mxu0
  %2223 = vmatprep.mubr.f32.mxu0 %v1800
  %2224 = vmatmul.mubr.f32.gmra.mxu0 %v1581
  %v2225 = vpop.f32.mrf.mxu0
  %v2226 = vadd.f32 %v2121, %v2225
  %v2227 = vpop.f32.mrf.mxu0
  %2228 = vmatprep.mubr.f32.mxu0 %v1802
  %2229 = vmatmul.mubr.f32.gmra.mxu0 %v1582
  %v2230 = vpop.f32.mrf.mxu0
  %v2231 = vadd.f32 %v2126, %v2230
  %v2232 = vpop.f32.mrf.mxu0
  %2233 = vmatprep.mubr.f32.mxu0 %v1804
  %2234 = vmatmul.mubr.f32.gmra.mxu0 %v1583
  %v2235 = vpop.f32.mrf.mxu0
  %v2236 = vadd.f32 %v2131, %v2235
  %v2237 = vpop.f32.mrf.mxu0
  %2238 = vmatprep.mubr.f32.mxu0 %v1806
  %2239 = vmatmul.mubr.f32.gmra.mxu0 %v1584
  %v2240 = vpop.f32.mrf.mxu0
  %v2241 = vadd.f32 %v2136, %v2240
  %v2242 = vpop.f32.mrf.mxu0
  %2243 = vdwg.mxu0
  %v2244 = vmax.f32 %v1988, 0.0
  %v2245 = vmax.f32 %v1990, 0.0
  %v2246 = vmax.f32 %v2206, 0.0
  %v2247 = vmax.f32 %v1994, 0.0
  %v2248 = vmax.f32 %v1996, 0.0
  %v2249 = vmax.f32 %v2211, 0.0
  %v2250 = vmax.f32 %v2000, 0.0
  %v2251 = vmax.f32 %v2002, 0.0
  %v2252 = vmax.f32 %v2216, 0.0
  %v2253 = vmax.f32 %v2006, 0.0
  %v2254 = vmax.f32 %v2008, 0.0
  %v2255 = vmax.f32 %v2221, 0.0
  %v2256 = vmax.f32 %v2012, 0.0
  %v2257 = vmax.f32 %v2014, 0.0
  %v2258 = vmax.f32 %v2226, 0.0
  %v2259 = vmax.f32 %v2018, 0.0
  %v2260 = vmax.f32 %v2020, 0.0
  %v2261 = vmax.f32 %v2231, 0.0
  %v2262 = vmax.f32 %v2024, 0.0
  %v2263 = vmax.f32 %v2026, 0.0
  %v2264 = vmax.f32 %v2236, 0.0
  %v2265 = vmax.f32 %v2030, 0.0
  %v2266 = vmax.f32 %v2032, 0.0
  %v2267 = vmax.f32 %v2241, 0.0
  %2284 = vrot.lane.b32.xlu0 %v2245, 96
  %v2285 = vpop.permute.xlu0 %2284
  %2286 = vrot.lane.b32.xlu0 %v2246, 96
  %v2287 = vpop.permute.xlu0 %2286
  %2288 = vrot.lane.b32.xlu0 %v2248, 96
  %v2289 = vpop.permute.xlu0 %2288
  %2290 = vrot.lane.b32.xlu0 %v2249, 96
  %v2291 = vpop.permute.xlu0 %2290
  %2292 = vrot.lane.b32.xlu0 %v2251, 96
  %v2293 = vpop.permute.xlu0 %2292
  %2294 = vrot.lane.b32.xlu0 %v2252, 96
  %v2295 = vpop.permute.xlu0 %2294
  %2296 = vrot.lane.b32.xlu0 %v2254, 96
  %v2297 = vpop.permute.xlu0 %2296
  %2298 = vrot.lane.b32.xlu0 %v2255, 96
  %v2299 = vpop.permute.xlu0 %2298
  %2300 = vrot.lane.b32.xlu0 %v2257, 96
  %v2301 = vpop.permute.xlu0 %2300
  %2302 = vrot.lane.b32.xlu0 %v2258, 96
  %v2303 = vpop.permute.xlu0 %2302
  %2304 = vrot.lane.b32.xlu0 %v2260, 96
  %v2305 = vpop.permute.xlu0 %2304
  %2306 = vrot.lane.b32.xlu0 %v2261, 96
  %v2307 = vpop.permute.xlu0 %2306
  %2308 = vrot.lane.b32.xlu0 %v2263, 96
  %v2309 = vpop.permute.xlu0 %2308
  %2310 = vrot.lane.b32.xlu0 %v2264, 96
  %v2311 = vpop.permute.xlu0 %2310
  %2312 = vrot.lane.b32.xlu0 %v2266, 96
  %v2313 = vpop.permute.xlu0 %2312
  %2314 = vrot.lane.b32.xlu0 %v2267, 96
  %v2315 = vpop.permute.xlu0 %2314
  %vm2316 = vcmask 785408
  %v2317 = vsel %vm2316, %v2285, %v2287
  %v2318 = vsel %vm2316, %v2289, %v2291
  %v2319 = vsel %vm2316, %v2293, %v2295
  %v2320 = vsel %vm2316, %v2297, %v2299
  %v2321 = vsel %vm2316, %v2301, %v2303
  %v2322 = vsel %vm2316, %v2305, %v2307
  %v2323 = vsel %vm2316, %v2309, %v2311
  %v2324 = vsel %vm2316, %v2313, %v2315
  %v2341 = vmax.f32 %v2244, %v2317
  %v2342 = vmax.f32 %v2245, %v2287
  %v2343 = vmax.f32 %v2247, %v2318
  %v2344 = vmax.f32 %v2248, %v2291
  %v2345 = vmax.f32 %v2250, %v2319
  %v2346 = vmax.f32 %v2251, %v2295
  %v2347 = vmax.f32 %v2253, %v2320
  %v2348 = vmax.f32 %v2254, %v2299
  %v2349 = vmax.f32 %v2256, %v2321
  %v2350 = vmax.f32 %v2257, %v2303
  %v2351 = vmax.f32 %v2259, %v2322
  %v2352 = vmax.f32 %v2260, %v2307
  %v2353 = vmax.f32 %v2262, %v2323
  %v2354 = vmax.f32 %v2263, %v2311
  %v2355 = vmax.f32 %v2265, %v2324
  %v2356 = vmax.f32 %v2266, %v2315
  %2373 = vrot.lane.b32.xlu0 %v2341, 112
  %v2374 = vpop.permute.xlu0 %2373
  %2375 = vrot.lane.b32.xlu0 %v2342, 112
  %v2376 = vpop.permute.xlu0 %2375
  %2377 = vrot.lane.b32.xlu0 %v2343, 112
  %v2378 = vpop.permute.xlu0 %2377
  %2379 = vrot.lane.b32.xlu0 %v2344, 112
  %v2380 = vpop.permute.xlu0 %2379
  %2381 = vrot.lane.b32.xlu0 %v2345, 112
  %v2382 = vpop.permute.xlu0 %2381
  %2383 = vrot.lane.b32.xlu0 %v2346, 112
  %v2384 = vpop.permute.xlu0 %2383
  %2385 = vrot.lane.b32.xlu0 %v2347, 112
  %v2386 = vpop.permute.xlu0 %2385
  %2387 = vrot.lane.b32.xlu0 %v2348, 112
  %v2388 = vpop.permute.xlu0 %2387
  %2389 = vrot.lane.b32.xlu0 %v2349, 112
  %v2390 = vpop.permute.xlu0 %2389
  %2391 = vrot.lane.b32.xlu0 %v2350, 112
  %v2392 = vpop.permute.xlu0 %2391
  %2393 = vrot.lane.b32.xlu0 %v2351, 112
  %v2394 = vpop.permute.xlu0 %2393
  %2395 = vrot.lane.b32.xlu0 %v2352, 112
  %v2396 = vpop.permute.xlu0 %2395
  %2397 = vrot.lane.b32.xlu0 %v2353, 112
  %v2398 = vpop.permute.xlu0 %2397
  %2399 = vrot.lane.b32.xlu0 %v2354, 112
  %v2400 = vpop.permute.xlu0 %2399
  %2401 = vrot.lane.b32.xlu0 %v2355, 112
  %v2402 = vpop.permute.xlu0 %2401
  %2403 = vrot.lane.b32.xlu0 %v2356, 112
  %v2404 = vpop.permute.xlu0 %2403
  %vm2405 = vcmask 916480
  %v2406 = vsel %vm2405, %v2374, %v2376
  %v2407 = vsel %vm2405, %v2378, %v2380
  %v2408 = vsel %vm2405, %v2382, %v2384
  %v2409 = vsel %vm2405, %v2386, %v2388
  %v2410 = vsel %vm2405, %v2390, %v2392
  %v2411 = vsel %vm2405, %v2394, %v2396
  %v2412 = vsel %vm2405, %v2398, %v2400
  %v2413 = vsel %vm2405, %v2402, %v2404
  %2430 = vrot.lane.b32.xlu0 %v2341, 16
  %v2431 = vpop.permute.xlu0 %2430
  %2432 = vrot.lane.b32.xlu0 %v2343, 16
  %v2433 = vpop.permute.xlu0 %2432
  %2434 = vrot.lane.b32.xlu0 %v2345, 16
  %v2435 = vpop.permute.xlu0 %2434
  %2436 = vrot.lane.b32.xlu0 %v2347, 16
  %v2437 = vpop.permute.xlu0 %2436
  %2438 = vrot.lane.b32.xlu0 %v2349, 16
  %v2439 = vpop.permute.xlu0 %2438
  %2440 = vrot.lane.b32.xlu0 %v2351, 16
  %v2441 = vpop.permute.xlu0 %2440
  %2442 = vrot.lane.b32.xlu0 %v2353, 16
  %v2443 = vpop.permute.xlu0 %2442
  %2444 = vrot.lane.b32.xlu0 %v2355, 16
  %v2445 = vpop.permute.xlu0 %2444
  %vm2454 = vcmask 130048
  %v2455 = vsel %vm2454, %v2376, %v2431
  %v2456 = vsel %vm2454, %v2380, %v2433
  %v2457 = vsel %vm2454, %v2384, %v2435
  %v2458 = vsel %vm2454, %v2388, %v2437
  %v2459 = vsel %vm2454, %v2392, %v2439
  %v2460 = vsel %vm2454, %v2396, %v2441
  %v2461 = vsel %vm2454, %v2400, %v2443
  %v2462 = vsel %vm2454, %v2404, %v2445
  %v2463 = vmax.f32 %v2341, %v2406
  %v2464 = vmax.f32 %v2342, %v2455
  %v2465 = vmax.f32 %v2343, %v2407
  %v2466 = vmax.f32 %v2344, %v2456
  %v2467 = vmax.f32 %v2345, %v2408
  %v2468 = vmax.f32 %v2346, %v2457
  %v2469 = vmax.f32 %v2347, %v2409
  %v2470 = vmax.f32 %v2348, %v2458
  %v2471 = vmax.f32 %v2349, %v2410
  %v2472 = vmax.f32 %v2350, %v2459
  %v2473 = vmax.f32 %v2351, %v2411
  %v2474 = vmax.f32 %v2352, %v2460
  %v2475 = vmax.f32 %v2353, %v2412
  %v2476 = vmax.f32 %v2354, %v2461
  %v2477 = vmax.f32 %v2355, %v2413
  %v2478 = vmax.f32 %v2356, %v2462
  %v2479 = vld [vmem:[%s6] sm:$0xff]
  %v2480 = vld [vmem:[%s6 + $0x8] sm:$0xff]
  %v2481 = vld [vmem:[%s6 + $0x10] sm:$0xff]
  %v2482 = vld [vmem:[%s6 + $0x18] sm:$0xff]
  %v2483 = vld [vmem:[%s6 + $0x20] sm:$0xff]
  %v2484 = vld [vmem:[%s6 + $0x28] sm:$0xff]
  %v2485 = vld [vmem:[%s6 + $0x30] sm:$0xff]
  %v2486 = vld [vmem:[%s6 + $0x38] sm:$0xff]
  %v2487 = vld [vmem:[%s6 + $0x40] sm:$0xff]
  %v2488 = vld [vmem:[%s6 + $0x48] sm:$0xff]
  %v2489 = vld [vmem:[%s6 + $0x50] sm:$0xff]
  %v2490 = vld [vmem:[%s6 + $0x58] sm:$0xff]
  %v2491 = vld [vmem:[%s6 + $0x60] sm:$0xff]
  %v2492 = vld [vmem:[%s6 + $0x68] sm:$0xff]
  %v2493 = vld [vmem:[%s6 + $0x70] sm:$0xff]
  %v2494 = vld [vmem:[%s6 + $0x78] sm:$0xff]
  %v2495 = vld [vmem:[%s6 + $0x80] sm:$0xff]
  %v2496 = vld [vmem:[%s6 + $0x88] sm:$0xff]
  %v2497 = vld [vmem:[%s6 + $0x90] sm:$0xff]
  %v2498 = vld [vmem:[%s6 + $0x98] sm:$0xff]
  %vm2499 = vcmask 261120
  %v2501 = vsel %vm2499, %v2464, 0
  %v2504 = vsel %vm2499, %v2466, 0
  %v2507 = vsel %vm2499, %v2468, 0
  %v2510 = vsel %vm2499, %v2470, 0
  %v2513 = vsel %vm2499, %v2472, 0
  %v2516 = vsel %vm2499, %v2474, 0
  %v2519 = vsel %vm2499, %v2476, 0
  %v2522 = vsel %vm2499, %v2478, 0
  %2524 = vmatprep.subr.mxu0 0.0
  %2525 = vmatpush1.msra.mxu0 %v2494
  %2526 = vmatprep.subr.mxu0 0.0
  %2527 = vmatpush1.msra.mxu0 %v2493
  %2528 = vmatprep.subr.mxu0 0.0
  %2529 = vmatpush1.msra.mxu0 %v2492
  %2530 = vmatprep.subr.mxu0 0.0
  %2531 = vmatpush1.msra.mxu0 %v2491
  %2532 = vmatprep.subr.mxu0 0.0
  %2533 = vmatpush1.msra.mxu0 %v2490
  %2534 = vmatprep.subr.mxu0 0.0
  %2535 = vmatpush1.msra.mxu0 %v2489
  %2536 = vmatprep.subr.mxu0 0.0
  %2537 = vmatpush1.msra.mxu0 %v2488
  %2538 = vmatprep.subr.mxu0 0.0
  %2539 = vmatpush1.msra.mxu0 %v2487
  %2540 = vmatprep.subr.mxu0 0.0
  %2541 = vmatpush1.msra.mxu0 %v2486
  %2542 = vmatprep.subr.mxu0 0.0
  %2543 = vmatpush1.msra.mxu0 %v2485
  %2544 = vmatprep.subr.mxu0 0.0
  %2545 = vmatpush1.msra.mxu0 %v2484
  %2546 = vmatprep.subr.mxu0 0.0
  %2547 = vmatpush1.msra.mxu0 %v2483
  %2548 = vmatprep.subr.mxu0 0.0
  %2549 = vmatpush1.msra.mxu0 %v2482
  %2550 = vmatprep.subr.mxu0 0.0
  %2551 = vmatpush1.msra.mxu0 %v2481
  %2552 = vmatprep.subr.mxu0 0.0
  %2553 = vmatpush1.msra.mxu0 %v2480
  %2554 = vmatprep.subr.mxu0 0.0
  %2555 = vmatpush1.msra.mxu0 %v2479
  %2556 = vmatprep.subr.mxu0 0.0
  %2557 = vmatpush2.msra.mxu0 0.0
  %2558 = vmatprep.subr.mxu0 0.0
  %2559 = vmatpush2.msra.mxu0 0.0
  %2560 = vmatprep.subr.mxu0 0.0
  %2561 = vmatpush2.msra.mxu0 0.0
  %2562 = vmatprep.subr.mxu0 0.0
  %2563 = vmatpush2.msra.mxu0 0.0
  %2564 = vmatprep.subr.mxu0 0.0
  %2565 = vmatpush2.msra.mxu0 0.0
  %2566 = vmatprep.subr.mxu0 0.0
  %2567 = vmatpush2.msra.mxu0 0.0
  %2568 = vmatprep.subr.mxu0 0.0
  %2569 = vmatpush2.msra.mxu0 0.0
  %2570 = vmatprep.subr.mxu0 0.0
  %2571 = vmatpush2.msra.mxu0 0.0
  %2572 = vmatprep.subr.mxu0 0.0
  %2573 = vmatpush2.msra.mxu0 0.0
  %2574 = vmatprep.subr.mxu0 0.0
  %2575 = vmatpush2.msra.mxu0 0.0
  %2576 = vmatprep.subr.mxu0 0.0
  %2577 = vmatpush2.msra.mxu0 0.0
  %2578 = vmatprep.subr.mxu0 0.0
  %2579 = vmatpush2.msra.mxu0 0.0
  %2580 = vmatprep.subr.mxu0 0.0
  %2581 = vmatpush2.msra.mxu0 %v2498
  %2582 = vmatprep.subr.mxu0 0.0
  %2583 = vmatpush2.msra.mxu0 %v2497
  %2584 = vmatprep.subr.mxu0 0.0
  %2585 = vmatpush2.msra.mxu0 %v2496
  %2586 = vmatprep.subr.mxu0 0.0
  %2587 = vmatpush2.msra.mxu0 %v2495
  %2588 = vmatprep.mubr.f32.mxu0 %v2501
  %2589 = vmatmul.mubr.f32.gmra.mxu0 %v2463
  %v2590 = vpop.f32.mrf.mxu0
  %v2591 = vadd.f32 0.0, %v2590
  %v2592 = vpop.f32.mrf.mxu0
  %2593 = vmatprep.mubr.f32.mxu0 %v2504
  %2594 = vmatmul.mubr.f32.gmra.mxu0 %v2465
  %v2595 = vpop.f32.mrf.mxu0
  %v2596 = vadd.f32 0.0, %v2595
  %v2597 = vpop.f32.mrf.mxu0
  %2598 = vmatprep.mubr.f32.mxu0 %v2507
  %2599 = vmatmul.mubr.f32.gmra.mxu0 %v2467
  %v2600 = vpop.f32.mrf.mxu0
  %v2601 = vadd.f32 0.0, %v2600
  %v2602 = vpop.f32.mrf.mxu0
  %2603 = vmatprep.mubr.f32.mxu0 %v2510
  %2604 = vmatmul.mubr.f32.gmra.mxu0 %v2469
  %v2605 = vpop.f32.mrf.mxu0
  %v2606 = vadd.f32 0.0, %v2605
  %v2607 = vpop.f32.mrf.mxu0
  %2608 = vmatprep.mubr.f32.mxu0 %v2513
  %2609 = vmatmul.mubr.f32.gmra.mxu0 %v2471
  %v2610 = vpop.f32.mrf.mxu0
  %v2611 = vadd.f32 0.0, %v2610
  %v2612 = vpop.f32.mrf.mxu0
  %2613 = vmatprep.mubr.f32.mxu0 %v2516
  %2614 = vmatmul.mubr.f32.gmra.mxu0 %v2473
  %v2615 = vpop.f32.mrf.mxu0
  %v2616 = vadd.f32 0.0, %v2615
  %v2617 = vpop.f32.mrf.mxu0
  %2618 = vmatprep.mubr.f32.mxu0 %v2519
  %2619 = vmatmul.mubr.f32.gmra.mxu0 %v2475
  %v2620 = vpop.f32.mrf.mxu0
  %v2621 = vadd.f32 0.0, %v2620
  %v2622 = vpop.f32.mrf.mxu0
  %2623 = vmatprep.mubr.f32.mxu0 %v2522
  %2624 = vmatmul.mubr.f32.gmra.mxu0 %v2477
  %v2625 = vpop.f32.mrf.mxu0
  %v2626 = vadd.f32 0.0, %v2625
  %v2627 = vpop.f32.mrf.mxu0
  %2628 = vdwg.mxu0
  %v2637 = vrot.slane %v2591, 1
  %v2638 = vrot.slane %v2596, 1
  %v2639 = vsel %vm60, %v2637, %v2638
  %v2640 = vrot.slane %v2601, 1
  %v2641 = vsel %vm60, %v2638, %v2640
  %v2642 = vrot.slane %v2606, 1
  %v2643 = vsel %vm60, %v2640, %v2642
  %v2644 = vrot.slane %v2611, 1
  %v2645 = vsel %vm60, %v2642, %v2644
  %v2646 = vrot.slane %v2616, 1
  %v2647 = vsel %vm60, %v2644, %v2646
  %v2648 = vrot.slane %v2621, 1
  %v2649 = vsel %vm60, %v2646, %v2648
  %v2650 = vrot.slane %v2626, 1
  %v2651 = vsel %vm60, %v2648, %v2650
  %v2654 = vsel %vm60, %v2650, %v2637
  %v2655 = vrot.slane %v2591, 2
  %v2656 = vrot.slane %v2596, 2
  %v2657 = vsel %vm1423, %v2655, %v2656
  %v2658 = vrot.slane %v2601, 2
  %v2659 = vsel %vm1423, %v2656, %v2658
  %v2660 = vrot.slane %v2606, 2
  %v2661 = vsel %vm1423, %v2658, %v2660
  %v2662 = vrot.slane %v2611, 2
  %v2663 = vsel %vm1423, %v2660, %v2662
  %v2664 = vrot.slane %v2616, 2
  %v2665 = vsel %vm1423, %v2662, %v2664
  %v2666 = vrot.slane %v2621, 2
  %v2667 = vsel %vm1423, %v2664, %v2666
  %v2668 = vrot.slane %v2626, 2
  %v2669 = vsel %vm1423, %v2666, %v2668
  %v2672 = vsel %vm1423, %v2668, %v2655
  %vm2673 = vcmask 1044480
  %v2674 = vrot.slane %v2591, 3
  %v2675 = vrot.slane %v2596, 3
  %v2676 = vsel %vm2673, %v2674, %v2675
  %v2677 = vrot.slane %v2601, 3
  %v2678 = vsel %vm2673, %v2675, %v2677
  %v2679 = vrot.slane %v2606, 3
  %v2680 = vsel %vm2673, %v2677, %v2679
  %v2681 = vrot.slane %v2611, 3
  %v2682 = vsel %vm2673, %v2679, %v2681
  %v2683 = vrot.slane %v2616, 3
  %v2684 = vsel %vm2673, %v2681, %v2683
  %v2685 = vrot.slane %v2621, 3
  %v2686 = vsel %vm2673, %v2683, %v2685
  %v2687 = vrot.slane %v2626, 3
  %v2688 = vsel %vm2673, %v2685, %v2687
  %v2691 = vsel %vm2673, %v2687, %v2674
  %vm2692 = vcmask 1043456
  %v2693 = vrot.slane %v2591, 4
  %v2694 = vrot.slane %v2596, 4
  %v2695 = vsel %vm2692, %v2693, %v2694
  %v2696 = vrot.slane %v2601, 4
  %v2697 = vsel %vm2692, %v2694, %v2696
  %v2698 = vrot.slane %v2606, 4
  %v2699 = vsel %vm2692, %v2696, %v2698
  %v2700 = vrot.slane %v2611, 4
  %v2701 = vsel %vm2692, %v2698, %v2700
  %v2702 = vrot.slane %v2616, 4
  %v2703 = vsel %vm2692, %v2700, %v2702
  %v2704 = vrot.slane %v2621, 4
  %v2705 = vsel %vm2692, %v2702, %v2704
  %v2706 = vrot.slane %v2626, 4
  %v2707 = vsel %vm2692, %v2704, %v2706
  %v2710 = vsel %vm2692, %v2706, %v2693
  %2712 = vrot.lane.b32.xlu0 %v2639, 80
  %v2713 = vpop.permute.xlu0 %2712
  %2714 = vrot.lane.b32.xlu0 %v2641, 80
  %v2715 = vpop.permute.xlu0 %2714
  %2716 = vrot.lane.b32.xlu0 %v2643, 80
  %v2717 = vpop.permute.xlu0 %2716
  %2718 = vrot.lane.b32.xlu0 %v2645, 80
  %v2719 = vpop.permute.xlu0 %2718
  %2720 = vrot.lane.b32.xlu0 %v2647, 80
  %v2721 = vpop.permute.xlu0 %2720
  %2722 = vrot.lane.b32.xlu0 %v2649, 80
  %v2723 = vpop.permute.xlu0 %2722
  %2724 = vrot.lane.b32.xlu0 %v2651, 80
  %v2725 = vpop.permute.xlu0 %2724
  %2726 = vrot.lane.b32.xlu0 %v2654, 80
  %v2727 = vpop.permute.xlu0 %2726
  %2737 = vrot.lane.b32.xlu0 %v2657, 32
  %v2738 = vpop.permute.xlu0 %2737
  %2739 = vrot.lane.b32.xlu0 %v2659, 32
  %v2740 = vpop.permute.xlu0 %2739
  %2741 = vrot.lane.b32.xlu0 %v2661, 32
  %v2742 = vpop.permute.xlu0 %2741
  %2743 = vrot.lane.b32.xlu0 %v2663, 32
  %v2744 = vpop.permute.xlu0 %2743
  %2745 = vrot.lane.b32.xlu0 %v2665, 32
  %v2746 = vpop.permute.xlu0 %2745
  %2747 = vrot.lane.b32.xlu0 %v2667, 32
  %v2748 = vpop.permute.xlu0 %2747
  %2749 = vrot.lane.b32.xlu0 %v2669, 32
  %v2750 = vpop.permute.xlu0 %2749
  %2751 = vrot.lane.b32.xlu0 %v2672, 32
  %v2752 = vpop.permute.xlu0 %2751
  %2762 = vrot.lane.b32.xlu0 %v2676, 112
  %v2763 = vpop.permute.xlu0 %2762
  %2764 = vrot.lane.b32.xlu0 %v2678, 112
  %v2765 = vpop.permute.xlu0 %2764
  %2766 = vrot.lane.b32.xlu0 %v2680, 112
  %v2767 = vpop.permute.xlu0 %2766
  %2768 = vrot.lane.b32.xlu0 %v2682, 112
  %v2769 = vpop.permute.xlu0 %2768
  %2770 = vrot.lane.b32.xlu0 %v2684, 112
  %v2771 = vpop.permute.xlu0 %2770
  %2772 = vrot.lane.b32.xlu0 %v2686, 112
  %v2773 = vpop.permute.xlu0 %2772
  %2774 = vrot.lane.b32.xlu0 %v2688, 112
  %v2775 = vpop.permute.xlu0 %2774
  %2776 = vrot.lane.b32.xlu0 %v2691, 112
  %v2777 = vpop.permute.xlu0 %2776
  %2787 = vrot.lane.b32.xlu0 %v2695, 64
  %v2788 = vpop.permute.xlu0 %2787
  %2789 = vrot.lane.b32.xlu0 %v2697, 64
  %v2790 = vpop.permute.xlu0 %2789
  %2791 = vrot.lane.b32.xlu0 %v2699, 64
  %v2792 = vpop.permute.xlu0 %2791
  %2793 = vrot.lane.b32.xlu0 %v2701, 64
  %v2794 = vpop.permute.xlu0 %2793
  %2795 = vrot.lane.b32.xlu0 %v2703, 64
  %v2796 = vpop.permute.xlu0 %2795
  %2797 = vrot.lane.b32.xlu0 %v2705, 64
  %v2798 = vpop.permute.xlu0 %2797
  %2799 = vrot.lane.b32.xlu0 %v2707, 64
  %v2800 = vpop.permute.xlu0 %2799
  %2801 = vrot.lane.b32.xlu0 %v2710, 64
  %v2802 = vpop.permute.xlu0 %2801
  %v2811 = vsel %vm1120, %v2591, %v2713
  %v2812 = vsel %vm1120, %v2596, %v2715
  %v2813 = vsel %vm1120, %v2601, %v2717
  %v2814 = vsel %vm1120, %v2606, %v2719
  %v2815 = vsel %vm1120, %v2611, %v2721
  %v2816 = vsel %vm1120, %v2616, %v2723
  %v2817 = vsel %vm1120, %v2621, %v2725
  %v2818 = vsel %vm1120, %v2626, %v2727
  %v2819 = vsel %vm2499, %v2713, %v2738
  %v2820 = vsel %vm2499, %v2715, %v2740
  %v2821 = vsel %vm2499, %v2717, %v2742
  %v2822 = vsel %vm2499, %v2719, %v2744
  %v2823 = vsel %vm2499, %v2721, %v2746
  %v2824 = vsel %vm2499, %v2723, %v2748
  %v2825 = vsel %vm2499, %v2725, %v2750
  %v2826 = vsel %vm2499, %v2727, %v2752
  %v2827 = vsel %vm2405, %v2819, %v2763
  %v2828 = vsel %vm2405, %v2820, %v2765
  %v2829 = vsel %vm2405, %v2821, %v2767
  %v2830 = vsel %vm2405, %v2822, %v2769
  %v2831 = vsel %vm2405, %v2823, %v2771
  %v2832 = vsel %vm2405, %v2824, %v2773
  %v2833 = vsel %vm2405, %v2825, %v2775
  %v2834 = vsel %vm2405, %v2826, %v2777
  %vm2835 = vcmask 523264
  %v2836 = vsel %vm2835, %v2763, %v2788
  %v2837 = vsel %vm2835, %v2765, %v2790
  %v2838 = vsel %vm2835, %v2767, %v2792
  %v2839 = vsel %vm2835, %v2769, %v2794
  %v2840 = vsel %vm2835, %v2771, %v2796
  %v2841 = vsel %vm2835, %v2773, %v2798
  %v2842 = vsel %vm2835, %v2775, %v2800
  %v2843 = vsel %vm2835, %v2777, %v2802
  %v2844 = vld [vmem:[%s7] sm:$0xff]
  %v2845 = vld [vmem:[%s7 + $0x8] sm:$0xff]
  %v2846 = vld [vmem:[%s7 + $0x10] sm:$0xff]
  %v2847 = vld [vmem:[%s7 + $0x18] sm:$0xff]
  %v2848 = vld [vmem:[%s7 + $0x20] sm:$0xff]
  %v2849 = vld [vmem:[%s7 + $0x28] sm:$0xff]
  %v2850 = vld [vmem:[%s7 + $0x30] sm:$0xff]
  %v2851 = vld [vmem:[%s7 + $0x38] sm:$0xff]
  %v2852 = vld [vmem:[%s7 + $0x40] sm:$0xff]
  %v2853 = vld [vmem:[%s7 + $0x48] sm:$0xff]
  %v2854 = vld [vmem:[%s7 + $0x50] sm:$0xff]
  %v2855 = vld [vmem:[%s7 + $0x58] sm:$0xff]
  %v2856 = vld [vmem:[%s7 + $0x60] sm:$0xff]
  %v2857 = vld [vmem:[%s7 + $0x68] sm:$0xff]
  %v2858 = vld [vmem:[%s7 + $0x70] sm:$0xff]
  %v2859 = vld [vmem:[%s7 + $0x78] sm:$0xff]
  %v2860 = vld [vmem:[%s7 + $0x80] sm:$0xff]
  %v2861 = vld [vmem:[%s7 + $0x88] sm:$0xff]
  %v2862 = vld [vmem:[%s7 + $0x90] sm:$0xff]
  %v2863 = vld [vmem:[%s7 + $0x98] sm:$0xff]
  %v2864 = vld [vmem:[%s7 + $0xa0] sm:$0xff]
  %v2865 = vld [vmem:[%s7 + $0xa8] sm:$0xff]
  %v2866 = vld [vmem:[%s7 + $0xb0] sm:$0xff]
  %v2867 = vld [vmem:[%s7 + $0xb8] sm:$0xff]
  %v2868 = vld [vmem:[%s7 + $0xc0] sm:$0xff]
  %v2869 = vld [vmem:[%s7 + $0xc8] sm:$0xff]
  %v2870 = vld [vmem:[%s7 + $0xd0] sm:$0xff]
  %v2871 = vld [vmem:[%s7 + $0xd8] sm:$0xff]
  %v2872 = vld [vmem:[%s7 + $0xe0] sm:$0xff]
  %v2873 = vld [vmem:[%s7 + $0xe8] sm:$0xff]
  %v2874 = vld [vmem:[%s7 + $0xf0] sm:$0xff]
  %v2875 = vld [vmem:[%s7 + $0xf8] sm:$0xff]
  %v2876 = vld [vmem:[%s7 + $0x100] sm:$0xff]
  %v2877 = vld [vmem:[%s7 + $0x108] sm:$0xff]
  %v2878 = vld [vmem:[%s7 + $0x110] sm:$0xff]
  %v2879 = vld [vmem:[%s7 + $0x118] sm:$0xff]
  %v2880 = vld [vmem:[%s7 + $0x120] sm:$0xff]
  %v2881 = vld [vmem:[%s7 + $0x128] sm:$0xff]
  %v2882 = vld [vmem:[%s7 + $0x130] sm:$0xff]
  %v2883 = vld [vmem:[%s7 + $0x138] sm:$0xff]
  %v2884 = vld [vmem:[%s7 + $0x140] sm:$0xff]
  %v2885 = vld [vmem:[%s7 + $0x148] sm:$0xff]
  %v2886 = vld [vmem:[%s7 + $0x150] sm:$0xff]
  %v2887 = vld [vmem:[%s7 + $0x158] sm:$0xff]
  %v2888 = vld [vmem:[%s7 + $0x160] sm:$0xff]
  %v2889 = vld [vmem:[%s7 + $0x168] sm:$0xff]
  %v2890 = vld [vmem:[%s7 + $0x170] sm:$0xff]
  %v2891 = vld [vmem:[%s7 + $0x178] sm:$0xff]
  %v2892 = vld [vmem:[%s7 + $0x180] sm:$0xff]
  %v2893 = vld [vmem:[%s7 + $0x188] sm:$0xff]
  %v2894 = vld [vmem:[%s8] sm:$0x1]
  %v2896 = vlaneseq
  %v2897 = vshrl.u32 %v2896, 7
  %v2898 = vsub.s32 0, %v2897
  %v2899 = vrot.slane %v2894, %v2898
  %v2901 = vsel %vm2454, %v2788, 0
  %v2903 = vsel %vm2454, %v2790, 0
  %v2905 = vsel %vm2454, %v2792, 0
  %v2907 = vsel %vm2454, %v2794, 0
  %v2909 = vsel %vm2454, %v2796, 0
  %v2911 = vsel %vm2454, %v2798, 0
  %v2913 = vsel %vm2454, %v2800, 0
  %v2915 = vsel %vm2454, %v2802, 0
  %2917 = vmatprep.subr.mxu0 0.0
  %2918 = vmatpush1.msra.mxu0 %v2859
  %2919 = vmatprep.subr.mxu0 0.0
  %2920 = vmatpush1.msra.mxu0 %v2858
  %2921 = vmatprep.subr.mxu0 0.0
  %2922 = vmatpush1.msra.mxu0 %v2857
  %2923 = vmatprep.subr.mxu0 0.0
  %2924 = vmatpush1.msra.mxu0 %v2856
  %2925 = vmatprep.subr.mxu0 0.0
  %2926 = vmatpush1.msra.mxu0 %v2855
  %2927 = vmatprep.subr.mxu0 0.0
  %2928 = vmatpush1.msra.mxu0 %v2854
  %2929 = vmatprep.subr.mxu0 0.0
  %2930 = vmatpush1.msra.mxu0 %v2853
  %2931 = vmatprep.subr.mxu0 0.0
  %2932 = vmatpush1.msra.mxu0 %v2852
  %2933 = vmatprep.subr.mxu0 0.0
  %2934 = vmatpush1.msra.mxu0 %v2851
  %2935 = vmatprep.subr.mxu0 0.0
  %2936 = vmatpush1.msra.mxu0 %v2850
  %2937 = vmatprep.subr.mxu0 0.0
  %2938 = vmatpush1.msra.mxu0 %v2849
  %2939 = vmatprep.subr.mxu0 0.0
  %2940 = vmatpush1.msra.mxu0 %v2848
  %2941 = vmatprep.subr.mxu0 0.0
  %2942 = vmatpush1.msra.mxu0 %v2847
  %2943 = vmatprep.subr.mxu0 0.0
  %2944 = vmatpush1.msra.mxu0 %v2846
  %2945 = vmatprep.subr.mxu0 0.0
  %2946 = vmatpush1.msra.mxu0 %v2845
  %2947 = vmatprep.subr.mxu0 0.0
  %2948 = vmatpush1.msra.mxu0 %v2844
  %2949 = vmatprep.subr.mxu0 0.0
  %2950 = vmatpush2.msra.mxu0 %v2875
  %2951 = vmatprep.subr.mxu0 0.0
  %2952 = vmatpush2.msra.mxu0 %v2874
  %2953 = vmatprep.subr.mxu0 0.0
  %2954 = vmatpush2.msra.mxu0 %v2873
  %2955 = vmatprep.subr.mxu0 0.0
  %2956 = vmatpush2.msra.mxu0 %v2872
  %2957 = vmatprep.subr.mxu0 0.0
  %2958 = vmatpush2.msra.mxu0 %v2871
  %2959 = vmatprep.subr.mxu0 0.0
  %2960 = vmatpush2.msra.mxu0 %v2870
  %2961 = vmatprep.subr.mxu0 0.0
  %2962 = vmatpush2.msra.mxu0 %v2869
  %2963 = vmatprep.subr.mxu0 0.0
  %2964 = vmatpush2.msra.mxu0 %v2868
  %2965 = vmatprep.subr.mxu0 0.0
  %2966 = vmatpush2.msra.mxu0 %v2867
  %2967 = vmatprep.subr.mxu0 0.0
  %2968 = vmatpush2.msra.mxu0 %v2866
  %2969 = vmatprep.subr.mxu0 0.0
  %2970 = vmatpush2.msra.mxu0 %v2865
  %2971 = vmatprep.subr.mxu0 0.0
  %2972 = vmatpush2.msra.mxu0 %v2864
  %2973 = vmatprep.subr.mxu0 0.0
  %2974 = vmatpush2.msra.mxu0 %v2863
  %2975 = vmatprep.subr.mxu0 0.0
  %2976 = vmatpush2.msra.mxu0 %v2862
  %2977 = vmatprep.subr.mxu0 0.0
  %2978 = vmatpush2.msra.mxu0 %v2861
  %2979 = vmatprep.subr.mxu0 0.0
  %2980 = vmatpush2.msra.mxu0 %v2860
  %2981 = vmatprep.mubr.f32.mxu0 %v2827
  %2982 = vmatmul.mubr.f32.gmra.mxu0 %v2811
  %v2983 = vpop.f32.mrf.mxu0
  %v2984 = vadd.f32 %v2899, %v2983
  %v2985 = vpop.f32.mrf.mxu0
  %2986 = vmatprep.mubr.f32.mxu0 %v2828
  %2987 = vmatmul.mubr.f32.gmra.mxu0 %v2812
  %v2988 = vpop.f32.mrf.mxu0
  %v2989 = vadd.f32 %v2899, %v2988
  %v2990 = vpop.f32.mrf.mxu0
  %2991 = vmatprep.mubr.f32.mxu0 %v2829
  %2992 = vmatmul.mubr.f32.gmra.mxu0 %v2813
  %v2993 = vpop.f32.mrf.mxu0
  %v2994 = vadd.f32 %v2899, %v2993
  %v2995 = vpop.f32.mrf.mxu0
  %2996 = vmatprep.mubr.f32.mxu0 %v2830
  %2997 = vmatmul.mubr.f32.gmra.mxu0 %v2814
  %v2998 = vpop.f32.mrf.mxu0
  %v2999 = vadd.f32 %v2899, %v2998
  %v3000 = vpop.f32.mrf.mxu0
  %3001 = vmatprep.mubr.f32.mxu0 %v2831
  %3002 = vmatmul.mubr.f32.gmra.mxu0 %v2815
  %v3003 = vpop.f32.mrf.mxu0
  %v3004 = vadd.f32 %v2899, %v3003
  %v3005 = vpop.f32.mrf.mxu0
  %3006 = vmatprep.mubr.f32.mxu0 %v2832
  %3007 = vmatmul.mubr.f32.gmra.mxu0 %v2816
  %v3008 = vpop.f32.mrf.mxu0
  %v3009 = vadd.f32 %v2899, %v3008
  %v3010 = vpop.f32.mrf.mxu0
  %3011 = vmatprep.mubr.f32.mxu0 %v2833
  %3012 = vmatmul.mubr.f32.gmra.mxu0 %v2817
  %v3013 = vpop.f32.mrf.mxu0
  %v3014 = vadd.f32 %v2899, %v3013
  %v3015 = vpop.f32.mrf.mxu0
  %3016 = vmatprep.mubr.f32.mxu0 %v2834
  %3017 = vmatmul.mubr.f32.gmra.mxu0 %v2818
  %v3018 = vpop.f32.mrf.mxu0
  %v3019 = vadd.f32 %v2899, %v3018
  %v3020 = vpop.f32.mrf.mxu0
  %3021 = vdwg.mxu0
  %3022 = vmatprep.subr.mxu0 0.0
  %3023 = vmatpush1.msra.mxu0 %v2891
  %3024 = vmatprep.subr.mxu0 0.0
  %3025 = vmatpush1.msra.mxu0 %v2890
  %3026 = vmatprep.subr.mxu0 0.0
  %3027 = vmatpush1.msra.mxu0 %v2889
  %3028 = vmatprep.subr.mxu0 0.0
  %3029 = vmatpush1.msra.mxu0 %v2888
  %3030 = vmatprep.subr.mxu0 0.0
  %3031 = vmatpush1.msra.mxu0 %v2887
  %3032 = vmatprep.subr.mxu0 0.0
  %3033 = vmatpush1.msra.mxu0 %v2886
  %3034 = vmatprep.subr.mxu0 0.0
  %3035 = vmatpush1.msra.mxu0 %v2885
  %3036 = vmatprep.subr.mxu0 0.0
  %3037 = vmatpush1.msra.mxu0 %v2884
  %3038 = vmatprep.subr.mxu0 0.0
  %3039 = vmatpush1.msra.mxu0 %v2883
  %3040 = vmatprep.subr.mxu0 0.0
  %3041 = vmatpush1.msra.mxu0 %v2882
  %3042 = vmatprep.subr.mxu0 0.0
  %3043 = vmatpush1.msra.mxu0 %v2881
  %3044 = vmatprep.subr.mxu0 0.0
  %3045 = vmatpush1.msra.mxu0 %v2880
  %3046 = vmatprep.subr.mxu0 0.0
  %3047 = vmatpush1.msra.mxu0 %v2879
  %3048 = vmatprep.subr.mxu0 0.0
  %3049 = vmatpush1.msra.mxu0 %v2878
  %3050 = vmatprep.subr.mxu0 0.0
  %3051 = vmatpush1.msra.mxu0 %v2877
  %3052 = vmatprep.subr.mxu0 0.0
  %3053 = vmatpush1.msra.mxu0 %v2876
  %3054 = vmatprep.subr.mxu0 0.0
  %3055 = vmatpush2.msra.mxu0 0.0
  %3056 = vmatprep.subr.mxu0 0.0
  %3057 = vmatpush2.msra.mxu0 0.0
  %3058 = vmatprep.subr.mxu0 0.0
  %3059 = vmatpush2.msra.mxu0 0.0
  %3060 = vmatprep.subr.mxu0 0.0
  %3061 = vmatpush2.msra.mxu0 0.0
  %3062 = vmatprep.subr.mxu0 0.0
  %3063 = vmatpush2.msra.mxu0 0.0
  %3064 = vmatprep.subr.mxu0 0.0
  %3065 = vmatpush2.msra.mxu0 0.0
  %3066 = vmatprep.subr.mxu0 0.0
  %3067 = vmatpush2.msra.mxu0 0.0
  %3068 = vmatprep.subr.mxu0 0.0
  %3069 = vmatpush2.msra.mxu0 0.0
  %3070 = vmatprep.subr.mxu0 0.0
  %3071 = vmatpush2.msra.mxu0 0.0
  %3072 = vmatprep.subr.mxu0 0.0
  %3073 = vmatpush2.msra.mxu0 0.0
  %3074 = vmatprep.subr.mxu0 0.0
  %3075 = vmatpush2.msra.mxu0 0.0
  %3076 = vmatprep.subr.mxu0 0.0
  %3077 = vmatpush2.msra.mxu0 0.0
  %3078 = vmatprep.subr.mxu0 0.0
  %3079 = vmatpush2.msra.mxu0 0.0
  %3080 = vmatprep.subr.mxu0 0.0
  %3081 = vmatpush2.msra.mxu0 0.0
  %3082 = vmatprep.subr.mxu0 0.0
  %3083 = vmatpush2.msra.mxu0 %v2893
  %3084 = vmatprep.subr.mxu0 0.0
  %3085 = vmatpush2.msra.mxu0 %v2892
  %3086 = vmatprep.mubr.f32.mxu0 %v2901
  %3087 = vmatmul.mubr.f32.gmra.mxu0 %v2836
  %v3088 = vpop.f32.mrf.mxu0
  %v3089 = vadd.f32 %v2984, %v3088
  %v3090 = vpop.f32.mrf.mxu0
  %3091 = vmatprep.mubr.f32.mxu0 %v2903
  %3092 = vmatmul.mubr.f32.gmra.mxu0 %v2837
  %v3093 = vpop.f32.mrf.mxu0
  %v3094 = vadd.f32 %v2989, %v3093
  %v3095 = vpop.f32.mrf.mxu0
  %3096 = vmatprep.mubr.f32.mxu0 %v2905
  %3097 = vmatmul.mubr.f32.gmra.mxu0 %v2838
  %v3098 = vpop.f32.mrf.mxu0
  %v3099 = vadd.f32 %v2994, %v3098
  %v3100 = vpop.f32.mrf.mxu0
  %3101 = vmatprep.mubr.f32.mxu0 %v2907
  %3102 = vmatmul.mubr.f32.gmra.mxu0 %v2839
  %v3103 = vpop.f32.mrf.mxu0
  %v3104 = vadd.f32 %v2999, %v3103
  %v3105 = vpop.f32.mrf.mxu0
  %3106 = vmatprep.mubr.f32.mxu0 %v2909
  %3107 = vmatmul.mubr.f32.gmra.mxu0 %v2840
  %v3108 = vpop.f32.mrf.mxu0
  %v3109 = vadd.f32 %v3004, %v3108
  %v3110 = vpop.f32.mrf.mxu0
  %3111 = vmatprep.mubr.f32.mxu0 %v2911
  %3112 = vmatmul.mubr.f32.gmra.mxu0 %v2841
  %v3113 = vpop.f32.mrf.mxu0
  %v3114 = vadd.f32 %v3009, %v3113
  %v3115 = vpop.f32.mrf.mxu0
  %3116 = vmatprep.mubr.f32.mxu0 %v2913
  %3117 = vmatmul.mubr.f32.gmra.mxu0 %v2842
  %v3118 = vpop.f32.mrf.mxu0
  %v3119 = vadd.f32 %v3014, %v3118
  %v3120 = vpop.f32.mrf.mxu0
  %3121 = vmatprep.mubr.f32.mxu0 %v2915
  %3122 = vmatmul.mubr.f32.gmra.mxu0 %v2843
  %v3123 = vpop.f32.mrf.mxu0
  %v3124 = vadd.f32 %v3019, %v3123
  %v3125 = vpop.f32.mrf.mxu0
  %3126 = vdwg.mxu0
  %v3127 = vmax.f32 %v3089, 0.0
  %v3128 = vmax.f32 %v3094, 0.0
  %v3129 = vmax.f32 %v3099, 0.0
  %v3130 = vmax.f32 %v3104, 0.0
  %v3131 = vmax.f32 %v3109, 0.0
  %v3132 = vmax.f32 %v3114, 0.0
  %v3133 = vmax.f32 %v3119, 0.0
  %v3134 = vmax.f32 %v3124, 0.0
  %v3135 = vld [vmem:[%s9] sm:$0xff]
  %v3136 = vld [vmem:[%s9 + $0x8] sm:$0xff]
  %v3137 = vld [vmem:[%s9 + $0x10] sm:$0xff]
  %v3138 = vld [vmem:[%s9 + $0x18] sm:$0xff]
  %v3139 = vld [vmem:[%s9 + $0x20] sm:$0xff]
  %v3140 = vld [vmem:[%s9 + $0x28] sm:$0xff]
  %v3141 = vld [vmem:[%s9 + $0x30] sm:$0xff]
  %v3142 = vld [vmem:[%s9 + $0x38] sm:$0xff]
  %v3143 = vld [vmem:[%s9 + $0x40] sm:$0xff]
  %v3144 = vld [vmem:[%s9 + $0x48] sm:$0xff]
  %v3145 = vld [vmem:[%s9 + $0x50] sm:$0xff]
  %v3146 = vld [vmem:[%s9 + $0x58] sm:$0xff]
  %v3147 = vld [vmem:[%s9 + $0x60] sm:$0xff]
  %v3148 = vld [vmem:[%s9 + $0x68] sm:$0xff]
  %v3149 = vld [vmem:[%s9 + $0x70] sm:$0xff]
  %v3150 = vld [vmem:[%s10] sm:$0x1]
  %v3152 = vlaneseq
  %v3153 = vshrl.u32 %v3152, 7
  %v3154 = vsub.s32 0, %v3153
  %v3155 = vrot.slane %v3150, %v3154
  %v3158 = vsel %vm1791, %v3127, 0
  %v3161 = vsel %vm1791, %v3128, 0
  %v3164 = vsel %vm1791, %v3129, 0
  %v3167 = vsel %vm1791, %v3130, 0
  %v3170 = vsel %vm1791, %v3131, 0
  %v3173 = vsel %vm1791, %v3132, 0
  %v3176 = vsel %vm1791, %v3133, 0
  %v3179 = vsel %vm1791, %v3134, 0
  %3181 = vmatprep.subr.mxu0 0.0
  %3182 = vmatpush1.msra.mxu0 0.0
  %3183 = vmatprep.subr.mxu0 0.0
  %3184 = vmatpush1.msra.mxu0 %v3149
  %3185 = vmatprep.subr.mxu0 0.0
  %3186 = vmatpush1.msra.mxu0 %v3148
  %3187 = vmatprep.subr.mxu0 0.0
  %3188 = vmatpush1.msra.mxu0 %v3147
  %3189 = vmatprep.subr.mxu0 0.0
  %3190 = vmatpush1.msra.mxu0 %v3146
  %3191 = vmatprep.subr.mxu0 0.0
  %3192 = vmatpush1.msra.mxu0 %v3145
  %3193 = vmatprep.subr.mxu0 0.0
  %3194 = vmatpush1.msra.mxu0 %v3144
  %3195 = vmatprep.subr.mxu0 0.0
  %3196 = vmatpush1.msra.mxu0 %v3143
  %3197 = vmatprep.subr.mxu0 0.0
  %3198 = vmatpush1.msra.mxu0 %v3142
  %3199 = vmatprep.subr.mxu0 0.0
  %3200 = vmatpush1.msra.mxu0 %v3141
  %3201 = vmatprep.subr.mxu0 0.0
  %3202 = vmatpush1.msra.mxu0 %v3140
  %3203 = vmatprep.subr.mxu0 0.0
  %3204 = vmatpush1.msra.mxu0 %v3139
  %3205 = vmatprep.subr.mxu0 0.0
  %3206 = vmatpush1.msra.mxu0 %v3138
  %3207 = vmatprep.subr.mxu0 0.0
  %3208 = vmatpush1.msra.mxu0 %v3137
  %3209 = vmatprep.subr.mxu0 0.0
  %3210 = vmatpush1.msra.mxu0 %v3136
  %3211 = vmatprep.subr.mxu0 0.0
  %3212 = vmatpush1.msra.mxu0 %v3135
  %3213 = vmatprep.subr.mxu0 0.0
  %3214 = vmatpush2.msra.mxu0 0.0
  %3215 = vmatprep.subr.mxu0 0.0
  %3216 = vmatpush2.msra.mxu0 0.0
  %3217 = vmatprep.subr.mxu0 0.0
  %3218 = vmatpush2.msra.mxu0 0.0
  %3219 = vmatprep.subr.mxu0 0.0
  %3220 = vmatpush2.msra.mxu0 0.0
  %3221 = vmatprep.subr.mxu0 0.0
  %3222 = vmatpush2.msra.mxu0 0.0
  %3223 = vmatprep.subr.mxu0 0.0
  %3224 = vmatpush2.msra.mxu0 0.0
  %3225 = vmatprep.subr.mxu0 0.0
  %3226 = vmatpush2.msra.mxu0 0.0
  %3227 = vmatprep.subr.mxu0 0.0
  %3228 = vmatpush2.msra.mxu0 0.0
  %3229 = vmatprep.subr.mxu0 0.0
  %3230 = vmatpush2.msra.mxu0 0.0
  %3231 = vmatprep.subr.mxu0 0.0
  %3232 = vmatpush2.msra.mxu0 0.0
  %3233 = vmatprep.subr.mxu0 0.0
  %3234 = vmatpush2.msra.mxu0 0.0
  %3235 = vmatprep.subr.mxu0 0.0
  %3236 = vmatpush2.msra.mxu0 0.0
  %3237 = vmatprep.subr.mxu0 0.0
  %3238 = vmatpush2.msra.mxu0 0.0
  %3239 = vmatprep.subr.mxu0 0.0
  %3240 = vmatpush2.msra.mxu0 0.0
  %3241 = vmatprep.subr.mxu0 0.0
  %3242 = vmatpush2.msra.mxu0 0.0
  %3243 = vmatprep.subr.mxu0 0.0
  %3244 = vmatpush2.msra.mxu0 0.0
  %3245 = vmatprep.mubr.f32.mxu0 0.0
  %3246 = vmatmul.mubr.f32.gmra.mxu0 %v3158
  %v3247 = vpop.f32.mrf.mxu0
  %v3248 = vadd.f32 %v3155, %v3247
  %v3249 = vpop.f32.mrf.mxu0
  %3250 = vmatprep.mubr.f32.mxu0 0.0
  %3251 = vmatmul.mubr.f32.gmra.mxu0 %v3161
  %v3252 = vpop.f32.mrf.mxu0
  %v3253 = vadd.f32 %v3155, %v3252
  %v3254 = vpop.f32.mrf.mxu0
  %3255 = vmatprep.mubr.f32.mxu0 0.0
  %3256 = vmatmul.mubr.f32.gmra.mxu0 %v3164
  %v3257 = vpop.f32.mrf.mxu0
  %v3258 = vadd.f32 %v3155, %v3257
  %v3259 = vpop.f32.mrf.mxu0
  %3260 = vmatprep.mubr.f32.mxu0 0.0
  %3261 = vmatmul.mubr.f32.gmra.mxu0 %v3167
  %v3262 = vpop.f32.mrf.mxu0
  %v3263 = vadd.f32 %v3155, %v3262
  %v3264 = vpop.f32.mrf.mxu0
  %3265 = vmatprep.mubr.f32.mxu0 0.0
  %3266 = vmatmul.mubr.f32.gmra.mxu0 %v3170
  %v3267 = vpop.f32.mrf.mxu0
  %v3268 = vadd.f32 %v3155, %v3267
  %v3269 = vpop.f32.mrf.mxu0
  %3270 = vmatprep.mubr.f32.mxu0 0.0
  %3271 = vmatmul.mubr.f32.gmra.mxu0 %v3173
  %v3272 = vpop.f32.mrf.mxu0
  %v3273 = vadd.f32 %v3155, %v3272
  %v3274 = vpop.f32.mrf.mxu0
  %3275 = vmatprep.mubr.f32.mxu0 0.0
  %3276 = vmatmul.mubr.f32.gmra.mxu0 %v3176
  %v3277 = vpop.f32.mrf.mxu0
  %v3278 = vadd.f32 %v3155, %v3277
  %v3279 = vpop.f32.mrf.mxu0
  %3280 = vmatprep.mubr.f32.mxu0 0.0
  %3281 = vmatmul.mubr.f32.gmra.mxu0 %v3179
  %v3282 = vpop.f32.mrf.mxu0
  %v3283 = vadd.f32 %v3155, %v3282
  %v3284 = vpop.f32.mrf.mxu0
  %3285 = vdwg.mxu0
  %v3286 = vmax.f32 %v3248, 0.0
  %v3287 = vmax.f32 %v3253, 0.0
  %v3288 = vmax.f32 %v3258, 0.0
  %v3289 = vmax.f32 %v3263, 0.0
  %v3290 = vmax.f32 %v3268, 0.0
  %v3291 = vmax.f32 %v3273, 0.0
  %v3292 = vmax.f32 %v3278, 0.0
  %v3293 = vmax.f32 %v3283, 0.0
  %v3294 = vld [vmem:[%s11] sm:$0xff]
  %v3295 = vld [vmem:[%s11 + $0x8] sm:$0xff]
  %v3296 = vld [vmem:[%s11 + $0x10] sm:$0xff]
  %v3297 = vld [vmem:[%s11 + $0x18] sm:$0xff]
  %v3298 = vld [vmem:[%s11 + $0x20] sm:$0xff]
  %v3299 = vld [vmem:[%s11 + $0x28] sm:$0xff]
  %v3300 = vld [vmem:[%s11 + $0x30] sm:$0xff]
  %v3301 = vld [vmem:[%s11 + $0x38] sm:$0xff]
  %v3302 = vld [vmem:[%s11 + $0x40] sm:$0xff]
  %v3303 = vld [vmem:[%s11 + $0x48] sm:$0xff]
  %v3304 = vld [vmem:[%s11 + $0x50] sm:$0xf]
  %v3305 = vld [vmem:[%s12] sm:$0x1]
  %v3307 = vlaneseq
  %v3308 = vshrl.u32 %v3307, 7
  %v3309 = vsub.s32 0, %v3308
  %v3310 = vrot.slane %v3305, %v3309
  %vm3312 = vcmask 687104
  %v3314 = vsel %vm3312, %v3286, 0
  %v3317 = vsel %vm3312, %v3287, 0
  %v3320 = vsel %vm3312, %v3288, 0
  %v3323 = vsel %vm3312, %v3289, 0
  %v3326 = vsel %vm3312, %v3290, 0
  %v3329 = vsel %vm3312, %v3291, 0
  %v3332 = vsel %vm3312, %v3292, 0
  %v3335 = vsel %vm3312, %v3293, 0
  %v3338 = vsel %vm2692, %v3304, 0
  %3340 = vmatprep.subr.mxu0 0.0
  %3341 = vmatpush1.msra.mxu0 0.0
  %3342 = vmatprep.subr.mxu0 0.0
  %3343 = vmatpush1.msra.mxu0 0.0
  %3344 = vmatprep.subr.mxu0 0.0
  %3345 = vmatpush1.msra.mxu0 0.0
  %3346 = vmatprep.subr.mxu0 0.0
  %3347 = vmatpush1.msra.mxu0 0.0
  %3348 = vmatprep.subr.mxu0 0.0
  %3349 = vmatpush1.msra.mxu0 0.0
  %3350 = vmatprep.subr.mxu0 0.0
  %3351 = vmatpush1.msra.mxu0 %v3338
  %3352 = vmatprep.subr.mxu0 0.0
  %3353 = vmatpush1.msra.mxu0 %v3303
  %3354 = vmatprep.subr.mxu0 0.0
  %3355 = vmatpush1.msra.mxu0 %v3302
  %3356 = vmatprep.subr.mxu0 0.0
  %3357 = vmatpush1.msra.mxu0 %v3301
  %3358 = vmatprep.subr.mxu0 0.0
  %3359 = vmatpush1.msra.mxu0 %v3300
  %3360 = vmatprep.subr.mxu0 0.0
  %3361 = vmatpush1.msra.mxu0 %v3299
  %3362 = vmatprep.subr.mxu0 0.0
  %3363 = vmatpush1.msra.mxu0 %v3298
  %3364 = vmatprep.subr.mxu0 0.0
  %3365 = vmatpush1.msra.mxu0 %v3297
  %3366 = vmatprep.subr.mxu0 0.0
  %3367 = vmatpush1.msra.mxu0 %v3296
  %3368 = vmatprep.subr.mxu0 0.0
  %3369 = vmatpush1.msra.mxu0 %v3295
  %3370 = vmatprep.subr.mxu0 0.0
  %3371 = vmatpush1.msra.mxu0 %v3294
  %3372 = vmatprep.subr.mxu0 0.0
  %3373 = vmatpush2.msra.mxu0 0.0
  %3374 = vmatprep.subr.mxu0 0.0
  %3375 = vmatpush2.msra.mxu0 0.0
  %3376 = vmatprep.subr.mxu0 0.0
  %3377 = vmatpush2.msra.mxu0 0.0
  %3378 = vmatprep.subr.mxu0 0.0
  %3379 = vmatpush2.msra.mxu0 0.0
  %3380 = vmatprep.subr.mxu0 0.0
  %3381 = vmatpush2.msra.mxu0 0.0
  %3382 = vmatprep.subr.mxu0 0.0
  %3383 = vmatpush2.msra.mxu0 0.0
  %3384 = vmatprep.subr.mxu0 0.0
  %3385 = vmatpush2.msra.mxu0 0.0
  %3386 = vmatprep.subr.mxu0 0.0
  %3387 = vmatpush2.msra.mxu0 0.0
  %3388 = vmatprep.subr.mxu0 0.0
  %3389 = vmatpush2.msra.mxu0 0.0
  %3390 = vmatprep.subr.mxu0 0.0
  %3391 = vmatpush2.msra.mxu0 0.0
  %3392 = vmatprep.subr.mxu0 0.0
  %3393 = vmatpush2.msra.mxu0 0.0
  %3394 = vmatprep.subr.mxu0 0.0
  %3395 = vmatpush2.msra.mxu0 0.0
  %3396 = vmatprep.subr.mxu0 0.0
  %3397 = vmatpush2.msra.mxu0 0.0
  %3398 = vmatprep.subr.mxu0 0.0
  %3399 = vmatpush2.msra.mxu0 0.0
  %3400 = vmatprep.subr.mxu0 0.0
  %3401 = vmatpush2.msra.mxu0 0.0
  %3402 = vmatprep.subr.mxu0 0.0
  %3403 = vmatpush2.msra.mxu0 0.0
  %3404 = vmatprep.mubr.f32.mxu0 0.0
  %3405 = vmatmul.mubr.f32.gmra.mxu0 %v3314
  %v3406 = vpop.f32.mrf.mxu0
  %v3407 = vadd.f32 %v3310, %v3406
  %v3408 = vpop.f32.mrf.mxu0
  %3409 = vmatprep.mubr.f32.mxu0 0.0
  %3410 = vmatmul.mubr.f32.gmra.mxu0 %v3317
  %v3411 = vpop.f32.mrf.mxu0
  %v3412 = vadd.f32 %v3310, %v3411
  %v3413 = vpop.f32.mrf.mxu0
  %3414 = vmatprep.mubr.f32.mxu0 0.0
  %3415 = vmatmul.mubr.f32.gmra.mxu0 %v3320
  %v3416 = vpop.f32.mrf.mxu0
  %v3417 = vadd.f32 %v3310, %v3416
  %v3418 = vpop.f32.mrf.mxu0
  %3419 = vmatprep.mubr.f32.mxu0 0.0
  %3420 = vmatmul.mubr.f32.gmra.mxu0 %v3323
  %v3421 = vpop.f32.mrf.mxu0
  %v3422 = vadd.f32 %v3310, %v3421
  %v3423 = vpop.f32.mrf.mxu0
  %3424 = vmatprep.mubr.f32.mxu0 0.0
  %3425 = vmatmul.mubr.f32.gmra.mxu0 %v3326
  %v3426 = vpop.f32.mrf.mxu0
  %v3427 = vadd.f32 %v3310, %v3426
  %v3428 = vpop.f32.mrf.mxu0
  %3429 = vmatprep.mubr.f32.mxu0 0.0
  %3430 = vmatmul.mubr.f32.gmra.mxu0 %v3329
  %v3431 = vpop.f32.mrf.mxu0
  %v3432 = vadd.f32 %v3310, %v3431
  %v3433 = vpop.f32.mrf.mxu0
  %3434 = vmatprep.mubr.f32.mxu0 0.0
  %3435 = vmatmul.mubr.f32.gmra.mxu0 %v3332
  %v3436 = vpop.f32.mrf.mxu0
  %v3437 = vadd.f32 %v3310, %v3436
  %v3438 = vpop.f32.mrf.mxu0
  %3439 = vmatprep.mubr.f32.mxu0 0.0
  %3440 = vmatmul.mubr.f32.gmra.mxu0 %v3335
  %v3441 = vpop.f32.mrf.mxu0
  %v3442 = vadd.f32 %v3310, %v3441
  %v3443 = vpop.f32.mrf.mxu0
  %3444 = vdwg.mxu0
  %3445 = vst [vmem:[%s13] sm:$0xff] %v3407
  %3446 = vst [vmem:[%s13 + $0x8] sm:$0xff] %v3412
  %3447 = vst [vmem:[%s13 + $0x10] sm:$0xff] %v3417
  %3448 = vst [vmem:[%s13 + $0x18] sm:$0xff] %v3422
  %3449 = vst [vmem:[%s13 + $0x20] sm:$0xff] %v3427
  %3450 = vst [vmem:[%s13 + $0x28] sm:$0xff] %v3432
  %3451 = vst [vmem:[%s13 + $0x30] sm:$0xff] %v3437
  %3452 = vst [vmem:[%s13 + $0x38] sm:$0xff] %v3442
  // Predicated region
  $region54: #{lenet_forward.1} parent=0 // pred_check
    _
  $region55: #{lenet_forward.1} parent=0 // pred_check_branch
    %3454 = sbr.rel (0) target = $region57
  $region56: #{lenet_forward.1} parent=0 // pred_region
    _
  $region57: #{lenet_forward.1} parent=0 // pred_fallthru
    _
  // Predicated region
  $region58: #{lenet_forward.1} parent=0 // pred_check
    _
  $region59: #{lenet_forward.1} parent=0 // pred_check_branch
    %3456 = sbr.rel (0) target = $region61
  $region60: #{lenet_forward.1} parent=0 // pred_region
    _
  $region61: #{lenet_forward.1} parent=0 // pred_fallthru
    _

</llo_original>
